<compile_context>
chip_gen: v6e
topology: v6e:2x2x1
jax: 0.10.0
libtpu: 0.0.40
codegen_flags: <defaults>
</compile_context>

<pallas_src>
import functools

import jax
import jax.numpy as jnp
from jax.experimental import pallas as pl
from jax.experimental.pallas import tpu as pltpu


def _add_conv1x1_bn_kernel(a_ref, b_ref, w_ref, gamma_ref, beta_ref,
                           o_ref, stats_ref, *, eps, p_valid):
    # residual-style add (Cin x P_pad, tiny)
    s = a_ref[...] + b_ref[...]                                       # (Cin, Pp)

    # 1x1 convolution == MXU matmul: (tc, Cin) @ (Cin, Pp).
    # Write directly into the output tile (no separate VMEM temp for y).
    o_ref[...] = jnp.dot(w_ref[...], s, preferred_element_type=jnp.float32)
    y = o_ref[...]                                                    # (tc, Pp)

    inv_p = 1.0 / float(p_valid)

    # BatchNorm2d (training): per-channel batch stats over the P valid columns.
    # Padded columns of y are exactly zero (W @ 0), so sum_y needs no mask.
    sum_y = jnp.sum(y, axis=1, keepdims=True)                         # (tc, 1)
    mean = sum_y * inv_p

    # Centered variance; mask the zero-padded lanes so they don't contribute.
    lane = jax.lax.broadcasted_iota(jnp.int32, y.shape, 1)
    d = jnp.where(lane < p_valid, y - mean, 0.0)
    var = jnp.sum(d * d, axis=1, keepdims=True) * inv_p               # biased (1/P)
    inv_std = jax.lax.rsqrt(var + eps)                                # EUP slot

    # fold gamma/beta into one affine: out = y * scale + bias
    scale = gamma_ref[...] * inv_std                                  # (tc, 1)
    bias = beta_ref[...] - mean * scale                               # (tc, 1)

    o_ref[...] = y * scale + bias                                     # in place
    stats_ref[...] = jnp.concatenate([mean, var], axis=1)             # (tc, 2)


def _pick_block_cout(cout):
    """1 block per TensorCore: v5e/v6e have 1 TC; v7x has 2 TCs per chip."""
    try:
        kind = jax.devices()[0].device_kind.lower()
    except Exception:
        kind = ""
    num_tc = 2 if "v7" in kind else 1
    if num_tc > 1 and cout % num_tc == 0 and (cout // num_tc) % 8 == 0:
        return cout // num_tc
    return cout


def fused_add_conv_bn(x85, x77, conv_w, gamma, beta, eps=1e-5, block_cout=None):
    """x85, x77: (N, Cin, H, W) float32; conv_w: (Cout, Cin, 1, 1).

    Returns (out_nchw, batch_mean, batch_var[biased])."""
    N, Cin, H, W = x85.shape
    Cout = conv_w.shape[0]
    P = N * H * W
    P_pad = ((P + 127) // 128) * 128       # lane-dense (multiple of 128)

    # NCHW -> channels-major (Cin, P).  Free reshape for N == 1 (no transpose).
    if N == 1:
        a = x85.reshape(Cin, P)
        b = x77.reshape(Cin, P)
    else:
        a = jnp.transpose(x85, (1, 0, 2, 3)).reshape(Cin, P)
        b = jnp.transpose(x77, (1, 0, 2, 3)).reshape(Cin, P)

    if P_pad != P:
        a = jnp.pad(a, ((0, 0), (0, P_pad - P)))
        b = jnp.pad(b, ((0, 0), (0, P_pad - P)))

    w = conv_w.reshape(Cout, Cin).astype(jnp.float32)                 # (Cout, Cin)
    g = gamma.reshape(Cout, 1).astype(jnp.float32)                    # (Cout, 1)
    bt = beta.reshape(Cout, 1).astype(jnp.float32)                    # (Cout, 1)

    # Output-channel tile: one block per TensorCore (multiple of 8 sublanes).
    if block_cout is None:
        block_cout = _pick_block_cout(Cout)
    if Cout % block_cout == 0 and block_cout % 8 == 0:
        tc = block_cout
    else:
        tc = Cout
    n_blk = Cout // tc

    kernel = functools.partial(_add_conv1x1_bn_kernel,
                               eps=float(eps), p_valid=int(P))

    flops = 2 * Cout * Cin * P_pad + 8 * Cout * P_pad
    bytes_accessed = 4 * (2 * Cin * P_pad + Cout * Cin + 2 * Cout
                          + Cout * P_pad + 2 * Cout)

    out, stats = pl.pallas_call(
        kernel,
        out_shape=(
            jax.ShapeDtypeStruct((Cout, P_pad), jnp.float32),
            jax.ShapeDtypeStruct((Cout, 2), jnp.float32),   # [:,0]=mean, [:,1]=var
        ),
        grid=(n_blk,),
        in_specs=[
            pl.BlockSpec((Cin, P_pad), lambda j: (0, 0)),    # a: resident across grid
            pl.BlockSpec((Cin, P_pad), lambda j: (0, 0)),    # b: resident across grid
            pl.BlockSpec((tc, Cin), lambda j: (j, 0)),       # weight block
            pl.BlockSpec((tc, 1), lambda j: (j, 0)),         # gamma block
            pl.BlockSpec((tc, 1), lambda j: (j, 0)),         # beta block
        ],
        out_specs=(
            pl.BlockSpec((tc, P_pad), lambda j: (j, 0)),
            pl.BlockSpec((tc, 2), lambda j: (j, 0)),
        ),
        compiler_params=pltpu.CompilerParams(
            dimension_semantics=("parallel",),               # shard blocks across TCs
        ),
        cost_estimate=pl.CostEstimate(
            flops=flops, transcendentals=Cout, bytes_accessed=bytes_accessed),
    )(a, b, w, g, bt)

    out = out[:, :P]                      # drop padded columns
    # (Cout, P) -> (N, Cout, H, W).  Free reshape for N == 1.
    if N == 1:
        out_nchw = out.reshape(1, Cout, H, W)
    else:
        out_nchw = out.reshape(Cout, N, H, W).transpose(1, 0, 2, 3)

    # TODO(synk): running_mean/running_var buffer updates (momentum=3e-4;
    # PyTorch uses the *unbiased* var, i.e. multiply bvar by P/(P-1)) are a
    # training-state side effect, not part of the forward output; the batch
    # stats are returned so the caller can apply them.
    return out_nchw, stats[:, 0], stats[:, 1]


if __name__ == "__main__":
    key = jax.random.PRNGKey(0)
    k1, k2, k3, k4, k5 = jax.random.split(key, 5)

    N, Cin, Cout, H, W = 1, 80, 480, 14, 14

    # deterministic synthetic inputs / parameters
    x85 = jax.random.normal(k1, (N, Cin, H, W), dtype=jnp.float32)
    x77 = jax.random.normal(k2, (N, Cin, H, W), dtype=jnp.float32)
    conv_w = jax.random.normal(k3, (Cout, Cin, 1, 1), dtype=jnp.float32) * 0.05
    gamma = 1.0 + 0.1 * jax.random.normal(k4, (Cout,), dtype=jnp.float32)
    beta = 0.1 * jax.random.normal(k5, (Cout,), dtype=jnp.float32)

    out, bmean, bvar = fused_add_conv_bn(x85, x77, conv_w, gamma, beta, eps=1e-5)
    out = jax.block_until_ready(out)

    assert out.shape == (N, Cout, H, W), out.shape
    assert out.dtype == jnp.float32

    # pure-JAX reference (PyTorch training-mode BN: biased variance over N*H*W)
    s = x85 + x77
    y = jnp.einsum("nchw,oc->nohw", s, conv_w.reshape(Cout, Cin))
    m = y.mean(axis=(0, 2, 3), keepdims=True)
    v = ((y - m) ** 2).mean(axis=(0, 2, 3), keepdims=True)
    ref = (y - m) * jax.lax.rsqrt(v + 1e-5) * gamma.reshape(1, Cout, 1, 1) \
        + beta.reshape(1, Cout, 1, 1)

    assert bool(jnp.all(jnp.isfinite(out)))
    assert bool(jnp.allclose(out, ref, atol=1e-2, rtol=1e-2)), \
        float(jnp.max(jnp.abs(out - ref)))
    assert bool(jnp.allclose(bmean, m.reshape(Cout), atol=1e-3, rtol=1e-3))
    assert bool(jnp.allclose(bvar, v.reshape(Cout), atol=1e-3, rtol=1e-3))

    print("KERNEL_OK")
</pallas_src>

<mosaic_0001>
module attributes {stable_mosaic.version = 11 : i64} {
  func.func @_add_conv1x1_bn_kernel(%arg0: i32, %arg1: memref<80x256xf32, #tpu.memory_space<vmem>>, %arg2: memref<80x256xf32, #tpu.memory_space<vmem>>, %arg3: memref<480x80xf32, #tpu.memory_space<vmem>>, %arg4: memref<480x1xf32, #tpu.memory_space<vmem>>, %arg5: memref<480x1xf32, #tpu.memory_space<vmem>>, %arg6: memref<480x256xf32, #tpu.memory_space<vmem>>, %arg7: memref<480x2xf32, #tpu.memory_space<vmem>>) attributes {dimension_semantics = [#tpu.dimension_semantics<parallel>], iteration_bounds = array<i64: 1>, scalar_prefetch = 0 : i64, scratch_operands = 0 : i64, tpu.core_type = #tpu.core_type<tc>, window_params = [{pipeline_mode = #tpu.pipeline_mode<synchronous>, transform_indices = @transform_0, window_bounds = array<i64: 80, 256>}, {pipeline_mode = #tpu.pipeline_mode<synchronous>, transform_indices = @transform_1, window_bounds = array<i64: 80, 256>}, {transform_indices = @transform_2, window_bounds = array<i64: 480, 80>}, {transform_indices = @transform_3, window_bounds = array<i64: 480, 1>}, {transform_indices = @transform_4, window_bounds = array<i64: 480, 1>}, {transform_indices = @transform_5, window_bounds = array<i64: 480, 256>}, {transform_indices = @transform_6, window_bounds = array<i64: 480, 2>}]} {
    %c0 = arith.constant 0 : index
    %c0_0 = arith.constant 0 : index
    %0 = vector.load %arg1[%c0, %c0_0] : memref<80x256xf32, #tpu.memory_space<vmem>>, vector<80x256xf32>
    %c0_1 = arith.constant 0 : index
    %c0_2 = arith.constant 0 : index
    %1 = vector.load %arg2[%c0_1, %c0_2] : memref<80x256xf32, #tpu.memory_space<vmem>>, vector<80x256xf32>
    %2 = arith.addf %0, %1 : vector<80x256xf32>
    %c0_3 = arith.constant 0 : index
    %c0_4 = arith.constant 0 : index
    %3 = vector.load %arg3[%c0_3, %c0_4] : memref<480x80xf32, #tpu.memory_space<vmem>>, vector<480x80xf32>
    %cst = arith.constant dense<0.000000e+00> : vector<480x256xf32>
    %4 = tpu.matmul %3, %2, %cst {dimension_numbers = #tpu.dot_dimension_numbers<[1], [0], [0], [1], [0, 0, 1, 1], [], []>} : vector<480x80xf32>, vector<80x256xf32>, vector<480x256xf32> -> vector<480x256xf32>
    %c0_5 = arith.constant 0 : index
    %c0_6 = arith.constant 0 : index
    %5 = vector.load %arg6[%c0_5, %c0_6] : memref<480x256xf32, #tpu.memory_space<vmem>>, vector<480x256xf32>
    tpu.vector_store %arg6[%c0_5, %c0_6], %4 {strides = array<i32>} : memref<480x256xf32, #tpu.memory_space<vmem>>, vector<480x256xf32>,
    %c0_7 = arith.constant 0 : index
    %c0_8 = arith.constant 0 : index
    %6 = vector.load %arg6[%c0_7, %c0_8] : memref<480x256xf32, #tpu.memory_space<vmem>>, vector<480x256xf32>
    %cst_9 = arith.constant dense<0.000000e+00> : vector<480xf32>
    %7 = vector.multi_reduction <add>, %6, %cst_9 [1] : vector<480x256xf32> to vector<480xf32>
    %8 = vector.shape_cast %7 : vector<480xf32> to vector<480x1xf32>
    %cst_10 = arith.constant 0.00510204071 : f32
    %9 = vector.broadcast %cst_10 : f32 to vector<480x1xf32>
    %10 = arith.mulf %8, %9 : vector<480x1xf32>
    %11 = tpu.iota {dimensions = array<i32: 1>} : vector<480x256xi32>
    %c196_i32 = arith.constant 196 : i32
    %12 = vector.broadcast %c196_i32 : i32 to vector<480x256xi32>
    %13 = arith.cmpi slt, %11, %12 : vector<480x256xi32>
    %14 = vector.broadcast %10 : vector<480x1xf32> to vector<480x256xf32>
    %15 = arith.subf %6, %14 : vector<480x256xf32>
    %cst_11 = arith.constant 0.000000e+00 : f32
    %16 = vector.broadcast %cst_11 : f32 to vector<480x256xf32>
    %17 = arith.select %13, %15, %16 : vector<480x256xi1>, vector<480x256xf32>
    %18 = arith.mulf %17, %17 : vector<480x256xf32>
    %cst_12 = arith.constant dense<0.000000e+00> : vector<480xf32>
    %19 = vector.multi_reduction <add>, %18, %cst_12 [1] : vector<480x256xf32> to vector<480xf32>
    %20 = vector.shape_cast %19 : vector<480xf32> to vector<480x1xf32>
    %cst_13 = arith.constant 0.00510204071 : f32
    %21 = vector.broadcast %cst_13 : f32 to vector<480x1xf32>
    %22 = arith.mulf %20, %21 : vector<480x1xf32>
    %cst_14 = arith.constant 9.99999974E-6 : f32
    %23 = vector.broadcast %cst_14 : f32 to vector<480x1xf32>
    %24 = arith.addf %22, %23 : vector<480x1xf32>
    %25 = math.rsqrt %24 : vector<480x1xf32>
    %c0_15 = arith.constant 0 : index
    %c0_16 = arith.constant 0 : index
    %26 = vector.load %arg4[%c0_15, %c0_16] : memref<480x1xf32, #tpu.memory_space<vmem>>, vector<480x1xf32>
    %27 = arith.mulf %26, %25 : vector<480x1xf32>
    %c0_17 = arith.constant 0 : index
    %c0_18 = arith.constant 0 : index
    %28 = vector.load %arg5[%c0_17, %c0_18] : memref<480x1xf32, #tpu.memory_space<vmem>>, vector<480x1xf32>
    %29 = arith.mulf %10, %27 : vector<480x1xf32>
    %30 = arith.subf %28, %29 : vector<480x1xf32>
    %31 = vector.broadcast %27 : vector<480x1xf32> to vector<480x256xf32>
    %32 = arith.mulf %6, %31 : vector<480x256xf32>
    %33 = vector.broadcast %30 : vector<480x1xf32> to vector<480x256xf32>
    %34 = arith.addf %32, %33 : vector<480x256xf32>
    %c0_19 = arith.constant 0 : index
    %c0_20 = arith.constant 0 : index
    %35 = vector.load %arg6[%c0_19, %c0_20] : memref<480x256xf32, #tpu.memory_space<vmem>>, vector<480x256xf32>
    tpu.vector_store %arg6[%c0_19, %c0_20], %34 {strides = array<i32>} : memref<480x256xf32, #tpu.memory_space<vmem>>, vector<480x256xf32>,
    %36 = tpu.concatenate %10, %22 in 1 : vector<480x1xf32>, vector<480x1xf32> -> vector<480x2xf32>
    %c0_21 = arith.constant 0 : index
    %c0_22 = arith.constant 0 : index
    %37 = vector.load %arg7[%c0_21, %c0_22] : memref<480x2xf32, #tpu.memory_space<vmem>>, vector<480x2xf32>
    tpu.vector_store %arg7[%c0_21, %c0_22], %36 {strides = array<i32>} : memref<480x2xf32, #tpu.memory_space<vmem>>, vector<480x2xf32>,
    return
  }
  func.func @transform_0(%arg0: i32) -> (i32, i32) {
    %c0_i32 = arith.constant 0 : i32
    %c0_i32_0 = arith.constant 0 : i32
    %c0_i32_1 = arith.constant 0 : i32
    return %c0_i32, %c0_i32_0 : i32, i32
  }
  func.func @transform_1(%arg0: i32) -> (i32, i32) {
    %c0_i32 = arith.constant 0 : i32
    %c0_i32_0 = arith.constant 0 : i32
    %c0_i32_1 = arith.constant 0 : i32
    return %c0_i32, %c0_i32_0 : i32, i32
  }
  func.func @transform_2(%arg0: i32) -> (i32, i32) {
    %c0_i32 = arith.constant 0 : i32
    %c0_i32_0 = arith.constant 0 : i32
    return %arg0, %c0_i32 : i32, i32
  }
  func.func @transform_3(%arg0: i32) -> (i32, i32) {
    %c0_i32 = arith.constant 0 : i32
    %c0_i32_0 = arith.constant 0 : i32
    return %arg0, %c0_i32 : i32, i32
  }
  func.func @transform_4(%arg0: i32) -> (i32, i32) {
    %c0_i32 = arith.constant 0 : i32
    %c0_i32_0 = arith.constant 0 : i32
    return %arg0, %c0_i32 : i32, i32
  }
  func.func @transform_5(%arg0: i32) -> (i32, i32) {
    %c0_i32 = arith.constant 0 : i32
    %c0_i32_0 = arith.constant 0 : i32
    return %arg0, %c0_i32 : i32, i32
  }
  func.func @transform_6(%arg0: i32) -> (i32, i32) {
    %c0_i32 = arith.constant 0 : i32
    %c0_i32_0 = arith.constant 0 : i32
    return %arg0, %c0_i32 : i32, i32
  }
}

</mosaic_0001>

<llo_original>
// kernel: tpu_custom_call.1
$region0: #{tpu_custom_call.1}
  #allocation0 [shape = 'u32[]', space=smem, size = 0x4, offset = 0x4, fixed_abs, tag = 'smem constant byte address 0x4 - core index']
  #allocation1 [shape = 'u32[144,128]{1,0:T(1,128)}', space=vmem, size = 0x12000, scoped, tag = 'internal scratch']
  %s0 = inlined_call_operand.vmem [shape: f32[80,256], index: 0, kind: input, shape index: {}]
  %s1 = inlined_call_operand.vmem [shape: f32[80,256], index: 1, kind: input, shape index: {}]
  %s2 = inlined_call_operand.vmem [shape: f32[480,80], index: 2, kind: input, shape index: {}]
  %s3 = inlined_call_operand.vmem [shape: f32[480,1], index: 3, kind: input, shape index: {}]
  %s4 = inlined_call_operand.vmem [shape: f32[480,1], index: 4, kind: input, shape index: {}]
  %s5 = inlined_call_operand.hbm [shape: f32[480,256], index: 5, kind: output, shape index: {0}]
  %s6 = inlined_call_operand.vmem [shape: f32[480,2], index: 6, kind: output, shape index: {1}]
  %7 = xla_tuple %s5, %s6
  %s8 = sld [smem:[#allocation0]]
  $region38: #{tpu_custom_call.1} parent=0
    _
  %s10 = ssub.s32 1, %s8
  %s11 = scalar_select 0, %s10, %s8
  $region1: #{tpu_custom_call.1} parent=0
    #allocation2 [shape = 'u8[491520]{0}', space=vmem, size = 0x78000, scoped, tag = 'output window, operand 0, single buffered']
    #allocation3 [shape = 's32[1]{0}', space=sflag, size = 0x4, scoped, tag = 'scoped memory for tpu_custom_call.1']
    %12 = vsyncpa [#allocation3], 0
    // Predicated region
    $region2: #{tpu_custom_call.1} parent=1 // pred_check
      _
    $region3: #{tpu_custom_call.1} parent=1 // pred_check_branch
      %14 = sbr.rel (0) target = $region5
    $region4: #{tpu_custom_call.1} parent=1 // pred_region
      _
    $region5: #{tpu_custom_call.1} parent=1 // pred_fallthru
      _
    // Predicated region
    $region6: #{tpu_custom_call.1} parent=1 // pred_check
      _
    $region7: #{tpu_custom_call.1} parent=1 // pred_check_branch
      %16 = sbr.rel (0) target = $region9
    $region8: #{tpu_custom_call.1} parent=1 // pred_region
      _
    $region9: #{tpu_custom_call.1} parent=1 // pred_fallthru
      _
    // Predicated region
    $region10: #{tpu_custom_call.1} parent=1 // pred_check
      _
    $region11: #{tpu_custom_call.1} parent=1 // pred_check_branch
      %18 = sbr.rel (0) target = $region13
    $region12: #{tpu_custom_call.1} parent=1 // pred_region
      _
    $region13: #{tpu_custom_call.1} parent=1 // pred_fallthru
      _
    // Predicated region
    $region14: #{tpu_custom_call.1} parent=1 // pred_check
      _
    $region15: #{tpu_custom_call.1} parent=1 // pred_check_branch
      %20 = sbr.rel (0) target = $region17
    $region16: #{tpu_custom_call.1} parent=1 // pred_region
      _
    $region17: #{tpu_custom_call.1} parent=1 // pred_fallthru
      _
    // Predicated region
    $region18: #{tpu_custom_call.1} parent=1 // pred_check
      _
    $region19: #{tpu_custom_call.1} parent=1 // pred_check_branch
      %22 = sbr.rel (0) target = $region21
    $region20: #{tpu_custom_call.1} parent=1 // pred_region
      _
    $region21: #{tpu_custom_call.1} parent=1 // pred_fallthru
      _
    %v23 = vld [vmem:[%s0] sm:$0xff]
    %v24 = vld [vmem:[%s0 + $0x8] sm:$0xff]
    %v25 = vld [vmem:[%s0 + $0x10] sm:$0xff]
    %v26 = vld [vmem:[%s0 + $0x18] sm:$0xff]
    %v27 = vld [vmem:[%s0 + $0x20] sm:$0xff]
    %v28 = vld [vmem:[%s0 + $0x28] sm:$0xff]
    %v29 = vld [vmem:[%s0 + $0x30] sm:$0xff]
    %v30 = vld [vmem:[%s0 + $0x38] sm:$0xff]
    %v31 = vld [vmem:[%s0 + $0x40] sm:$0xff]
    %v32 = vld [vmem:[%s0 + $0x48] sm:$0xff]
    %v33 = vld [vmem:[%s0 + $0x50] sm:$0xff]
    %v34 = vld [vmem:[%s0 + $0x58] sm:$0xff]
    %v35 = vld [vmem:[%s0 + $0x60] sm:$0xff]
    %v36 = vld [vmem:[%s0 + $0x68] sm:$0xff]
    %v37 = vld [vmem:[%s0 + $0x70] sm:$0xff]
    %v38 = vld [vmem:[%s0 + $0x78] sm:$0xff]
    %v39 = vld [vmem:[%s0 + $0x80] sm:$0xff]
    %v40 = vld [vmem:[%s0 + $0x88] sm:$0xff]
    %v41 = vld [vmem:[%s0 + $0x90] sm:$0xff]
    %v42 = vld [vmem:[%s0 + $0x98] sm:$0xff]
    %v43 = vld [vmem:[%s1] sm:$0xff]
    %v44 = vld [vmem:[%s1 + $0x8] sm:$0xff]
    %v45 = vld [vmem:[%s1 + $0x10] sm:$0xff]
    %v46 = vld [vmem:[%s1 + $0x18] sm:$0xff]
    %v47 = vld [vmem:[%s1 + $0x20] sm:$0xff]
    %v48 = vld [vmem:[%s1 + $0x28] sm:$0xff]
    %v49 = vld [vmem:[%s1 + $0x30] sm:$0xff]
    %v50 = vld [vmem:[%s1 + $0x38] sm:$0xff]
    %v51 = vld [vmem:[%s1 + $0x40] sm:$0xff]
    %v52 = vld [vmem:[%s1 + $0x48] sm:$0xff]
    %v53 = vld [vmem:[%s1 + $0x50] sm:$0xff]
    %v54 = vld [vmem:[%s1 + $0x58] sm:$0xff]
    %v55 = vld [vmem:[%s1 + $0x60] sm:$0xff]
    %v56 = vld [vmem:[%s1 + $0x68] sm:$0xff]
    %v57 = vld [vmem:[%s1 + $0x70] sm:$0xff]
    %v58 = vld [vmem:[%s1 + $0x78] sm:$0xff]
    %v59 = vld [vmem:[%s1 + $0x80] sm:$0xff]
    %v60 = vld [vmem:[%s1 + $0x88] sm:$0xff]
    %v61 = vld [vmem:[%s1 + $0x90] sm:$0xff]
    %v62 = vld [vmem:[%s1 + $0x98] sm:$0xff]
    %v63 = vadd.f32 %v23, %v43
    %v64 = vadd.f32 %v24, %v44
    %v65 = vadd.f32 %v25, %v45
    %v66 = vadd.f32 %v26, %v46
    %v67 = vadd.f32 %v27, %v47
    %v68 = vadd.f32 %v28, %v48
    %v69 = vadd.f32 %v29, %v49
    %v70 = vadd.f32 %v30, %v50
    %v71 = vadd.f32 %v31, %v51
    %v72 = vadd.f32 %v32, %v52
    %v73 = vadd.f32 %v33, %v53
    %v74 = vadd.f32 %v34, %v54
    %v75 = vadd.f32 %v35, %v55
    %v76 = vadd.f32 %v36, %v56
    %v77 = vadd.f32 %v37, %v57
    %v78 = vadd.f32 %v38, %v58
    %v79 = vadd.f32 %v39, %v59
    %v80 = vadd.f32 %v40, %v60
    %v81 = vadd.f32 %v41, %v61
    %v82 = vadd.f32 %v42, %v62
    %v83 = vld [vmem:[%s2] sm:$0xff]
    %v84 = vld [vmem:[%s2 + $0x8] sm:$0xff]
    %v85 = vld [vmem:[%s2 + $0x10] sm:$0xff]
    %v86 = vld [vmem:[%s2 + $0x18] sm:$0xff]
    %v87 = vld [vmem:[%s2 + $0x20] sm:$0xff]
    %v88 = vld [vmem:[%s2 + $0x28] sm:$0xff]
    %v89 = vld [vmem:[%s2 + $0x30] sm:$0xff]
    %v90 = vld [vmem:[%s2 + $0x38] sm:$0xff]
    %v91 = vld [vmem:[%s2 + $0x40] sm:$0xff]
    %v92 = vld [vmem:[%s2 + $0x48] sm:$0xff]
    %v93 = vld [vmem:[%s2 + $0x50] sm:$0xff]
    %v94 = vld [vmem:[%s2 + $0x58] sm:$0xff]
    %v95 = vld [vmem:[%s2 + $0x60] sm:$0xff]
    %v96 = vld [vmem:[%s2 + $0x68] sm:$0xff]
    %v97 = vld [vmem:[%s2 + $0x70] sm:$0xff]
    %v98 = vld [vmem:[%s2 + $0x78] sm:$0xff]
    %v99 = vld [vmem:[%s2 + $0x80] sm:$0xff]
    %v100 = vld [vmem:[%s2 + $0x88] sm:$0xff]
    %v101 = vld [vmem:[%s2 + $0x90] sm:$0xff]
    %v102 = vld [vmem:[%s2 + $0x98] sm:$0xff]
    %v103 = vld [vmem:[%s2 + $0xa0] sm:$0xff]
    %v104 = vld [vmem:[%s2 + $0xa8] sm:$0xff]
    %v105 = vld [vmem:[%s2 + $0xb0] sm:$0xff]
    %v106 = vld [vmem:[%s2 + $0xb8] sm:$0xff]
    %v107 = vld [vmem:[%s2 + $0xc0] sm:$0xff]
    %v108 = vld [vmem:[%s2 + $0xc8] sm:$0xff]
    %v109 = vld [vmem:[%s2 + $0xd0] sm:$0xff]
    %v110 = vld [vmem:[%s2 + $0xd8] sm:$0xff]
    %v111 = vld [vmem:[%s2 + $0xe0] sm:$0xff]
    %v112 = vld [vmem:[%s2 + $0xe8] sm:$0xff]
    %v113 = vld [vmem:[%s2 + $0xf0] sm:$0xff]
    %v114 = vld [vmem:[%s2 + $0xf8] sm:$0xff]
    %v115 = vld [vmem:[%s2 + $0x100] sm:$0xff]
    %v116 = vld [vmem:[%s2 + $0x108] sm:$0xff]
    %v117 = vld [vmem:[%s2 + $0x110] sm:$0xff]
    %v118 = vld [vmem:[%s2 + $0x118] sm:$0xff]
    %v119 = vld [vmem:[%s2 + $0x120] sm:$0xff]
    %v120 = vld [vmem:[%s2 + $0x128] sm:$0xff]
    %v121 = vld [vmem:[%s2 + $0x130] sm:$0xff]
    %v122 = vld [vmem:[%s2 + $0x138] sm:$0xff]
    %v123 = vld [vmem:[%s2 + $0x140] sm:$0xff]
    %v124 = vld [vmem:[%s2 + $0x148] sm:$0xff]
    %v125 = vld [vmem:[%s2 + $0x150] sm:$0xff]
    %v126 = vld [vmem:[%s2 + $0x158] sm:$0xff]
    %v127 = vld [vmem:[%s2 + $0x160] sm:$0xff]
    %v128 = vld [vmem:[%s2 + $0x168] sm:$0xff]
    %v129 = vld [vmem:[%s2 + $0x170] sm:$0xff]
    %v130 = vld [vmem:[%s2 + $0x178] sm:$0xff]
    %v131 = vld [vmem:[%s2 + $0x180] sm:$0xff]
    %v132 = vld [vmem:[%s2 + $0x188] sm:$0xff]
    %v133 = vld [vmem:[%s2 + $0x190] sm:$0xff]
    %v134 = vld [vmem:[%s2 + $0x198] sm:$0xff]
    %v135 = vld [vmem:[%s2 + $0x1a0] sm:$0xff]
    %v136 = vld [vmem:[%s2 + $0x1a8] sm:$0xff]
    %v137 = vld [vmem:[%s2 + $0x1b0] sm:$0xff]
    %v138 = vld [vmem:[%s2 + $0x1b8] sm:$0xff]
    %v139 = vld [vmem:[%s2 + $0x1c0] sm:$0xff]
    %v140 = vld [vmem:[%s2 + $0x1c8] sm:$0xff]
    %v141 = vld [vmem:[%s2 + $0x1d0] sm:$0xff]
    %v142 = vld [vmem:[%s2 + $0x1d8] sm:$0xff]
    %vm143 = vcmask 654336
    %v145 = vsel %vm143, %v83, 0
    %v148 = vsel %vm143, %v84, 0
    %v151 = vsel %vm143, %v85, 0
    %v154 = vsel %vm143, %v86, 0
    %v157 = vsel %vm143, %v87, 0
    %v160 = vsel %vm143, %v88, 0
    %v163 = vsel %vm143, %v89, 0
    %v166 = vsel %vm143, %v90, 0
    %v169 = vsel %vm143, %v91, 0
    %v172 = vsel %vm143, %v92, 0
    %v175 = vsel %vm143, %v93, 0
    %v178 = vsel %vm143, %v94, 0
    %v181 = vsel %vm143, %v95, 0
    %v184 = vsel %vm143, %v96, 0
    %v187 = vsel %vm143, %v97, 0
    %v190 = vsel %vm143, %v98, 0
    %v193 = vsel %vm143, %v99, 0
    %v196 = vsel %vm143, %v100, 0
    %v199 = vsel %vm143, %v101, 0
    %v202 = vsel %vm143, %v102, 0
    %v205 = vsel %vm143, %v103, 0
    %v208 = vsel %vm143, %v104, 0
    %v211 = vsel %vm143, %v105, 0
    %v214 = vsel %vm143, %v106, 0
    %v217 = vsel %vm143, %v107, 0
    %v220 = vsel %vm143, %v108, 0
    %v223 = vsel %vm143, %v109, 0
    %v226 = vsel %vm143, %v110, 0
    %v229 = vsel %vm143, %v111, 0
    %v232 = vsel %vm143, %v112, 0
    %v235 = vsel %vm143, %v113, 0
    %v238 = vsel %vm143, %v114, 0
    %v241 = vsel %vm143, %v115, 0
    %v244 = vsel %vm143, %v116, 0
    %v247 = vsel %vm143, %v117, 0
    %v250 = vsel %vm143, %v118, 0
    %v253 = vsel %vm143, %v119, 0
    %v256 = vsel %vm143, %v120, 0
    %v259 = vsel %vm143, %v121, 0
    %v262 = vsel %vm143, %v122, 0
    %v265 = vsel %vm143, %v123, 0
    %v268 = vsel %vm143, %v124, 0
    %v271 = vsel %vm143, %v125, 0
    %v274 = vsel %vm143, %v126, 0
    %v277 = vsel %vm143, %v127, 0
    %v280 = vsel %vm143, %v128, 0
    %v283 = vsel %vm143, %v129, 0
    %v286 = vsel %vm143, %v130, 0
    %v289 = vsel %vm143, %v131, 0
    %v292 = vsel %vm143, %v132, 0
    %v295 = vsel %vm143, %v133, 0
    %v298 = vsel %vm143, %v134, 0
    %v301 = vsel %vm143, %v135, 0
    %v304 = vsel %vm143, %v136, 0
    %v307 = vsel %vm143, %v137, 0
    %v310 = vsel %vm143, %v138, 0
    %v313 = vsel %vm143, %v139, 0
    %v316 = vsel %vm143, %v140, 0
    %v319 = vsel %vm143, %v141, 0
    %v322 = vsel %vm143, %v142, 0
    %324 = vmatprep.subr.mxu0 0.0
    %325 = vmatpush1.msra.mxu0 0.0
    %326 = vmatprep.subr.mxu0 0.0
    %327 = vmatpush1.msra.mxu0 0.0
    %328 = vmatprep.subr.mxu0 0.0
    %329 = vmatpush1.msra.mxu0 0.0
    %330 = vmatprep.subr.mxu0 0.0
    %331 = vmatpush1.msra.mxu0 0.0
    %332 = vmatprep.subr.mxu0 0.0
    %333 = vmatpush1.msra.mxu0 0.0
    %334 = vmatprep.subr.mxu0 0.0
    %335 = vmatpush1.msra.mxu0 0.0
    %336 = vmatprep.subr.mxu0 %v82
    %337 = vmatpush1.msra.mxu0 %v81
    %338 = vmatprep.subr.mxu0 %v80
    %339 = vmatpush1.msra.mxu0 %v79
    %340 = vmatprep.subr.mxu0 %v78
    %341 = vmatpush1.msra.mxu0 %v77
    %342 = vmatprep.subr.mxu0 %v76
    %343 = vmatpush1.msra.mxu0 %v75
    %344 = vmatprep.subr.mxu0 %v74
    %345 = vmatpush1.msra.mxu0 %v73
    %346 = vmatprep.subr.mxu0 %v72
    %347 = vmatpush1.msra.mxu0 %v71
    %348 = vmatprep.subr.mxu0 %v70
    %349 = vmatpush1.msra.mxu0 %v69
    %350 = vmatprep.subr.mxu0 %v68
    %351 = vmatpush1.msra.mxu0 %v67
    %352 = vmatprep.subr.mxu0 %v66
    %353 = vmatpush1.msra.mxu0 %v65
    %354 = vmatprep.subr.mxu0 %v64
    %355 = vmatpush1.msra.mxu0 %v63
    %356 = vmatprep.subr.mxu0 0.0
    %357 = vmatpush2.msra.mxu0 0.0
    %358 = vmatprep.subr.mxu0 0.0
    %359 = vmatpush2.msra.mxu0 0.0
    %360 = vmatprep.subr.mxu0 0.0
    %361 = vmatpush2.msra.mxu0 0.0
    %362 = vmatprep.subr.mxu0 0.0
    %363 = vmatpush2.msra.mxu0 0.0
    %364 = vmatprep.subr.mxu0 0.0
    %365 = vmatpush2.msra.mxu0 0.0
    %366 = vmatprep.subr.mxu0 0.0
    %367 = vmatpush2.msra.mxu0 0.0
    %368 = vmatprep.subr.mxu0 0.0
    %369 = vmatpush2.msra.mxu0 0.0
    %370 = vmatprep.subr.mxu0 0.0
    %371 = vmatpush2.msra.mxu0 0.0
    %372 = vmatprep.subr.mxu0 0.0
    %373 = vmatpush2.msra.mxu0 0.0
    %374 = vmatprep.subr.mxu0 0.0
    %375 = vmatpush2.msra.mxu0 0.0
    %376 = vmatprep.subr.mxu0 0.0
    %377 = vmatpush2.msra.mxu0 0.0
    %378 = vmatprep.subr.mxu0 0.0
    %379 = vmatpush2.msra.mxu0 0.0
    %380 = vmatprep.subr.mxu0 0.0
    %381 = vmatpush2.msra.mxu0 0.0
    %382 = vmatprep.subr.mxu0 0.0
    %383 = vmatpush2.msra.mxu0 0.0
    %384 = vmatprep.subr.mxu0 0.0
    %385 = vmatpush2.msra.mxu0 0.0
    %386 = vmatprep.subr.mxu0 0.0
    %387 = vmatpush2.msra.mxu0 0.0
    %388 = vmatprep.mubr.f32.mxu0 0.0
    %389 = vmatmul.mubr.f32.gmra.mxu0 %v145
    %v390 = vpop.f32.mrf.mxu0
    %v391 = vadd.f32 0.0, %v390
    %v392 = vpop.f32.mrf.mxu0
    %v393 = vadd.f32 0.0, %v392
    %394 = vmatprep.mubr.f32.mxu0 0.0
    %395 = vmatmul.mubr.f32.gmra.mxu0 %v148
    %v396 = vpop.f32.mrf.mxu0
    %v397 = vadd.f32 0.0, %v396
    %v398 = vpop.f32.mrf.mxu0
    %v399 = vadd.f32 0.0, %v398
    %400 = vmatprep.mubr.f32.mxu0 0.0
    %401 = vmatmul.mubr.f32.gmra.mxu0 %v151
    %v402 = vpop.f32.mrf.mxu0
    %v403 = vadd.f32 0.0, %v402
    %v404 = vpop.f32.mrf.mxu0
    %v405 = vadd.f32 0.0, %v404
    %406 = vmatprep.mubr.f32.mxu0 0.0
    %407 = vmatmul.mubr.f32.gmra.mxu0 %v154
    %v408 = vpop.f32.mrf.mxu0
    %v409 = vadd.f32 0.0, %v408
    %v410 = vpop.f32.mrf.mxu0
    %v411 = vadd.f32 0.0, %v410
    %412 = vmatprep.mubr.f32.mxu0 0.0
    %413 = vmatmul.mubr.f32.gmra.mxu0 %v157
    %v414 = vpop.f32.mrf.mxu0
    %v415 = vadd.f32 0.0, %v414
    %v416 = vpop.f32.mrf.mxu0
    %v417 = vadd.f32 0.0, %v416
    %418 = vmatprep.mubr.f32.mxu0 0.0
    %419 = vmatmul.mubr.f32.gmra.mxu0 %v160
    %v420 = vpop.f32.mrf.mxu0
    %v421 = vadd.f32 0.0, %v420
    %v422 = vpop.f32.mrf.mxu0
    %v423 = vadd.f32 0.0, %v422
    %424 = vmatprep.mubr.f32.mxu0 0.0
    %425 = vmatmul.mubr.f32.gmra.mxu0 %v163
    %v426 = vpop.f32.mrf.mxu0
    %v427 = vadd.f32 0.0, %v426
    %v428 = vpop.f32.mrf.mxu0
    %v429 = vadd.f32 0.0, %v428
    %430 = vmatprep.mubr.f32.mxu0 0.0
    %431 = vmatmul.mubr.f32.gmra.mxu0 %v166
    %v432 = vpop.f32.mrf.mxu0
    %v433 = vadd.f32 0.0, %v432
    %v434 = vpop.f32.mrf.mxu0
    %v435 = vadd.f32 0.0, %v434
    %436 = vmatprep.mubr.f32.mxu0 0.0
    %437 = vmatmul.mubr.f32.gmra.mxu0 %v169
    %v438 = vpop.f32.mrf.mxu0
    %v439 = vadd.f32 0.0, %v438
    %v440 = vpop.f32.mrf.mxu0
    %v441 = vadd.f32 0.0, %v440
    %442 = vmatprep.mubr.f32.mxu0 0.0
    %443 = vmatmul.mubr.f32.gmra.mxu0 %v172
    %v444 = vpop.f32.mrf.mxu0
    %v445 = vadd.f32 0.0, %v444
    %v446 = vpop.f32.mrf.mxu0
    %v447 = vadd.f32 0.0, %v446
    %448 = vmatprep.mubr.f32.mxu0 0.0
    %449 = vmatmul.mubr.f32.gmra.mxu0 %v175
    %v450 = vpop.f32.mrf.mxu0
    %v451 = vadd.f32 0.0, %v450
    %v452 = vpop.f32.mrf.mxu0
    %v453 = vadd.f32 0.0, %v452
    %454 = vmatprep.mubr.f32.mxu0 0.0
    %455 = vmatmul.mubr.f32.gmra.mxu0 %v178
    %v456 = vpop.f32.mrf.mxu0
    %v457 = vadd.f32 0.0, %v456
    %v458 = vpop.f32.mrf.mxu0
    %v459 = vadd.f32 0.0, %v458
    %460 = vmatprep.mubr.f32.mxu0 0.0
    %461 = vmatmul.mubr.f32.gmra.mxu0 %v181
    %v462 = vpop.f32.mrf.mxu0
    %v463 = vadd.f32 0.0, %v462
    %v464 = vpop.f32.mrf.mxu0
    %v465 = vadd.f32 0.0, %v464
    %466 = vmatprep.mubr.f32.mxu0 0.0
    %467 = vmatmul.mubr.f32.gmra.mxu0 %v184
    %v468 = vpop.f32.mrf.mxu0
    %v469 = vadd.f32 0.0, %v468
    %v470 = vpop.f32.mrf.mxu0
    %v471 = vadd.f32 0.0, %v470
    %472 = vmatprep.mubr.f32.mxu0 0.0
    %473 = vmatmul.mubr.f32.gmra.mxu0 %v187
    %v474 = vpop.f32.mrf.mxu0
    %v475 = vadd.f32 0.0, %v474
    %v476 = vpop.f32.mrf.mxu0
    %v477 = vadd.f32 0.0, %v476
    %478 = vmatprep.mubr.f32.mxu0 0.0
    %479 = vmatmul.mubr.f32.gmra.mxu0 %v190
    %v480 = vpop.f32.mrf.mxu0
    %v481 = vadd.f32 0.0, %v480
    %v482 = vpop.f32.mrf.mxu0
    %v483 = vadd.f32 0.0, %v482
    %484 = vmatprep.mubr.f32.mxu0 0.0
    %485 = vmatmul.mubr.f32.gmra.mxu0 %v193
    %v486 = vpop.f32.mrf.mxu0
    %v487 = vadd.f32 0.0, %v486
    %v488 = vpop.f32.mrf.mxu0
    %v489 = vadd.f32 0.0, %v488
    %490 = vmatprep.mubr.f32.mxu0 0.0
    %491 = vmatmul.mubr.f32.gmra.mxu0 %v196
    %v492 = vpop.f32.mrf.mxu0
    %v493 = vadd.f32 0.0, %v492
    %v494 = vpop.f32.mrf.mxu0
    %v495 = vadd.f32 0.0, %v494
    %496 = vmatprep.mubr.f32.mxu0 0.0
    %497 = vmatmul.mubr.f32.gmra.mxu0 %v199
    %v498 = vpop.f32.mrf.mxu0
    %v499 = vadd.f32 0.0, %v498
    %v500 = vpop.f32.mrf.mxu0
    %v501 = vadd.f32 0.0, %v500
    %502 = vmatprep.mubr.f32.mxu0 0.0
    %503 = vmatmul.mubr.f32.gmra.mxu0 %v202
    %v504 = vpop.f32.mrf.mxu0
    %v505 = vadd.f32 0.0, %v504
    %v506 = vpop.f32.mrf.mxu0
    %v507 = vadd.f32 0.0, %v506
    %508 = vmatprep.mubr.f32.mxu0 0.0
    %509 = vmatmul.mubr.f32.gmra.mxu0 %v205
    %v510 = vpop.f32.mrf.mxu0
    %v511 = vadd.f32 0.0, %v510
    %v512 = vpop.f32.mrf.mxu0
    %v513 = vadd.f32 0.0, %v512
    %514 = vmatprep.mubr.f32.mxu0 0.0
    %515 = vmatmul.mubr.f32.gmra.mxu0 %v208
    %v516 = vpop.f32.mrf.mxu0
    %v517 = vadd.f32 0.0, %v516
    %v518 = vpop.f32.mrf.mxu0
    %v519 = vadd.f32 0.0, %v518
    %520 = vmatprep.mubr.f32.mxu0 0.0
    %521 = vmatmul.mubr.f32.gmra.mxu0 %v211
    %v522 = vpop.f32.mrf.mxu0
    %v523 = vadd.f32 0.0, %v522
    %v524 = vpop.f32.mrf.mxu0
    %v525 = vadd.f32 0.0, %v524
    %526 = vmatprep.mubr.f32.mxu0 0.0
    %527 = vmatmul.mubr.f32.gmra.mxu0 %v214
    %v528 = vpop.f32.mrf.mxu0
    %v529 = vadd.f32 0.0, %v528
    %v530 = vpop.f32.mrf.mxu0
    %v531 = vadd.f32 0.0, %v530
    %532 = vmatprep.mubr.f32.mxu0 0.0
    %533 = vmatmul.mubr.f32.gmra.mxu0 %v217
    %v534 = vpop.f32.mrf.mxu0
    %v535 = vadd.f32 0.0, %v534
    %v536 = vpop.f32.mrf.mxu0
    %v537 = vadd.f32 0.0, %v536
    %538 = vmatprep.mubr.f32.mxu0 0.0
    %539 = vmatmul.mubr.f32.gmra.mxu0 %v220
    %v540 = vpop.f32.mrf.mxu0
    %v541 = vadd.f32 0.0, %v540
    %v542 = vpop.f32.mrf.mxu0
    %v543 = vadd.f32 0.0, %v542
    %544 = vmatprep.mubr.f32.mxu0 0.0
    %545 = vmatmul.mubr.f32.gmra.mxu0 %v223
    %v546 = vpop.f32.mrf.mxu0
    %v547 = vadd.f32 0.0, %v546
    %v548 = vpop.f32.mrf.mxu0
    %v549 = vadd.f32 0.0, %v548
    %550 = vmatprep.mubr.f32.mxu0 0.0
    %551 = vmatmul.mubr.f32.gmra.mxu0 %v226
    %v552 = vpop.f32.mrf.mxu0
    %v553 = vadd.f32 0.0, %v552
    %v554 = vpop.f32.mrf.mxu0
    %v555 = vadd.f32 0.0, %v554
    %556 = vmatprep.mubr.f32.mxu0 0.0
    %557 = vmatmul.mubr.f32.gmra.mxu0 %v229
    %v558 = vpop.f32.mrf.mxu0
    %v559 = vadd.f32 0.0, %v558
    %v560 = vpop.f32.mrf.mxu0
    %v561 = vadd.f32 0.0, %v560
    %562 = vmatprep.mubr.f32.mxu0 0.0
    %563 = vmatmul.mubr.f32.gmra.mxu0 %v232
    %v564 = vpop.f32.mrf.mxu0
    %v565 = vadd.f32 0.0, %v564
    %v566 = vpop.f32.mrf.mxu0
    %v567 = vadd.f32 0.0, %v566
    %568 = vmatprep.mubr.f32.mxu0 0.0
    %569 = vmatmul.mubr.f32.gmra.mxu0 %v235
    %v570 = vpop.f32.mrf.mxu0
    %v571 = vadd.f32 0.0, %v570
    %v572 = vpop.f32.mrf.mxu0
    %v573 = vadd.f32 0.0, %v572
    %574 = vmatprep.mubr.f32.mxu0 0.0
    %575 = vmatmul.mubr.f32.gmra.mxu0 %v238
    %v576 = vpop.f32.mrf.mxu0
    %v577 = vadd.f32 0.0, %v576
    %v578 = vpop.f32.mrf.mxu0
    %v579 = vadd.f32 0.0, %v578
    %580 = vmatprep.mubr.f32.mxu0 0.0
    %581 = vmatmul.mubr.f32.gmra.mxu0 %v241
    %v582 = vpop.f32.mrf.mxu0
    %v583 = vadd.f32 0.0, %v582
    %v584 = vpop.f32.mrf.mxu0
    %v585 = vadd.f32 0.0, %v584
    %586 = vmatprep.mubr.f32.mxu0 0.0
    %587 = vmatmul.mubr.f32.gmra.mxu0 %v244
    %v588 = vpop.f32.mrf.mxu0
    %v589 = vadd.f32 0.0, %v588
    %v590 = vpop.f32.mrf.mxu0
    %v591 = vadd.f32 0.0, %v590
    %592 = vmatprep.mubr.f32.mxu0 0.0
    %593 = vmatmul.mubr.f32.gmra.mxu0 %v247
    %v594 = vpop.f32.mrf.mxu0
    %v595 = vadd.f32 0.0, %v594
    %v596 = vpop.f32.mrf.mxu0
    %v597 = vadd.f32 0.0, %v596
    %598 = vmatprep.mubr.f32.mxu0 0.0
    %599 = vmatmul.mubr.f32.gmra.mxu0 %v250
    %v600 = vpop.f32.mrf.mxu0
    %v601 = vadd.f32 0.0, %v600
    %v602 = vpop.f32.mrf.mxu0
    %v603 = vadd.f32 0.0, %v602
    %604 = vmatprep.mubr.f32.mxu0 0.0
    %605 = vmatmul.mubr.f32.gmra.mxu0 %v253
    %v606 = vpop.f32.mrf.mxu0
    %v607 = vadd.f32 0.0, %v606
    %v608 = vpop.f32.mrf.mxu0
    %v609 = vadd.f32 0.0, %v608
    %610 = vmatprep.mubr.f32.mxu0 0.0
    %611 = vmatmul.mubr.f32.gmra.mxu0 %v256
    %v612 = vpop.f32.mrf.mxu0
    %v613 = vadd.f32 0.0, %v612
    %v614 = vpop.f32.mrf.mxu0
    %v615 = vadd.f32 0.0, %v614
    %616 = vmatprep.mubr.f32.mxu0 0.0
    %617 = vmatmul.mubr.f32.gmra.mxu0 %v259
    %v618 = vpop.f32.mrf.mxu0
    %v619 = vadd.f32 0.0, %v618
    %v620 = vpop.f32.mrf.mxu0
    %v621 = vadd.f32 0.0, %v620
    %622 = vmatprep.mubr.f32.mxu0 0.0
    %623 = vmatmul.mubr.f32.gmra.mxu0 %v262
    %v624 = vpop.f32.mrf.mxu0
    %v625 = vadd.f32 0.0, %v624
    %v626 = vpop.f32.mrf.mxu0
    %v627 = vadd.f32 0.0, %v626
    %628 = vmatprep.mubr.f32.mxu0 0.0
    %629 = vmatmul.mubr.f32.gmra.mxu0 %v265
    %v630 = vpop.f32.mrf.mxu0
    %v631 = vadd.f32 0.0, %v630
    %v632 = vpop.f32.mrf.mxu0
    %v633 = vadd.f32 0.0, %v632
    %634 = vmatprep.mubr.f32.mxu0 0.0
    %635 = vmatmul.mubr.f32.gmra.mxu0 %v268
    %v636 = vpop.f32.mrf.mxu0
    %v637 = vadd.f32 0.0, %v636
    %v638 = vpop.f32.mrf.mxu0
    %v639 = vadd.f32 0.0, %v638
    %640 = vmatprep.mubr.f32.mxu0 0.0
    %641 = vmatmul.mubr.f32.gmra.mxu0 %v271
    %v642 = vpop.f32.mrf.mxu0
    %v643 = vadd.f32 0.0, %v642
    %v644 = vpop.f32.mrf.mxu0
    %v645 = vadd.f32 0.0, %v644
    %646 = vmatprep.mubr.f32.mxu0 0.0
    %647 = vmatmul.mubr.f32.gmra.mxu0 %v274
    %v648 = vpop.f32.mrf.mxu0
    %v649 = vadd.f32 0.0, %v648
    %v650 = vpop.f32.mrf.mxu0
    %v651 = vadd.f32 0.0, %v650
    %652 = vmatprep.mubr.f32.mxu0 0.0
    %653 = vmatmul.mubr.f32.gmra.mxu0 %v277
    %v654 = vpop.f32.mrf.mxu0
    %v655 = vadd.f32 0.0, %v654
    %v656 = vpop.f32.mrf.mxu0
    %v657 = vadd.f32 0.0, %v656
    %658 = vmatprep.mubr.f32.mxu0 0.0
    %659 = vmatmul.mubr.f32.gmra.mxu0 %v280
    %v660 = vpop.f32.mrf.mxu0
    %v661 = vadd.f32 0.0, %v660
    %v662 = vpop.f32.mrf.mxu0
    %v663 = vadd.f32 0.0, %v662
    %664 = vmatprep.mubr.f32.mxu0 0.0
    %665 = vmatmul.mubr.f32.gmra.mxu0 %v283
    %v666 = vpop.f32.mrf.mxu0
    %v667 = vadd.f32 0.0, %v666
    %v668 = vpop.f32.mrf.mxu0
    %v669 = vadd.f32 0.0, %v668
    %670 = vmatprep.mubr.f32.mxu0 0.0
    %671 = vmatmul.mubr.f32.gmra.mxu0 %v286
    %v672 = vpop.f32.mrf.mxu0
    %v673 = vadd.f32 0.0, %v672
    %v674 = vpop.f32.mrf.mxu0
    %v675 = vadd.f32 0.0, %v674
    %676 = vmatprep.mubr.f32.mxu0 0.0
    %677 = vmatmul.mubr.f32.gmra.mxu0 %v289
    %v678 = vpop.f32.mrf.mxu0
    %v679 = vadd.f32 0.0, %v678
    %v680 = vpop.f32.mrf.mxu0
    %v681 = vadd.f32 0.0, %v680
    %682 = vmatprep.mubr.f32.mxu0 0.0
    %683 = vmatmul.mubr.f32.gmra.mxu0 %v292
    %v684 = vpop.f32.mrf.mxu0
    %v685 = vadd.f32 0.0, %v684
    %v686 = vpop.f32.mrf.mxu0
    %v687 = vadd.f32 0.0, %v686
    %688 = vmatprep.mubr.f32.mxu0 0.0
    %689 = vmatmul.mubr.f32.gmra.mxu0 %v295
    %v690 = vpop.f32.mrf.mxu0
    %v691 = vadd.f32 0.0, %v690
    %v692 = vpop.f32.mrf.mxu0
    %v693 = vadd.f32 0.0, %v692
    %694 = vmatprep.mubr.f32.mxu0 0.0
    %695 = vmatmul.mubr.f32.gmra.mxu0 %v298
    %v696 = vpop.f32.mrf.mxu0
    %v697 = vadd.f32 0.0, %v696
    %v698 = vpop.f32.mrf.mxu0
    %v699 = vadd.f32 0.0, %v698
    %700 = vmatprep.mubr.f32.mxu0 0.0
    %701 = vmatmul.mubr.f32.gmra.mxu0 %v301
    %v702 = vpop.f32.mrf.mxu0
    %v703 = vadd.f32 0.0, %v702
    %v704 = vpop.f32.mrf.mxu0
    %v705 = vadd.f32 0.0, %v704
    %706 = vmatprep.mubr.f32.mxu0 0.0
    %707 = vmatmul.mubr.f32.gmra.mxu0 %v304
    %v708 = vpop.f32.mrf.mxu0
    %v709 = vadd.f32 0.0, %v708
    %v710 = vpop.f32.mrf.mxu0
    %v711 = vadd.f32 0.0, %v710
    %712 = vmatprep.mubr.f32.mxu0 0.0
    %713 = vmatmul.mubr.f32.gmra.mxu0 %v307
    %v714 = vpop.f32.mrf.mxu0
    %v715 = vadd.f32 0.0, %v714
    %v716 = vpop.f32.mrf.mxu0
    %v717 = vadd.f32 0.0, %v716
    %718 = vmatprep.mubr.f32.mxu0 0.0
    %719 = vmatmul.mubr.f32.gmra.mxu0 %v310
    %v720 = vpop.f32.mrf.mxu0
    %v721 = vadd.f32 0.0, %v720
    %v722 = vpop.f32.mrf.mxu0
    %v723 = vadd.f32 0.0, %v722
    %724 = vmatprep.mubr.f32.mxu0 0.0
    %725 = vmatmul.mubr.f32.gmra.mxu0 %v313
    %v726 = vpop.f32.mrf.mxu0
    %v727 = vadd.f32 0.0, %v726
    %v728 = vpop.f32.mrf.mxu0
    %v729 = vadd.f32 0.0, %v728
    %730 = vmatprep.mubr.f32.mxu0 0.0
    %731 = vmatmul.mubr.f32.gmra.mxu0 %v316
    %v732 = vpop.f32.mrf.mxu0
    %v733 = vadd.f32 0.0, %v732
    %v734 = vpop.f32.mrf.mxu0
    %v735 = vadd.f32 0.0, %v734
    %736 = vmatprep.mubr.f32.mxu0 0.0
    %737 = vmatmul.mubr.f32.gmra.mxu0 %v319
    %v738 = vpop.f32.mrf.mxu0
    %v739 = vadd.f32 0.0, %v738
    %v740 = vpop.f32.mrf.mxu0
    %v741 = vadd.f32 0.0, %v740
    %742 = vmatprep.mubr.f32.mxu0 0.0
    %743 = vmatmul.mubr.f32.gmra.mxu0 %v322
    %v744 = vpop.f32.mrf.mxu0
    %v745 = vadd.f32 0.0, %v744
    %v746 = vpop.f32.mrf.mxu0
    %v747 = vadd.f32 0.0, %v746
    %748 = vdwg.mxu0
    %749 = vst [vmem:[#allocation2] sm:$0xff] %v391
    %750 = vst [vmem:[#allocation2 + $0x8] sm:$0xff] %v393
    %751 = vst [vmem:[#allocation2 + $0x10] sm:$0xff] %v397
    %752 = vst [vmem:[#allocation2 + $0x18] sm:$0xff] %v399
    %753 = vst [vmem:[#allocation2 + $0x20] sm:$0xff] %v403
    %754 = vst [vmem:[#allocation2 + $0x28] sm:$0xff] %v405
    %755 = vst [vmem:[#allocation2 + $0x30] sm:$0xff] %v409
    %756 = vst [vmem:[#allocation2 + $0x38] sm:$0xff] %v411
    %757 = vst [vmem:[#allocation2 + $0x40] sm:$0xff] %v415
    %758 = vst [vmem:[#allocation2 + $0x48] sm:$0xff] %v417
    %759 = vst [vmem:[#allocation2 + $0x50] sm:$0xff] %v421
    %760 = vst [vmem:[#allocation2 + $0x58] sm:$0xff] %v423
    %761 = vst [vmem:[#allocation2 + $0x60] sm:$0xff] %v427
    %762 = vst [vmem:[#allocation2 + $0x68] sm:$0xff] %v429
    %763 = vst [vmem:[#allocation2 + $0x70] sm:$0xff] %v433
    %764 = vst [vmem:[#allocation2 + $0x78] sm:$0xff] %v435
    %765 = vst [vmem:[#allocation2 + $0x80] sm:$0xff] %v439
    %766 = vst [vmem:[#allocation2 + $0x88] sm:$0xff] %v441
    %767 = vst [vmem:[#allocation2 + $0x90] sm:$0xff] %v445
    %768 = vst [vmem:[#allocation2 + $0x98] sm:$0xff] %v447
    %769 = vst [vmem:[#allocation2 + $0xa0] sm:$0xff] %v451
    %770 = vst [vmem:[#allocation2 + $0xa8] sm:$0xff] %v453
    %771 = vst [vmem:[#allocation2 + $0xb0] sm:$0xff] %v457
    %772 = vst [vmem:[#allocation2 + $0xb8] sm:$0xff] %v459
    %773 = vst [vmem:[#allocation2 + $0xc0] sm:$0xff] %v463
    %774 = vst [vmem:[#allocation2 + $0xc8] sm:$0xff] %v465
    %775 = vst [vmem:[#allocation2 + $0xd0] sm:$0xff] %v469
    %776 = vst [vmem:[#allocation2 + $0xd8] sm:$0xff] %v471
    %777 = vst [vmem:[#allocation2 + $0xe0] sm:$0xff] %v475
    %778 = vst [vmem:[#allocation2 + $0xe8] sm:$0xff] %v477
    %779 = vst [vmem:[#allocation2 + $0xf0] sm:$0xff] %v481
    %780 = vst [vmem:[#allocation2 + $0xf8] sm:$0xff] %v483
    %781 = vst [vmem:[#allocation2 + $0x100] sm:$0xff] %v487
    %782 = vst [vmem:[#allocation2 + $0x108] sm:$0xff] %v489
    %783 = vst [vmem:[#allocation2 + $0x110] sm:$0xff] %v493
    %784 = vst [vmem:[#allocation2 + $0x118] sm:$0xff] %v495
    %785 = vst [vmem:[#allocation2 + $0x120] sm:$0xff] %v499
    %786 = vst [vmem:[#allocation2 + $0x128] sm:$0xff] %v501
    %787 = vst [vmem:[#allocation2 + $0x130] sm:$0xff] %v505
    %788 = vst [vmem:[#allocation2 + $0x138] sm:$0xff] %v507
    %789 = vst [vmem:[#allocation2 + $0x140] sm:$0xff] %v511
    %790 = vst [vmem:[#allocation2 + $0x148] sm:$0xff] %v513
    %791 = vst [vmem:[#allocation2 + $0x150] sm:$0xff] %v517
    %792 = vst [vmem:[#allocation2 + $0x158] sm:$0xff] %v519
    %793 = vst [vmem:[#allocation2 + $0x160] sm:$0xff] %v523
    %794 = vst [vmem:[#allocation2 + $0x168] sm:$0xff] %v525
    %795 = vst [vmem:[#allocation2 + $0x170] sm:$0xff] %v529
    %796 = vst [vmem:[#allocation2 + $0x178] sm:$0xff] %v531
    %797 = vst [vmem:[#allocation2 + $0x180] sm:$0xff] %v535
    %798 = vst [vmem:[#allocation2 + $0x188] sm:$0xff] %v537
    %799 = vst [vmem:[#allocation2 + $0x190] sm:$0xff] %v541
    %800 = vst [vmem:[#allocation2 + $0x198] sm:$0xff] %v543
    %801 = vst [vmem:[#allocation2 + $0x1a0] sm:$0xff] %v547
    %802 = vst [vmem:[#allocation2 + $0x1a8] sm:$0xff] %v549
    %803 = vst [vmem:[#allocation2 + $0x1b0] sm:$0xff] %v553
    %804 = vst [vmem:[#allocation2 + $0x1b8] sm:$0xff] %v555
    %805 = vst [vmem:[#allocation2 + $0x1c0] sm:$0xff] %v559
    %806 = vst [vmem:[#allocation2 + $0x1c8] sm:$0xff] %v561
    %807 = vst [vmem:[#allocation2 + $0x1d0] sm:$0xff] %v565
    %808 = vst [vmem:[#allocation2 + $0x1d8] sm:$0xff] %v567
    %809 = vst [vmem:[#allocation2 + $0x1e0] sm:$0xff] %v571
    %810 = vst [vmem:[#allocation2 + $0x1e8] sm:$0xff] %v573
    %811 = vst [vmem:[#allocation2 + $0x1f0] sm:$0xff] %v577
    %812 = vst [vmem:[#allocation2 + $0x1f8] sm:$0xff] %v579
    %813 = vst [vmem:[#allocation2 + $0x200] sm:$0xff] %v583
    %814 = vst [vmem:[#allocation2 + $0x208] sm:$0xff] %v585
    %815 = vst [vmem:[#allocation2 + $0x210] sm:$0xff] %v589
    %816 = vst [vmem:[#allocation2 + $0x218] sm:$0xff] %v591
    %817 = vst [vmem:[#allocation2 + $0x220] sm:$0xff] %v595
    %818 = vst [vmem:[#allocation2 + $0x228] sm:$0xff] %v597
    %819 = vst [vmem:[#allocation2 + $0x230] sm:$0xff] %v601
    %820 = vst [vmem:[#allocation2 + $0x238] sm:$0xff] %v603
    %821 = vst [vmem:[#allocation2 + $0x240] sm:$0xff] %v607
    %822 = vst [vmem:[#allocation2 + $0x248] sm:$0xff] %v609
    %823 = vst [vmem:[#allocation2 + $0x250] sm:$0xff] %v613
    %824 = vst [vmem:[#allocation2 + $0x258] sm:$0xff] %v615
    %825 = vst [vmem:[#allocation2 + $0x260] sm:$0xff] %v619
    %826 = vst [vmem:[#allocation2 + $0x268] sm:$0xff] %v621
    %827 = vst [vmem:[#allocation2 + $0x270] sm:$0xff] %v625
    %828 = vst [vmem:[#allocation2 + $0x278] sm:$0xff] %v627
    %829 = vst [vmem:[#allocation2 + $0x280] sm:$0xff] %v631
    %830 = vst [vmem:[#allocation2 + $0x288] sm:$0xff] %v633
    %831 = vst [vmem:[#allocation2 + $0x290] sm:$0xff] %v637
    %832 = vst [vmem:[#allocation2 + $0x298] sm:$0xff] %v639
    %833 = vst [vmem:[#allocation2 + $0x2a0] sm:$0xff] %v643
    %834 = vst [vmem:[#allocation2 + $0x2a8] sm:$0xff] %v645
    %835 = vst [vmem:[#allocation2 + $0x2b0] sm:$0xff] %v649
    %836 = vst [vmem:[#allocation2 + $0x2b8] sm:$0xff] %v651
    %837 = vst [vmem:[#allocation2 + $0x2c0] sm:$0xff] %v655
    %838 = vst [vmem:[#allocation2 + $0x2c8] sm:$0xff] %v657
    %839 = vst [vmem:[#allocation2 + $0x2d0] sm:$0xff] %v661
    %840 = vst [vmem:[#allocation2 + $0x2d8] sm:$0xff] %v663
    %841 = vst [vmem:[#allocation2 + $0x2e0] sm:$0xff] %v667
    %842 = vst [vmem:[#allocation2 + $0x2e8] sm:$0xff] %v669
    %843 = vst [vmem:[#allocation2 + $0x2f0] sm:$0xff] %v673
    %844 = vst [vmem:[#allocation2 + $0x2f8] sm:$0xff] %v675
    %845 = vst [vmem:[#allocation2 + $0x300] sm:$0xff] %v679
    %846 = vst [vmem:[#allocation2 + $0x308] sm:$0xff] %v681
    %847 = vst [vmem:[#allocation2 + $0x310] sm:$0xff] %v685
    %848 = vst [vmem:[#allocation2 + $0x318] sm:$0xff] %v687
    %849 = vst [vmem:[#allocation2 + $0x320] sm:$0xff] %v691
    %850 = vst [vmem:[#allocation2 + $0x328] sm:$0xff] %v693
    %851 = vst [vmem:[#allocation2 + $0x330] sm:$0xff] %v697
    %852 = vst [vmem:[#allocation2 + $0x338] sm:$0xff] %v699
    %853 = vst [vmem:[#allocation2 + $0x340] sm:$0xff] %v703
    %854 = vst [vmem:[#allocation2 + $0x348] sm:$0xff] %v705
    %855 = vst [vmem:[#allocation2 + $0x350] sm:$0xff] %v709
    %856 = vst [vmem:[#allocation2 + $0x358] sm:$0xff] %v711
    %857 = vst [vmem:[#allocation2 + $0x360] sm:$0xff] %v715
    %858 = vst [vmem:[#allocation2 + $0x368] sm:$0xff] %v717
    %859 = vst [vmem:[#allocation2 + $0x370] sm:$0xff] %v721
    %860 = vst [vmem:[#allocation2 + $0x378] sm:$0xff] %v723
    %861 = vst [vmem:[#allocation2 + $0x380] sm:$0xff] %v727
    %862 = vst [vmem:[#allocation2 + $0x388] sm:$0xff] %v729
    %863 = vst [vmem:[#allocation2 + $0x390] sm:$0xff] %v733
    %864 = vst [vmem:[#allocation2 + $0x398] sm:$0xff] %v735
    %865 = vst [vmem:[#allocation2 + $0x3a0] sm:$0xff] %v739
    %866 = vst [vmem:[#allocation2 + $0x3a8] sm:$0xff] %v741
    %867 = vst [vmem:[#allocation2 + $0x3b0] sm:$0xff] %v745
    %868 = vst [vmem:[#allocation2 + $0x3b8] sm:$0xff] %v747
    %v869 = vld [vmem:[#allocation2] sm:$0xff]
    %v870 = vld [vmem:[#allocation2 + $0x8] sm:$0xff]
    %v871 = vld [vmem:[#allocation2 + $0x10] sm:$0xff]
    %v872 = vld [vmem:[#allocation2 + $0x18] sm:$0xff]
    %v873 = vld [vmem:[#allocation2 + $0x20] sm:$0xff]
    %v874 = vld [vmem:[#allocation2 + $0x28] sm:$0xff]
    %v875 = vld [vmem:[#allocation2 + $0x30] sm:$0xff]
    %v876 = vld [vmem:[#allocation2 + $0x38] sm:$0xff]
    %v877 = vld [vmem:[#allocation2 + $0x40] sm:$0xff]
    %v878 = vld [vmem:[#allocation2 + $0x48] sm:$0xff]
    %v879 = vld [vmem:[#allocation2 + $0x50] sm:$0xff]
    %v880 = vld [vmem:[#allocation2 + $0x58] sm:$0xff]
    %v881 = vld [vmem:[#allocation2 + $0x60] sm:$0xff]
    %v882 = vld [vmem:[#allocation2 + $0x68] sm:$0xff]
    %v883 = vld [vmem:[#allocation2 + $0x70] sm:$0xff]
    %v884 = vld [vmem:[#allocation2 + $0x78] sm:$0xff]
    %v885 = vld [vmem:[#allocation2 + $0x80] sm:$0xff]
    %v886 = vld [vmem:[#allocation2 + $0x88] sm:$0xff]
    %v887 = vld [vmem:[#allocation2 + $0x90] sm:$0xff]
    %v888 = vld [vmem:[#allocation2 + $0x98] sm:$0xff]
    %v889 = vld [vmem:[#allocation2 + $0xa0] sm:$0xff]
    %v890 = vld [vmem:[#allocation2 + $0xa8] sm:$0xff]
    %v891 = vld [vmem:[#allocation2 + $0xb0] sm:$0xff]
    %v892 = vld [vmem:[#allocation2 + $0xb8] sm:$0xff]
    %v893 = vld [vmem:[#allocation2 + $0xc0] sm:$0xff]
    %v894 = vld [vmem:[#allocation2 + $0xc8] sm:$0xff]
    %v895 = vld [vmem:[#allocation2 + $0xd0] sm:$0xff]
    %v896 = vld [vmem:[#allocation2 + $0xd8] sm:$0xff]
    %v897 = vld [vmem:[#allocation2 + $0xe0] sm:$0xff]
    %v898 = vld [vmem:[#allocation2 + $0xe8] sm:$0xff]
    %v899 = vld [vmem:[#allocation2 + $0xf0] sm:$0xff]
    %v900 = vld [vmem:[#allocation2 + $0xf8] sm:$0xff]
    %v901 = vld [vmem:[#allocation2 + $0x100] sm:$0xff]
    %v902 = vld [vmem:[#allocation2 + $0x108] sm:$0xff]
    %v903 = vld [vmem:[#allocation2 + $0x110] sm:$0xff]
    %v904 = vld [vmem:[#allocation2 + $0x118] sm:$0xff]
    %v905 = vld [vmem:[#allocation2 + $0x120] sm:$0xff]
    %v906 = vld [vmem:[#allocation2 + $0x128] sm:$0xff]
    %v907 = vld [vmem:[#allocation2 + $0x130] sm:$0xff]
    %v908 = vld [vmem:[#allocation2 + $0x138] sm:$0xff]
    %v909 = vld [vmem:[#allocation2 + $0x140] sm:$0xff]
    %v910 = vld [vmem:[#allocation2 + $0x148] sm:$0xff]
    %v911 = vld [vmem:[#allocation2 + $0x150] sm:$0xff]
    %v912 = vld [vmem:[#allocation2 + $0x158] sm:$0xff]
    %v913 = vld [vmem:[#allocation2 + $0x160] sm:$0xff]
    %v914 = vld [vmem:[#allocation2 + $0x168] sm:$0xff]
    %v915 = vld [vmem:[#allocation2 + $0x170] sm:$0xff]
    %v916 = vld [vmem:[#allocation2 + $0x178] sm:$0xff]
    %v917 = vld [vmem:[#allocation2 + $0x180] sm:$0xff]
    %v918 = vld [vmem:[#allocation2 + $0x188] sm:$0xff]
    %v919 = vld [vmem:[#allocation2 + $0x190] sm:$0xff]
    %v920 = vld [vmem:[#allocation2 + $0x198] sm:$0xff]
    %v921 = vld [vmem:[#allocation2 + $0x1a0] sm:$0xff]
    %v922 = vld [vmem:[#allocation2 + $0x1a8] sm:$0xff]
    %v923 = vld [vmem:[#allocation2 + $0x1b0] sm:$0xff]
    %v924 = vld [vmem:[#allocation2 + $0x1b8] sm:$0xff]
    %v925 = vld [vmem:[#allocation2 + $0x1c0] sm:$0xff]
    %v926 = vld [vmem:[#allocation2 + $0x1c8] sm:$0xff]
    %v927 = vld [vmem:[#allocation2 + $0x1d0] sm:$0xff]
    %v928 = vld [vmem:[#allocation2 + $0x1d8] sm:$0xff]
    %v929 = vld [vmem:[#allocation2 + $0x1e0] sm:$0xff]
    %v930 = vld [vmem:[#allocation2 + $0x1e8] sm:$0xff]
    %v931 = vld [vmem:[#allocation2 + $0x1f0] sm:$0xff]
    %v932 = vld [vmem:[#allocation2 + $0x1f8] sm:$0xff]
    %v933 = vld [vmem:[#allocation2 + $0x200] sm:$0xff]
    %v934 = vld [vmem:[#allocation2 + $0x208] sm:$0xff]
    %v935 = vld [vmem:[#allocation2 + $0x210] sm:$0xff]
    %v936 = vld [vmem:[#allocation2 + $0x218] sm:$0xff]
    %v937 = vld [vmem:[#allocation2 + $0x220] sm:$0xff]
    %v938 = vld [vmem:[#allocation2 + $0x228] sm:$0xff]
    %v939 = vld [vmem:[#allocation2 + $0x230] sm:$0xff]
    %v940 = vld [vmem:[#allocation2 + $0x238] sm:$0xff]
    %v941 = vld [vmem:[#allocation2 + $0x240] sm:$0xff]
    %v942 = vld [vmem:[#allocation2 + $0x248] sm:$0xff]
    %v943 = vld [vmem:[#allocation2 + $0x250] sm:$0xff]
    %v944 = vld [vmem:[#allocation2 + $0x258] sm:$0xff]
    %v945 = vld [vmem:[#allocation2 + $0x260] sm:$0xff]
    %v946 = vld [vmem:[#allocation2 + $0x268] sm:$0xff]
    %v947 = vld [vmem:[#allocation2 + $0x270] sm:$0xff]
    %v948 = vld [vmem:[#allocation2 + $0x278] sm:$0xff]
    %v949 = vld [vmem:[#allocation2 + $0x280] sm:$0xff]
    %v950 = vld [vmem:[#allocation2 + $0x288] sm:$0xff]
    %v951 = vld [vmem:[#allocation2 + $0x290] sm:$0xff]
    %v952 = vld [vmem:[#allocation2 + $0x298] sm:$0xff]
    %v953 = vld [vmem:[#allocation2 + $0x2a0] sm:$0xff]
    %v954 = vld [vmem:[#allocation2 + $0x2a8] sm:$0xff]
    %v955 = vld [vmem:[#allocation2 + $0x2b0] sm:$0xff]
    %v956 = vld [vmem:[#allocation2 + $0x2b8] sm:$0xff]
    %v957 = vld [vmem:[#allocation2 + $0x2c0] sm:$0xff]
    %v958 = vld [vmem:[#allocation2 + $0x2c8] sm:$0xff]
    %v959 = vld [vmem:[#allocation2 + $0x2d0] sm:$0xff]
    %v960 = vld [vmem:[#allocation2 + $0x2d8] sm:$0xff]
    %v961 = vld [vmem:[#allocation2 + $0x2e0] sm:$0xff]
    %v962 = vld [vmem:[#allocation2 + $0x2e8] sm:$0xff]
    %v963 = vld [vmem:[#allocation2 + $0x2f0] sm:$0xff]
    %v964 = vld [vmem:[#allocation2 + $0x2f8] sm:$0xff]
    %v965 = vld [vmem:[#allocation2 + $0x300] sm:$0xff]
    %v966 = vld [vmem:[#allocation2 + $0x308] sm:$0xff]
    %v967 = vld [vmem:[#allocation2 + $0x310] sm:$0xff]
    %v968 = vld [vmem:[#allocation2 + $0x318] sm:$0xff]
    %v969 = vld [vmem:[#allocation2 + $0x320] sm:$0xff]
    %v970 = vld [vmem:[#allocation2 + $0x328] sm:$0xff]
    %v971 = vld [vmem:[#allocation2 + $0x330] sm:$0xff]
    %v972 = vld [vmem:[#allocation2 + $0x338] sm:$0xff]
    %v973 = vld [vmem:[#allocation2 + $0x340] sm:$0xff]
    %v974 = vld [vmem:[#allocation2 + $0x348] sm:$0xff]
    %v975 = vld [vmem:[#allocation2 + $0x350] sm:$0xff]
    %v976 = vld [vmem:[#allocation2 + $0x358] sm:$0xff]
    %v977 = vld [vmem:[#allocation2 + $0x360] sm:$0xff]
    %v978 = vld [vmem:[#allocation2 + $0x368] sm:$0xff]
    %v979 = vld [vmem:[#allocation2 + $0x370] sm:$0xff]
    %v980 = vld [vmem:[#allocation2 + $0x378] sm:$0xff]
    %v981 = vld [vmem:[#allocation2 + $0x380] sm:$0xff]
    %v982 = vld [vmem:[#allocation2 + $0x388] sm:$0xff]
    %v983 = vld [vmem:[#allocation2 + $0x390] sm:$0xff]
    %v984 = vld [vmem:[#allocation2 + $0x398] sm:$0xff]
    %v985 = vld [vmem:[#allocation2 + $0x3a0] sm:$0xff]
    %v986 = vld [vmem:[#allocation2 + $0x3a8] sm:$0xff]
    %v987 = vld [vmem:[#allocation2 + $0x3b0] sm:$0xff]
    %v988 = vld [vmem:[#allocation2 + $0x3b8] sm:$0xff]
    %v989 = vadd.f32 %v869, %v870
    %990 = vadd.xlane.f32.xlu0 %v989
    %v991 = vpop.xlane.xlu0 %990
    %v992 = vadd.f32 %v871, %v872
    %993 = vadd.xlane.f32.xlu0 %v992
    %v994 = vpop.xlane.xlu0 %993
    %v995 = vadd.f32 %v873, %v874
    %996 = vadd.xlane.f32.xlu0 %v995
    %v997 = vpop.xlane.xlu0 %996
    %v998 = vadd.f32 %v875, %v876
    %999 = vadd.xlane.f32.xlu0 %v998
    %v1000 = vpop.xlane.xlu0 %999
    %v1001 = vadd.f32 %v877, %v878
    %1002 = vadd.xlane.f32.xlu0 %v1001
    %v1003 = vpop.xlane.xlu0 %1002
    %v1004 = vadd.f32 %v879, %v880
    %1005 = vadd.xlane.f32.xlu0 %v1004
    %v1006 = vpop.xlane.xlu0 %1005
    %v1007 = vadd.f32 %v881, %v882
    %1008 = vadd.xlane.f32.xlu0 %v1007
    %v1009 = vpop.xlane.xlu0 %1008
    %v1010 = vadd.f32 %v883, %v884
    %1011 = vadd.xlane.f32.xlu0 %v1010
    %v1012 = vpop.xlane.xlu0 %1011
    %v1013 = vadd.f32 %v885, %v886
    %1014 = vadd.xlane.f32.xlu0 %v1013
    %v1015 = vpop.xlane.xlu0 %1014
    %v1016 = vadd.f32 %v887, %v888
    %1017 = vadd.xlane.f32.xlu0 %v1016
    %v1018 = vpop.xlane.xlu0 %1017
    %v1019 = vadd.f32 %v889, %v890
    %1020 = vadd.xlane.f32.xlu0 %v1019
    %v1021 = vpop.xlane.xlu0 %1020
    %v1022 = vadd.f32 %v891, %v892
    %1023 = vadd.xlane.f32.xlu0 %v1022
    %v1024 = vpop.xlane.xlu0 %1023
    %v1025 = vadd.f32 %v893, %v894
    %1026 = vadd.xlane.f32.xlu0 %v1025
    %v1027 = vpop.xlane.xlu0 %1026
    %v1028 = vadd.f32 %v895, %v896
    %1029 = vadd.xlane.f32.xlu0 %v1028
    %v1030 = vpop.xlane.xlu0 %1029
    %v1031 = vadd.f32 %v897, %v898
    %1032 = vadd.xlane.f32.xlu0 %v1031
    %v1033 = vpop.xlane.xlu0 %1032
    %v1034 = vadd.f32 %v899, %v900
    %1035 = vadd.xlane.f32.xlu0 %v1034
    %v1036 = vpop.xlane.xlu0 %1035
    %v1037 = vadd.f32 %v901, %v902
    %1038 = vadd.xlane.f32.xlu0 %v1037
    %v1039 = vpop.xlane.xlu0 %1038
    %v1040 = vadd.f32 %v903, %v904
    %1041 = vadd.xlane.f32.xlu0 %v1040
    %v1042 = vpop.xlane.xlu0 %1041
    %v1043 = vadd.f32 %v905, %v906
    %1044 = vadd.xlane.f32.xlu0 %v1043
    %v1045 = vpop.xlane.xlu0 %1044
    %v1046 = vadd.f32 %v907, %v908
    %1047 = vadd.xlane.f32.xlu0 %v1046
    %v1048 = vpop.xlane.xlu0 %1047
    %v1049 = vadd.f32 %v909, %v910
    %1050 = vadd.xlane.f32.xlu0 %v1049
    %v1051 = vpop.xlane.xlu0 %1050
    %v1052 = vadd.f32 %v911, %v912
    %1053 = vadd.xlane.f32.xlu0 %v1052
    %v1054 = vpop.xlane.xlu0 %1053
    %v1055 = vadd.f32 %v913, %v914
    %1056 = vadd.xlane.f32.xlu0 %v1055
    %v1057 = vpop.xlane.xlu0 %1056
    %v1058 = vadd.f32 %v915, %v916
    %1059 = vadd.xlane.f32.xlu0 %v1058
    %v1060 = vpop.xlane.xlu0 %1059
    %v1061 = vadd.f32 %v917, %v918
    %1062 = vadd.xlane.f32.xlu0 %v1061
    %v1063 = vpop.xlane.xlu0 %1062
    %v1064 = vadd.f32 %v919, %v920
    %1065 = vadd.xlane.f32.xlu0 %v1064
    %v1066 = vpop.xlane.xlu0 %1065
    %v1067 = vadd.f32 %v921, %v922
    %1068 = vadd.xlane.f32.xlu0 %v1067
    %v1069 = vpop.xlane.xlu0 %1068
    %v1070 = vadd.f32 %v923, %v924
    %1071 = vadd.xlane.f32.xlu0 %v1070
    %v1072 = vpop.xlane.xlu0 %1071
    %v1073 = vadd.f32 %v925, %v926
    %1074 = vadd.xlane.f32.xlu0 %v1073
    %v1075 = vpop.xlane.xlu0 %1074
    %v1076 = vadd.f32 %v927, %v928
    %1077 = vadd.xlane.f32.xlu0 %v1076
    %v1078 = vpop.xlane.xlu0 %1077
    %v1079 = vadd.f32 %v929, %v930
    %1080 = vadd.xlane.f32.xlu0 %v1079
    %v1081 = vpop.xlane.xlu0 %1080
    %v1082 = vadd.f32 %v931, %v932
    %1083 = vadd.xlane.f32.xlu0 %v1082
    %v1084 = vpop.xlane.xlu0 %1083
    %v1085 = vadd.f32 %v933, %v934
    %1086 = vadd.xlane.f32.xlu0 %v1085
    %v1087 = vpop.xlane.xlu0 %1086
    %v1088 = vadd.f32 %v935, %v936
    %1089 = vadd.xlane.f32.xlu0 %v1088
    %v1090 = vpop.xlane.xlu0 %1089
    %v1091 = vadd.f32 %v937, %v938
    %1092 = vadd.xlane.f32.xlu0 %v1091
    %v1093 = vpop.xlane.xlu0 %1092
    %v1094 = vadd.f32 %v939, %v940
    %1095 = vadd.xlane.f32.xlu0 %v1094
    %v1096 = vpop.xlane.xlu0 %1095
    %v1097 = vadd.f32 %v941, %v942
    %1098 = vadd.xlane.f32.xlu0 %v1097
    %v1099 = vpop.xlane.xlu0 %1098
    %v1100 = vadd.f32 %v943, %v944
    %1101 = vadd.xlane.f32.xlu0 %v1100
    %v1102 = vpop.xlane.xlu0 %1101
    %v1103 = vadd.f32 %v945, %v946
    %1104 = vadd.xlane.f32.xlu0 %v1103
    %v1105 = vpop.xlane.xlu0 %1104
    %v1106 = vadd.f32 %v947, %v948
    %1107 = vadd.xlane.f32.xlu0 %v1106
    %v1108 = vpop.xlane.xlu0 %1107
    %v1109 = vadd.f32 %v949, %v950
    %1110 = vadd.xlane.f32.xlu0 %v1109
    %v1111 = vpop.xlane.xlu0 %1110
    %v1112 = vadd.f32 %v951, %v952
    %1113 = vadd.xlane.f32.xlu0 %v1112
    %v1114 = vpop.xlane.xlu0 %1113
    %v1115 = vadd.f32 %v953, %v954
    %1116 = vadd.xlane.f32.xlu0 %v1115
    %v1117 = vpop.xlane.xlu0 %1116
    %v1118 = vadd.f32 %v955, %v956
    %1119 = vadd.xlane.f32.xlu0 %v1118
    %v1120 = vpop.xlane.xlu0 %1119
    %v1121 = vadd.f32 %v957, %v958
    %1122 = vadd.xlane.f32.xlu0 %v1121
    %v1123 = vpop.xlane.xlu0 %1122
    %v1124 = vadd.f32 %v959, %v960
    %1125 = vadd.xlane.f32.xlu0 %v1124
    %v1126 = vpop.xlane.xlu0 %1125
    %v1127 = vadd.f32 %v961, %v962
    %1128 = vadd.xlane.f32.xlu0 %v1127
    %v1129 = vpop.xlane.xlu0 %1128
    %v1130 = vadd.f32 %v963, %v964
    %1131 = vadd.xlane.f32.xlu0 %v1130
    %v1132 = vpop.xlane.xlu0 %1131
    %v1133 = vadd.f32 %v965, %v966
    %1134 = vadd.xlane.f32.xlu0 %v1133
    %v1135 = vpop.xlane.xlu0 %1134
    %v1136 = vadd.f32 %v967, %v968
    %1137 = vadd.xlane.f32.xlu0 %v1136
    %v1138 = vpop.xlane.xlu0 %1137
    %v1139 = vadd.f32 %v969, %v970
    %1140 = vadd.xlane.f32.xlu0 %v1139
    %v1141 = vpop.xlane.xlu0 %1140
    %v1142 = vadd.f32 %v971, %v972
    %1143 = vadd.xlane.f32.xlu0 %v1142
    %v1144 = vpop.xlane.xlu0 %1143
    %v1145 = vadd.f32 %v973, %v974
    %1146 = vadd.xlane.f32.xlu0 %v1145
    %v1147 = vpop.xlane.xlu0 %1146
    %v1148 = vadd.f32 %v975, %v976
    %1149 = vadd.xlane.f32.xlu0 %v1148
    %v1150 = vpop.xlane.xlu0 %1149
    %v1151 = vadd.f32 %v977, %v978
    %1152 = vadd.xlane.f32.xlu0 %v1151
    %v1153 = vpop.xlane.xlu0 %1152
    %v1154 = vadd.f32 %v979, %v980
    %1155 = vadd.xlane.f32.xlu0 %v1154
    %v1156 = vpop.xlane.xlu0 %1155
    %v1157 = vadd.f32 %v981, %v982
    %1158 = vadd.xlane.f32.xlu0 %v1157
    %v1159 = vpop.xlane.xlu0 %1158
    %v1160 = vadd.f32 %v983, %v984
    %1161 = vadd.xlane.f32.xlu0 %v1160
    %v1162 = vpop.xlane.xlu0 %1161
    %v1163 = vadd.f32 %v985, %v986
    %1164 = vadd.xlane.f32.xlu0 %v1163
    %v1165 = vpop.xlane.xlu0 %1164
    %v1166 = vadd.f32 %v987, %v988
    %1167 = vadd.xlane.f32.xlu0 %v1166
    %v1168 = vpop.xlane.xlu0 %1167
    %v1169 = vmul.f32 %v991, 0.0051020407
    %v1170 = vmul.f32 %v994, 0.0051020407
    %v1171 = vmul.f32 %v997, 0.0051020407
    %v1172 = vmul.f32 %v1000, 0.0051020407
    %v1173 = vmul.f32 %v1003, 0.0051020407
    %v1174 = vmul.f32 %v1006, 0.0051020407
    %v1175 = vmul.f32 %v1009, 0.0051020407
    %v1176 = vmul.f32 %v1012, 0.0051020407
    %v1177 = vmul.f32 %v1015, 0.0051020407
    %v1178 = vmul.f32 %v1018, 0.0051020407
    %v1179 = vmul.f32 %v1021, 0.0051020407
    %v1180 = vmul.f32 %v1024, 0.0051020407
    %v1181 = vmul.f32 %v1027, 0.0051020407
    %v1182 = vmul.f32 %v1030, 0.0051020407
    %v1183 = vmul.f32 %v1033, 0.0051020407
    %v1184 = vmul.f32 %v1036, 0.0051020407
    %v1185 = vmul.f32 %v1039, 0.0051020407
    %v1186 = vmul.f32 %v1042, 0.0051020407
    %v1187 = vmul.f32 %v1045, 0.0051020407
    %v1188 = vmul.f32 %v1048, 0.0051020407
    %v1189 = vmul.f32 %v1051, 0.0051020407
    %v1190 = vmul.f32 %v1054, 0.0051020407
    %v1191 = vmul.f32 %v1057, 0.0051020407
    %v1192 = vmul.f32 %v1060, 0.0051020407
    %v1193 = vmul.f32 %v1063, 0.0051020407
    %v1194 = vmul.f32 %v1066, 0.0051020407
    %v1195 = vmul.f32 %v1069, 0.0051020407
    %v1196 = vmul.f32 %v1072, 0.0051020407
    %v1197 = vmul.f32 %v1075, 0.0051020407
    %v1198 = vmul.f32 %v1078, 0.0051020407
    %v1199 = vmul.f32 %v1081, 0.0051020407
    %v1200 = vmul.f32 %v1084, 0.0051020407
    %v1201 = vmul.f32 %v1087, 0.0051020407
    %v1202 = vmul.f32 %v1090, 0.0051020407
    %v1203 = vmul.f32 %v1093, 0.0051020407
    %v1204 = vmul.f32 %v1096, 0.0051020407
    %v1205 = vmul.f32 %v1099, 0.0051020407
    %v1206 = vmul.f32 %v1102, 0.0051020407
    %v1207 = vmul.f32 %v1105, 0.0051020407
    %v1208 = vmul.f32 %v1108, 0.0051020407
    %v1209 = vmul.f32 %v1111, 0.0051020407
    %v1210 = vmul.f32 %v1114, 0.0051020407
    %v1211 = vmul.f32 %v1117, 0.0051020407
    %v1212 = vmul.f32 %v1120, 0.0051020407
    %v1213 = vmul.f32 %v1123, 0.0051020407
    %v1214 = vmul.f32 %v1126, 0.0051020407
    %v1215 = vmul.f32 %v1129, 0.0051020407
    %v1216 = vmul.f32 %v1132, 0.0051020407
    %v1217 = vmul.f32 %v1135, 0.0051020407
    %v1218 = vmul.f32 %v1138, 0.0051020407
    %v1219 = vmul.f32 %v1141, 0.0051020407
    %v1220 = vmul.f32 %v1144, 0.0051020407
    %v1221 = vmul.f32 %v1147, 0.0051020407
    %v1222 = vmul.f32 %v1150, 0.0051020407
    %v1223 = vmul.f32 %v1153, 0.0051020407
    %v1224 = vmul.f32 %v1156, 0.0051020407
    %v1225 = vmul.f32 %v1159, 0.0051020407
    %v1226 = vmul.f32 %v1162, 0.0051020407
    %v1227 = vmul.f32 %v1165, 0.0051020407
    %v1228 = vmul.f32 %v1168, 0.0051020407
    %v1229 = vlaneseq
    %v1230 = vand.u32 %v1229, 127
    %v1231 = vadd.s32 %v1230, 128
    %vm1232 = vcmp.lt.s32.totalorder %v1230, 196
    %vm1233 = vcmp.lt.s32.totalorder %v1231, 196
    %v1234 = vsub.f32 %v869, %v1169
    %v1235 = vsub.f32 %v870, %v1169
    %v1236 = vsub.f32 %v871, %v1170
    %v1237 = vsub.f32 %v872, %v1170
    %v1238 = vsub.f32 %v873, %v1171
    %v1239 = vsub.f32 %v874, %v1171
    %v1240 = vsub.f32 %v875, %v1172
    %v1241 = vsub.f32 %v876, %v1172
    %v1242 = vsub.f32 %v877, %v1173
    %v1243 = vsub.f32 %v878, %v1173
    %v1244 = vsub.f32 %v879, %v1174
    %v1245 = vsub.f32 %v880, %v1174
    %v1246 = vsub.f32 %v881, %v1175
    %v1247 = vsub.f32 %v882, %v1175
    %v1248 = vsub.f32 %v883, %v1176
    %v1249 = vsub.f32 %v884, %v1176
    %v1250 = vsub.f32 %v885, %v1177
    %v1251 = vsub.f32 %v886, %v1177
    %v1252 = vsub.f32 %v887, %v1178
    %v1253 = vsub.f32 %v888, %v1178
    %v1254 = vsub.f32 %v889, %v1179
    %v1255 = vsub.f32 %v890, %v1179
    %v1256 = vsub.f32 %v891, %v1180
    %v1257 = vsub.f32 %v892, %v1180
    %v1258 = vsub.f32 %v893, %v1181
    %v1259 = vsub.f32 %v894, %v1181
    %v1260 = vsub.f32 %v895, %v1182
    %v1261 = vsub.f32 %v896, %v1182
    %v1262 = vsub.f32 %v897, %v1183
    %v1263 = vsub.f32 %v898, %v1183
    %v1264 = vsub.f32 %v899, %v1184
    %v1265 = vsub.f32 %v900, %v1184
    %v1266 = vsub.f32 %v901, %v1185
    %v1267 = vsub.f32 %v902, %v1185
    %v1268 = vsub.f32 %v903, %v1186
    %v1269 = vsub.f32 %v904, %v1186
    %v1270 = vsub.f32 %v905, %v1187
    %v1271 = vsub.f32 %v906, %v1187
    %v1272 = vsub.f32 %v907, %v1188
    %v1273 = vsub.f32 %v908, %v1188
    %v1274 = vsub.f32 %v909, %v1189
    %v1275 = vsub.f32 %v910, %v1189
    %v1276 = vsub.f32 %v911, %v1190
    %v1277 = vsub.f32 %v912, %v1190
    %v1278 = vsub.f32 %v913, %v1191
    %v1279 = vsub.f32 %v914, %v1191
    %v1280 = vsub.f32 %v915, %v1192
    %v1281 = vsub.f32 %v916, %v1192
    %v1282 = vsub.f32 %v917, %v1193
    %v1283 = vsub.f32 %v918, %v1193
    %v1284 = vsub.f32 %v919, %v1194
    %v1285 = vsub.f32 %v920, %v1194
    %v1286 = vsub.f32 %v921, %v1195
    %v1287 = vsub.f32 %v922, %v1195
    %v1288 = vsub.f32 %v923, %v1196
    %v1289 = vsub.f32 %v924, %v1196
    %v1290 = vsub.f32 %v925, %v1197
    %v1291 = vsub.f32 %v926, %v1197
    %v1292 = vsub.f32 %v927, %v1198
    %v1293 = vsub.f32 %v928, %v1198
    %v1294 = vsub.f32 %v929, %v1199
    %v1295 = vsub.f32 %v930, %v1199
    %v1296 = vsub.f32 %v931, %v1200
    %v1297 = vsub.f32 %v932, %v1200
    %v1298 = vsub.f32 %v933, %v1201
    %v1299 = vsub.f32 %v934, %v1201
    %v1300 = vsub.f32 %v935, %v1202
    %v1301 = vsub.f32 %v936, %v1202
    %v1302 = vsub.f32 %v937, %v1203
    %v1303 = vsub.f32 %v938, %v1203
    %v1304 = vsub.f32 %v939, %v1204
    %v1305 = vsub.f32 %v940, %v1204
    %v1306 = vsub.f32 %v941, %v1205
    %v1307 = vsub.f32 %v942, %v1205
    %v1308 = vsub.f32 %v943, %v1206
    %v1309 = vsub.f32 %v944, %v1206
    %v1310 = vsub.f32 %v945, %v1207
    %v1311 = vsub.f32 %v946, %v1207
    %v1312 = vsub.f32 %v947, %v1208
    %v1313 = vsub.f32 %v948, %v1208
    %v1314 = vsub.f32 %v949, %v1209
    %v1315 = vsub.f32 %v950, %v1209
    %v1316 = vsub.f32 %v951, %v1210
    %v1317 = vsub.f32 %v952, %v1210
    %v1318 = vsub.f32 %v953, %v1211
    %v1319 = vsub.f32 %v954, %v1211
    %v1320 = vsub.f32 %v955, %v1212
    %v1321 = vsub.f32 %v956, %v1212
    %v1322 = vsub.f32 %v957, %v1213
    %v1323 = vsub.f32 %v958, %v1213
    %v1324 = vsub.f32 %v959, %v1214
    %v1325 = vsub.f32 %v960, %v1214
    %v1326 = vsub.f32 %v961, %v1215
    %v1327 = vsub.f32 %v962, %v1215
    %v1328 = vsub.f32 %v963, %v1216
    %v1329 = vsub.f32 %v964, %v1216
    %v1330 = vsub.f32 %v965, %v1217
    %v1331 = vsub.f32 %v966, %v1217
    %v1332 = vsub.f32 %v967, %v1218
    %v1333 = vsub.f32 %v968, %v1218
    %v1334 = vsub.f32 %v969, %v1219
    %v1335 = vsub.f32 %v970, %v1219
    %v1336 = vsub.f32 %v971, %v1220
    %v1337 = vsub.f32 %v972, %v1220
    %v1338 = vsub.f32 %v973, %v1221
    %v1339 = vsub.f32 %v974, %v1221
    %v1340 = vsub.f32 %v975, %v1222
    %v1341 = vsub.f32 %v976, %v1222
    %v1342 = vsub.f32 %v977, %v1223
    %v1343 = vsub.f32 %v978, %v1223
    %v1344 = vsub.f32 %v979, %v1224
    %v1345 = vsub.f32 %v980, %v1224
    %v1346 = vsub.f32 %v981, %v1225
    %v1347 = vsub.f32 %v982, %v1225
    %v1348 = vsub.f32 %v983, %v1226
    %v1349 = vsub.f32 %v984, %v1226
    %v1350 = vsub.f32 %v985, %v1227
    %v1351 = vsub.f32 %v986, %v1227
    %v1352 = vsub.f32 %v987, %v1228
    %v1353 = vsub.f32 %v988, %v1228
    %v1354 = vsel %vm1232, %v1234, 0.0
    %v1355 = vsel %vm1233, %v1235, 0.0
    %v1356 = vsel %vm1232, %v1236, 0.0
    %v1357 = vsel %vm1233, %v1237, 0.0
    %v1358 = vsel %vm1232, %v1238, 0.0
    %v1359 = vsel %vm1233, %v1239, 0.0
    %v1360 = vsel %vm1232, %v1240, 0.0
    %v1361 = vsel %vm1233, %v1241, 0.0
    %v1362 = vsel %vm1232, %v1242, 0.0
    %v1363 = vsel %vm1233, %v1243, 0.0
    %v1364 = vsel %vm1232, %v1244, 0.0
    %v1365 = vsel %vm1233, %v1245, 0.0
    %v1366 = vsel %vm1232, %v1246, 0.0
    %v1367 = vsel %vm1233, %v1247, 0.0
    %v1368 = vsel %vm1232, %v1248, 0.0
    %v1369 = vsel %vm1233, %v1249, 0.0
    %v1370 = vsel %vm1232, %v1250, 0.0
    %v1371 = vsel %vm1233, %v1251, 0.0
    %v1372 = vsel %vm1232, %v1252, 0.0
    %v1373 = vsel %vm1233, %v1253, 0.0
    %v1374 = vsel %vm1232, %v1254, 0.0
    %v1375 = vsel %vm1233, %v1255, 0.0
    %v1376 = vsel %vm1232, %v1256, 0.0
    %v1377 = vsel %vm1233, %v1257, 0.0
    %v1378 = vsel %vm1232, %v1258, 0.0
    %v1379 = vsel %vm1233, %v1259, 0.0
    %v1380 = vsel %vm1232, %v1260, 0.0
    %v1381 = vsel %vm1233, %v1261, 0.0
    %v1382 = vsel %vm1232, %v1262, 0.0
    %v1383 = vsel %vm1233, %v1263, 0.0
    %v1384 = vsel %vm1232, %v1264, 0.0
    %v1385 = vsel %vm1233, %v1265, 0.0
    %v1386 = vsel %vm1232, %v1266, 0.0
    %v1387 = vsel %vm1233, %v1267, 0.0
    %v1388 = vsel %vm1232, %v1268, 0.0
    %v1389 = vsel %vm1233, %v1269, 0.0
    %v1390 = vsel %vm1232, %v1270, 0.0
    %v1391 = vsel %vm1233, %v1271, 0.0
    %v1392 = vsel %vm1232, %v1272, 0.0
    %v1393 = vsel %vm1233, %v1273, 0.0
    %v1394 = vsel %vm1232, %v1274, 0.0
    %v1395 = vsel %vm1233, %v1275, 0.0
    %v1396 = vsel %vm1232, %v1276, 0.0
    %v1397 = vsel %vm1233, %v1277, 0.0
    %v1398 = vsel %vm1232, %v1278, 0.0
    %v1399 = vsel %vm1233, %v1279, 0.0
    %v1400 = vsel %vm1232, %v1280, 0.0
    %v1401 = vsel %vm1233, %v1281, 0.0
    %v1402 = vsel %vm1232, %v1282, 0.0
    %v1403 = vsel %vm1233, %v1283, 0.0
    %v1404 = vsel %vm1232, %v1284, 0.0
    %v1405 = vsel %vm1233, %v1285, 0.0
    %v1406 = vsel %vm1232, %v1286, 0.0
    %v1407 = vsel %vm1233, %v1287, 0.0
    %v1408 = vsel %vm1232, %v1288, 0.0
    %v1409 = vsel %vm1233, %v1289, 0.0
    %v1410 = vsel %vm1232, %v1290, 0.0
    %v1411 = vsel %vm1233, %v1291, 0.0
    %v1412 = vsel %vm1232, %v1292, 0.0
    %v1413 = vsel %vm1233, %v1293, 0.0
    %v1414 = vsel %vm1232, %v1294, 0.0
    %v1415 = vsel %vm1233, %v1295, 0.0
    %v1416 = vsel %vm1232, %v1296, 0.0
    %v1417 = vsel %vm1233, %v1297, 0.0
    %v1418 = vsel %vm1232, %v1298, 0.0
    %v1419 = vsel %vm1233, %v1299, 0.0
    %v1420 = vsel %vm1232, %v1300, 0.0
    %v1421 = vsel %vm1233, %v1301, 0.0
    %v1422 = vsel %vm1232, %v1302, 0.0
    %v1423 = vsel %vm1233, %v1303, 0.0
    %v1424 = vsel %vm1232, %v1304, 0.0
    %v1425 = vsel %vm1233, %v1305, 0.0
    %v1426 = vsel %vm1232, %v1306, 0.0
    %v1427 = vsel %vm1233, %v1307, 0.0
    %v1428 = vsel %vm1232, %v1308, 0.0
    %v1429 = vsel %vm1233, %v1309, 0.0
    %v1430 = vsel %vm1232, %v1310, 0.0
    %v1431 = vsel %vm1233, %v1311, 0.0
    %v1432 = vsel %vm1232, %v1312, 0.0
    %v1433 = vsel %vm1233, %v1313, 0.0
    %v1434 = vsel %vm1232, %v1314, 0.0
    %v1435 = vsel %vm1233, %v1315, 0.0
    %v1436 = vsel %vm1232, %v1316, 0.0
    %v1437 = vsel %vm1233, %v1317, 0.0
    %v1438 = vsel %vm1232, %v1318, 0.0
    %v1439 = vsel %vm1233, %v1319, 0.0
    %v1440 = vsel %vm1232, %v1320, 0.0
    %v1441 = vsel %vm1233, %v1321, 0.0
    %v1442 = vsel %vm1232, %v1322, 0.0
    %v1443 = vsel %vm1233, %v1323, 0.0
    %v1444 = vsel %vm1232, %v1324, 0.0
    %v1445 = vsel %vm1233, %v1325, 0.0
    %v1446 = vsel %vm1232, %v1326, 0.0
    %v1447 = vsel %vm1233, %v1327, 0.0
    %v1448 = vsel %vm1232, %v1328, 0.0
    %v1449 = vsel %vm1233, %v1329, 0.0
    %v1450 = vsel %vm1232, %v1330, 0.0
    %v1451 = vsel %vm1233, %v1331, 0.0
    %v1452 = vsel %vm1232, %v1332, 0.0
    %v1453 = vsel %vm1233, %v1333, 0.0
    %v1454 = vsel %vm1232, %v1334, 0.0
    %v1455 = vsel %vm1233, %v1335, 0.0
    %v1456 = vsel %vm1232, %v1336, 0.0
    %v1457 = vsel %vm1233, %v1337, 0.0
    %v1458 = vsel %vm1232, %v1338, 0.0
    %v1459 = vsel %vm1233, %v1339, 0.0
    %v1460 = vsel %vm1232, %v1340, 0.0
    %v1461 = vsel %vm1233, %v1341, 0.0
    %v1462 = vsel %vm1232, %v1342, 0.0
    %v1463 = vsel %vm1233, %v1343, 0.0
    %v1464 = vsel %vm1232, %v1344, 0.0
    %v1465 = vsel %vm1233, %v1345, 0.0
    %v1466 = vsel %vm1232, %v1346, 0.0
    %v1467 = vsel %vm1233, %v1347, 0.0
    %v1468 = vsel %vm1232, %v1348, 0.0
    %v1469 = vsel %vm1233, %v1349, 0.0
    %v1470 = vsel %vm1232, %v1350, 0.0
    %v1471 = vsel %vm1233, %v1351, 0.0
    %v1472 = vsel %vm1232, %v1352, 0.0
    %v1473 = vsel %vm1233, %v1353, 0.0
    %v1474 = vmul.f32 %v1354, %v1354
    %v1475 = vmul.f32 %v1355, %v1355
    %v1476 = vmul.f32 %v1356, %v1356
    %v1477 = vmul.f32 %v1357, %v1357
    %v1478 = vmul.f32 %v1358, %v1358
    %v1479 = vmul.f32 %v1359, %v1359
    %v1480 = vmul.f32 %v1360, %v1360
    %v1481 = vmul.f32 %v1361, %v1361
    %v1482 = vmul.f32 %v1362, %v1362
    %v1483 = vmul.f32 %v1363, %v1363
    %v1484 = vmul.f32 %v1364, %v1364
    %v1485 = vmul.f32 %v1365, %v1365
    %v1486 = vmul.f32 %v1366, %v1366
    %v1487 = vmul.f32 %v1367, %v1367
    %v1488 = vmul.f32 %v1368, %v1368
    %v1489 = vmul.f32 %v1369, %v1369
    %v1490 = vmul.f32 %v1370, %v1370
    %v1491 = vmul.f32 %v1371, %v1371
    %v1492 = vmul.f32 %v1372, %v1372
    %v1493 = vmul.f32 %v1373, %v1373
    %v1494 = vmul.f32 %v1374, %v1374
    %v1495 = vmul.f32 %v1375, %v1375
    %v1496 = vmul.f32 %v1376, %v1376
    %v1497 = vmul.f32 %v1377, %v1377
    %v1498 = vmul.f32 %v1378, %v1378
    %v1499 = vmul.f32 %v1379, %v1379
    %v1500 = vmul.f32 %v1380, %v1380
    %v1501 = vmul.f32 %v1381, %v1381
    %v1502 = vmul.f32 %v1382, %v1382
    %v1503 = vmul.f32 %v1383, %v1383
    %v1504 = vmul.f32 %v1384, %v1384
    %v1505 = vmul.f32 %v1385, %v1385
    %v1506 = vmul.f32 %v1386, %v1386
    %v1507 = vmul.f32 %v1387, %v1387
    %v1508 = vmul.f32 %v1388, %v1388
    %v1509 = vmul.f32 %v1389, %v1389
    %v1510 = vmul.f32 %v1390, %v1390
    %v1511 = vmul.f32 %v1391, %v1391
    %v1512 = vmul.f32 %v1392, %v1392
    %v1513 = vmul.f32 %v1393, %v1393
    %v1514 = vmul.f32 %v1394, %v1394
    %v1515 = vmul.f32 %v1395, %v1395
    %v1516 = vmul.f32 %v1396, %v1396
    %v1517 = vmul.f32 %v1397, %v1397
    %v1518 = vmul.f32 %v1398, %v1398
    %v1519 = vmul.f32 %v1399, %v1399
    %v1520 = vmul.f32 %v1400, %v1400
    %v1521 = vmul.f32 %v1401, %v1401
    %v1522 = vmul.f32 %v1402, %v1402
    %v1523 = vmul.f32 %v1403, %v1403
    %v1524 = vmul.f32 %v1404, %v1404
    %v1525 = vmul.f32 %v1405, %v1405
    %v1526 = vmul.f32 %v1406, %v1406
    %v1527 = vmul.f32 %v1407, %v1407
    %v1528 = vmul.f32 %v1408, %v1408
    %v1529 = vmul.f32 %v1409, %v1409
    %v1530 = vmul.f32 %v1410, %v1410
    %v1531 = vmul.f32 %v1411, %v1411
    %v1532 = vmul.f32 %v1412, %v1412
    %v1533 = vmul.f32 %v1413, %v1413
    %v1534 = vmul.f32 %v1414, %v1414
    %v1535 = vmul.f32 %v1415, %v1415
    %v1536 = vmul.f32 %v1416, %v1416
    %v1537 = vmul.f32 %v1417, %v1417
    %v1538 = vmul.f32 %v1418, %v1418
    %v1539 = vmul.f32 %v1419, %v1419
    %v1540 = vmul.f32 %v1420, %v1420
    %v1541 = vmul.f32 %v1421, %v1421
    %v1542 = vmul.f32 %v1422, %v1422
    %v1543 = vmul.f32 %v1423, %v1423
    %v1544 = vmul.f32 %v1424, %v1424
    %v1545 = vmul.f32 %v1425, %v1425
    %v1546 = vmul.f32 %v1426, %v1426
    %v1547 = vmul.f32 %v1427, %v1427
    %v1548 = vmul.f32 %v1428, %v1428
    %v1549 = vmul.f32 %v1429, %v1429
    %v1550 = vmul.f32 %v1430, %v1430
    %v1551 = vmul.f32 %v1431, %v1431
    %v1552 = vmul.f32 %v1432, %v1432
    %v1553 = vmul.f32 %v1433, %v1433
    %v1554 = vmul.f32 %v1434, %v1434
    %v1555 = vmul.f32 %v1435, %v1435
    %v1556 = vmul.f32 %v1436, %v1436
    %v1557 = vmul.f32 %v1437, %v1437
    %v1558 = vmul.f32 %v1438, %v1438
    %v1559 = vmul.f32 %v1439, %v1439
    %v1560 = vmul.f32 %v1440, %v1440
    %v1561 = vmul.f32 %v1441, %v1441
    %v1562 = vmul.f32 %v1442, %v1442
    %v1563 = vmul.f32 %v1443, %v1443
    %v1564 = vmul.f32 %v1444, %v1444
    %v1565 = vmul.f32 %v1445, %v1445
    %v1566 = vmul.f32 %v1446, %v1446
    %v1567 = vmul.f32 %v1447, %v1447
    %v1568 = vmul.f32 %v1448, %v1448
    %v1569 = vmul.f32 %v1449, %v1449
    %v1570 = vmul.f32 %v1450, %v1450
    %v1571 = vmul.f32 %v1451, %v1451
    %v1572 = vmul.f32 %v1452, %v1452
    %v1573 = vmul.f32 %v1453, %v1453
    %v1574 = vmul.f32 %v1454, %v1454
    %v1575 = vmul.f32 %v1455, %v1455
    %v1576 = vmul.f32 %v1456, %v1456
    %v1577 = vmul.f32 %v1457, %v1457
    %v1578 = vmul.f32 %v1458, %v1458
    %v1579 = vmul.f32 %v1459, %v1459
    %v1580 = vmul.f32 %v1460, %v1460
    %v1581 = vmul.f32 %v1461, %v1461
    %v1582 = vmul.f32 %v1462, %v1462
    %v1583 = vmul.f32 %v1463, %v1463
    %v1584 = vmul.f32 %v1464, %v1464
    %v1585 = vmul.f32 %v1465, %v1465
    %v1586 = vmul.f32 %v1466, %v1466
    %v1587 = vmul.f32 %v1467, %v1467
    %v1588 = vmul.f32 %v1468, %v1468
    %v1589 = vmul.f32 %v1469, %v1469
    %v1590 = vmul.f32 %v1470, %v1470
    %v1591 = vmul.f32 %v1471, %v1471
    %v1592 = vmul.f32 %v1472, %v1472
    %v1593 = vmul.f32 %v1473, %v1473
    %v1594 = vadd.f32 %v1474, %v1475
    %1595 = vadd.xlane.f32.xlu0 %v1594
    %v1596 = vpop.xlane.xlu0 %1595
    %v1597 = vadd.f32 %v1476, %v1477
    %1598 = vadd.xlane.f32.xlu0 %v1597
    %v1599 = vpop.xlane.xlu0 %1598
    %v1600 = vadd.f32 %v1478, %v1479
    %1601 = vadd.xlane.f32.xlu0 %v1600
    %v1602 = vpop.xlane.xlu0 %1601
    %v1603 = vadd.f32 %v1480, %v1481
    %1604 = vadd.xlane.f32.xlu0 %v1603
    %v1605 = vpop.xlane.xlu0 %1604
    %v1606 = vadd.f32 %v1482, %v1483
    %1607 = vadd.xlane.f32.xlu0 %v1606
    %v1608 = vpop.xlane.xlu0 %1607
    %v1609 = vadd.f32 %v1484, %v1485
    %1610 = vadd.xlane.f32.xlu0 %v1609
    %v1611 = vpop.xlane.xlu0 %1610
    %v1612 = vadd.f32 %v1486, %v1487
    %1613 = vadd.xlane.f32.xlu0 %v1612
    %v1614 = vpop.xlane.xlu0 %1613
    %v1615 = vadd.f32 %v1488, %v1489
    %1616 = vadd.xlane.f32.xlu0 %v1615
    %v1617 = vpop.xlane.xlu0 %1616
    %v1618 = vadd.f32 %v1490, %v1491
    %1619 = vadd.xlane.f32.xlu0 %v1618
    %v1620 = vpop.xlane.xlu0 %1619
    %v1621 = vadd.f32 %v1492, %v1493
    %1622 = vadd.xlane.f32.xlu0 %v1621
    %v1623 = vpop.xlane.xlu0 %1622
    %v1624 = vadd.f32 %v1494, %v1495
    %1625 = vadd.xlane.f32.xlu0 %v1624
    %v1626 = vpop.xlane.xlu0 %1625
    %v1627 = vadd.f32 %v1496, %v1497
    %1628 = vadd.xlane.f32.xlu0 %v1627
    %v1629 = vpop.xlane.xlu0 %1628
    %v1630 = vadd.f32 %v1498, %v1499
    %1631 = vadd.xlane.f32.xlu0 %v1630
    %v1632 = vpop.xlane.xlu0 %1631
    %v1633 = vadd.f32 %v1500, %v1501
    %1634 = vadd.xlane.f32.xlu0 %v1633
    %v1635 = vpop.xlane.xlu0 %1634
    %v1636 = vadd.f32 %v1502, %v1503
    %1637 = vadd.xlane.f32.xlu0 %v1636
    %v1638 = vpop.xlane.xlu0 %1637
    %v1639 = vadd.f32 %v1504, %v1505
    %1640 = vadd.xlane.f32.xlu0 %v1639
    %v1641 = vpop.xlane.xlu0 %1640
    %v1642 = vadd.f32 %v1506, %v1507
    %1643 = vadd.xlane.f32.xlu0 %v1642
    %v1644 = vpop.xlane.xlu0 %1643
    %v1645 = vadd.f32 %v1508, %v1509
    %1646 = vadd.xlane.f32.xlu0 %v1645
    %v1647 = vpop.xlane.xlu0 %1646
    %v1648 = vadd.f32 %v1510, %v1511
    %1649 = vadd.xlane.f32.xlu0 %v1648
    %v1650 = vpop.xlane.xlu0 %1649
    %v1651 = vadd.f32 %v1512, %v1513
    %1652 = vadd.xlane.f32.xlu0 %v1651
    %v1653 = vpop.xlane.xlu0 %1652
    %v1654 = vadd.f32 %v1514, %v1515
    %1655 = vadd.xlane.f32.xlu0 %v1654
    %v1656 = vpop.xlane.xlu0 %1655
    %v1657 = vadd.f32 %v1516, %v1517
    %1658 = vadd.xlane.f32.xlu0 %v1657
    %v1659 = vpop.xlane.xlu0 %1658
    %v1660 = vadd.f32 %v1518, %v1519
    %1661 = vadd.xlane.f32.xlu0 %v1660
    %v1662 = vpop.xlane.xlu0 %1661
    %v1663 = vadd.f32 %v1520, %v1521
    %1664 = vadd.xlane.f32.xlu0 %v1663
    %v1665 = vpop.xlane.xlu0 %1664
    %v1666 = vadd.f32 %v1522, %v1523
    %1667 = vadd.xlane.f32.xlu0 %v1666
    %v1668 = vpop.xlane.xlu0 %1667
    %v1669 = vadd.f32 %v1524, %v1525
    %1670 = vadd.xlane.f32.xlu0 %v1669
    %v1671 = vpop.xlane.xlu0 %1670
    %v1672 = vadd.f32 %v1526, %v1527
    %1673 = vadd.xlane.f32.xlu0 %v1672
    %v1674 = vpop.xlane.xlu0 %1673
    %v1675 = vadd.f32 %v1528, %v1529
    %1676 = vadd.xlane.f32.xlu0 %v1675
    %v1677 = vpop.xlane.xlu0 %1676
    %v1678 = vadd.f32 %v1530, %v1531
    %1679 = vadd.xlane.f32.xlu0 %v1678
    %v1680 = vpop.xlane.xlu0 %1679
    %v1681 = vadd.f32 %v1532, %v1533
    %1682 = vadd.xlane.f32.xlu0 %v1681
    %v1683 = vpop.xlane.xlu0 %1682
    %v1684 = vadd.f32 %v1534, %v1535
    %1685 = vadd.xlane.f32.xlu0 %v1684
    %v1686 = vpop.xlane.xlu0 %1685
    %v1687 = vadd.f32 %v1536, %v1537
    %1688 = vadd.xlane.f32.xlu0 %v1687
    %v1689 = vpop.xlane.xlu0 %1688
    %v1690 = vadd.f32 %v1538, %v1539
    %1691 = vadd.xlane.f32.xlu0 %v1690
    %v1692 = vpop.xlane.xlu0 %1691
    %v1693 = vadd.f32 %v1540, %v1541
    %1694 = vadd.xlane.f32.xlu0 %v1693
    %v1695 = vpop.xlane.xlu0 %1694
    %v1696 = vadd.f32 %v1542, %v1543
    %1697 = vadd.xlane.f32.xlu0 %v1696
    %v1698 = vpop.xlane.xlu0 %1697
    %v1699 = vadd.f32 %v1544, %v1545
    %1700 = vadd.xlane.f32.xlu0 %v1699
    %v1701 = vpop.xlane.xlu0 %1700
    %v1702 = vadd.f32 %v1546, %v1547
    %1703 = vadd.xlane.f32.xlu0 %v1702
    %v1704 = vpop.xlane.xlu0 %1703
    %v1705 = vadd.f32 %v1548, %v1549
    %1706 = vadd.xlane.f32.xlu0 %v1705
    %v1707 = vpop.xlane.xlu0 %1706
    %v1708 = vadd.f32 %v1550, %v1551
    %1709 = vadd.xlane.f32.xlu0 %v1708
    %v1710 = vpop.xlane.xlu0 %1709
    %v1711 = vadd.f32 %v1552, %v1553
    %1712 = vadd.xlane.f32.xlu0 %v1711
    %v1713 = vpop.xlane.xlu0 %1712
    %v1714 = vadd.f32 %v1554, %v1555
    %1715 = vadd.xlane.f32.xlu0 %v1714
    %v1716 = vpop.xlane.xlu0 %1715
    %v1717 = vadd.f32 %v1556, %v1557
    %1718 = vadd.xlane.f32.xlu0 %v1717
    %v1719 = vpop.xlane.xlu0 %1718
    %v1720 = vadd.f32 %v1558, %v1559
    %1721 = vadd.xlane.f32.xlu0 %v1720
    %v1722 = vpop.xlane.xlu0 %1721
    %v1723 = vadd.f32 %v1560, %v1561
    %1724 = vadd.xlane.f32.xlu0 %v1723
    %v1725 = vpop.xlane.xlu0 %1724
    %v1726 = vadd.f32 %v1562, %v1563
    %1727 = vadd.xlane.f32.xlu0 %v1726
    %v1728 = vpop.xlane.xlu0 %1727
    %v1729 = vadd.f32 %v1564, %v1565
    %1730 = vadd.xlane.f32.xlu0 %v1729
    %v1731 = vpop.xlane.xlu0 %1730
    %v1732 = vadd.f32 %v1566, %v1567
    %1733 = vadd.xlane.f32.xlu0 %v1732
    %v1734 = vpop.xlane.xlu0 %1733
    %v1735 = vadd.f32 %v1568, %v1569
    %1736 = vadd.xlane.f32.xlu0 %v1735
    %v1737 = vpop.xlane.xlu0 %1736
    %v1738 = vadd.f32 %v1570, %v1571
    %1739 = vadd.xlane.f32.xlu0 %v1738
    %v1740 = vpop.xlane.xlu0 %1739
    %v1741 = vadd.f32 %v1572, %v1573
    %1742 = vadd.xlane.f32.xlu0 %v1741
    %v1743 = vpop.xlane.xlu0 %1742
    %v1744 = vadd.f32 %v1574, %v1575
    %1745 = vadd.xlane.f32.xlu0 %v1744
    %v1746 = vpop.xlane.xlu0 %1745
    %v1747 = vadd.f32 %v1576, %v1577
    %1748 = vadd.xlane.f32.xlu0 %v1747
    %v1749 = vpop.xlane.xlu0 %1748
    %v1750 = vadd.f32 %v1578, %v1579
    %1751 = vadd.xlane.f32.xlu0 %v1750
    %v1752 = vpop.xlane.xlu0 %1751
    %v1753 = vadd.f32 %v1580, %v1581
    %1754 = vadd.xlane.f32.xlu0 %v1753
    %v1755 = vpop.xlane.xlu0 %1754
    %v1756 = vadd.f32 %v1582, %v1583
    %1757 = vadd.xlane.f32.xlu0 %v1756
    %v1758 = vpop.xlane.xlu0 %1757
    %v1759 = vadd.f32 %v1584, %v1585
    %1760 = vadd.xlane.f32.xlu0 %v1759
    %v1761 = vpop.xlane.xlu0 %1760
    %v1762 = vadd.f32 %v1586, %v1587
    %1763 = vadd.xlane.f32.xlu0 %v1762
    %v1764 = vpop.xlane.xlu0 %1763
    %v1765 = vadd.f32 %v1588, %v1589
    %1766 = vadd.xlane.f32.xlu0 %v1765
    %v1767 = vpop.xlane.xlu0 %1766
    %v1768 = vadd.f32 %v1590, %v1591
    %1769 = vadd.xlane.f32.xlu0 %v1768
    %v1770 = vpop.xlane.xlu0 %1769
    %v1771 = vadd.f32 %v1592, %v1593
    %1772 = vadd.xlane.f32.xlu0 %v1771
    %v1773 = vpop.xlane.xlu0 %1772
    %v1774 = vmul.f32 %v1596, 0.0051020407
    %v1775 = vmul.f32 %v1599, 0.0051020407
    %v1776 = vmul.f32 %v1602, 0.0051020407
    %v1777 = vmul.f32 %v1605, 0.0051020407
    %v1778 = vmul.f32 %v1608, 0.0051020407
    %v1779 = vmul.f32 %v1611, 0.0051020407
    %v1780 = vmul.f32 %v1614, 0.0051020407
    %v1781 = vmul.f32 %v1617, 0.0051020407
    %v1782 = vmul.f32 %v1620, 0.0051020407
    %v1783 = vmul.f32 %v1623, 0.0051020407
    %v1784 = vmul.f32 %v1626, 0.0051020407
    %v1785 = vmul.f32 %v1629, 0.0051020407
    %v1786 = vmul.f32 %v1632, 0.0051020407
    %v1787 = vmul.f32 %v1635, 0.0051020407
    %v1788 = vmul.f32 %v1638, 0.0051020407
    %v1789 = vmul.f32 %v1641, 0.0051020407
    %v1790 = vmul.f32 %v1644, 0.0051020407
    %v1791 = vmul.f32 %v1647, 0.0051020407
    %v1792 = vmul.f32 %v1650, 0.0051020407
    %v1793 = vmul.f32 %v1653, 0.0051020407
    %v1794 = vmul.f32 %v1656, 0.0051020407
    %v1795 = vmul.f32 %v1659, 0.0051020407
    %v1796 = vmul.f32 %v1662, 0.0051020407
    %v1797 = vmul.f32 %v1665, 0.0051020407
    %v1798 = vmul.f32 %v1668, 0.0051020407
    %v1799 = vmul.f32 %v1671, 0.0051020407
    %v1800 = vmul.f32 %v1674, 0.0051020407
    %v1801 = vmul.f32 %v1677, 0.0051020407
    %v1802 = vmul.f32 %v1680, 0.0051020407
    %v1803 = vmul.f32 %v1683, 0.0051020407
    %v1804 = vmul.f32 %v1686, 0.0051020407
    %v1805 = vmul.f32 %v1689, 0.0051020407
    %v1806 = vmul.f32 %v1692, 0.0051020407
    %v1807 = vmul.f32 %v1695, 0.0051020407
    %v1808 = vmul.f32 %v1698, 0.0051020407
    %v1809 = vmul.f32 %v1701, 0.0051020407
    %v1810 = vmul.f32 %v1704, 0.0051020407
    %v1811 = vmul.f32 %v1707, 0.0051020407
    %v1812 = vmul.f32 %v1710, 0.0051020407
    %v1813 = vmul.f32 %v1713, 0.0051020407
    %v1814 = vmul.f32 %v1716, 0.0051020407
    %v1815 = vmul.f32 %v1719, 0.0051020407
    %v1816 = vmul.f32 %v1722, 0.0051020407
    %v1817 = vmul.f32 %v1725, 0.0051020407
    %v1818 = vmul.f32 %v1728, 0.0051020407
    %v1819 = vmul.f32 %v1731, 0.0051020407
    %v1820 = vmul.f32 %v1734, 0.0051020407
    %v1821 = vmul.f32 %v1737, 0.0051020407
    %v1822 = vmul.f32 %v1740, 0.0051020407
    %v1823 = vmul.f32 %v1743, 0.0051020407
    %v1824 = vmul.f32 %v1746, 0.0051020407
    %v1825 = vmul.f32 %v1749, 0.0051020407
    %v1826 = vmul.f32 %v1752, 0.0051020407
    %v1827 = vmul.f32 %v1755, 0.0051020407
    %v1828 = vmul.f32 %v1758, 0.0051020407
    %v1829 = vmul.f32 %v1761, 0.0051020407
    %v1830 = vmul.f32 %v1764, 0.0051020407
    %v1831 = vmul.f32 %v1767, 0.0051020407
    %v1832 = vmul.f32 %v1770, 0.0051020407
    %v1833 = vmul.f32 %v1773, 0.0051020407
    %v1834 = vadd.f32 %v1774, 1e-05
    %v1835 = vadd.f32 %v1775, 1e-05
    %v1836 = vadd.f32 %v1776, 1e-05
    %v1837 = vadd.f32 %v1777, 1e-05
    %v1838 = vadd.f32 %v1778, 1e-05
    %v1839 = vadd.f32 %v1779, 1e-05
    %v1840 = vadd.f32 %v1780, 1e-05
    %v1841 = vadd.f32 %v1781, 1e-05
    %v1842 = vadd.f32 %v1782, 1e-05
    %v1843 = vadd.f32 %v1783, 1e-05
    %v1844 = vadd.f32 %v1784, 1e-05
    %v1845 = vadd.f32 %v1785, 1e-05
    %v1846 = vadd.f32 %v1786, 1e-05
    %v1847 = vadd.f32 %v1787, 1e-05
    %v1848 = vadd.f32 %v1788, 1e-05
    %v1849 = vadd.f32 %v1789, 1e-05
    %v1850 = vadd.f32 %v1790, 1e-05
    %v1851 = vadd.f32 %v1791, 1e-05
    %v1852 = vadd.f32 %v1792, 1e-05
    %v1853 = vadd.f32 %v1793, 1e-05
    %v1854 = vadd.f32 %v1794, 1e-05
    %v1855 = vadd.f32 %v1795, 1e-05
    %v1856 = vadd.f32 %v1796, 1e-05
    %v1857 = vadd.f32 %v1797, 1e-05
    %v1858 = vadd.f32 %v1798, 1e-05
    %v1859 = vadd.f32 %v1799, 1e-05
    %v1860 = vadd.f32 %v1800, 1e-05
    %v1861 = vadd.f32 %v1801, 1e-05
    %v1862 = vadd.f32 %v1802, 1e-05
    %v1863 = vadd.f32 %v1803, 1e-05
    %v1864 = vadd.f32 %v1804, 1e-05
    %v1865 = vadd.f32 %v1805, 1e-05
    %v1866 = vadd.f32 %v1806, 1e-05
    %v1867 = vadd.f32 %v1807, 1e-05
    %v1868 = vadd.f32 %v1808, 1e-05
    %v1869 = vadd.f32 %v1809, 1e-05
    %v1870 = vadd.f32 %v1810, 1e-05
    %v1871 = vadd.f32 %v1811, 1e-05
    %v1872 = vadd.f32 %v1812, 1e-05
    %v1873 = vadd.f32 %v1813, 1e-05
    %v1874 = vadd.f32 %v1814, 1e-05
    %v1875 = vadd.f32 %v1815, 1e-05
    %v1876 = vadd.f32 %v1816, 1e-05
    %v1877 = vadd.f32 %v1817, 1e-05
    %v1878 = vadd.f32 %v1818, 1e-05
    %v1879 = vadd.f32 %v1819, 1e-05
    %v1880 = vadd.f32 %v1820, 1e-05
    %v1881 = vadd.f32 %v1821, 1e-05
    %v1882 = vadd.f32 %v1822, 1e-05
    %v1883 = vadd.f32 %v1823, 1e-05
    %v1884 = vadd.f32 %v1824, 1e-05
    %v1885 = vadd.f32 %v1825, 1e-05
    %v1886 = vadd.f32 %v1826, 1e-05
    %v1887 = vadd.f32 %v1827, 1e-05
    %v1888 = vadd.f32 %v1828, 1e-05
    %v1889 = vadd.f32 %v1829, 1e-05
    %v1890 = vadd.f32 %v1830, 1e-05
    %v1891 = vadd.f32 %v1831, 1e-05
    %v1892 = vadd.f32 %v1832, 1e-05
    %v1893 = vadd.f32 %v1833, 1e-05
    %v1894 = vrsqrt.pop %v1834
    %v1895 = vrsqrt.pop %v1835
    %v1896 = vrsqrt.pop %v1836
    %v1897 = vrsqrt.pop %v1837
    %v1898 = vrsqrt.pop %v1838
    %v1899 = vrsqrt.pop %v1839
    %v1900 = vrsqrt.pop %v1840
    %v1901 = vrsqrt.pop %v1841
    %v1902 = vrsqrt.pop %v1842
    %v1903 = vrsqrt.pop %v1843
    %v1904 = vrsqrt.pop %v1844
    %v1905 = vrsqrt.pop %v1845
    %v1906 = vrsqrt.pop %v1846
    %v1907 = vrsqrt.pop %v1847
    %v1908 = vrsqrt.pop %v1848
    %v1909 = vrsqrt.pop %v1849
    %v1910 = vrsqrt.pop %v1850
    %v1911 = vrsqrt.pop %v1851
    %v1912 = vrsqrt.pop %v1852
    %v1913 = vrsqrt.pop %v1853
    %v1914 = vrsqrt.pop %v1854
    %v1915 = vrsqrt.pop %v1855
    %v1916 = vrsqrt.pop %v1856
    %v1917 = vrsqrt.pop %v1857
    %v1918 = vrsqrt.pop %v1858
    %v1919 = vrsqrt.pop %v1859
    %v1920 = vrsqrt.pop %v1860
    %v1921 = vrsqrt.pop %v1861
    %v1922 = vrsqrt.pop %v1862
    %v1923 = vrsqrt.pop %v1863
    %v1924 = vrsqrt.pop %v1864
    %v1925 = vrsqrt.pop %v1865
    %v1926 = vrsqrt.pop %v1866
    %v1927 = vrsqrt.pop %v1867
    %v1928 = vrsqrt.pop %v1868
    %v1929 = vrsqrt.pop %v1869
    %v1930 = vrsqrt.pop %v1870
    %v1931 = vrsqrt.pop %v1871
    %v1932 = vrsqrt.pop %v1872
    %v1933 = vrsqrt.pop %v1873
    %v1934 = vrsqrt.pop %v1874
    %v1935 = vrsqrt.pop %v1875
    %v1936 = vrsqrt.pop %v1876
    %v1937 = vrsqrt.pop %v1877
    %v1938 = vrsqrt.pop %v1878
    %v1939 = vrsqrt.pop %v1879
    %v1940 = vrsqrt.pop %v1880
    %v1941 = vrsqrt.pop %v1881
    %v1942 = vrsqrt.pop %v1882
    %v1943 = vrsqrt.pop %v1883
    %v1944 = vrsqrt.pop %v1884
    %v1945 = vrsqrt.pop %v1885
    %v1946 = vrsqrt.pop %v1886
    %v1947 = vrsqrt.pop %v1887
    %v1948 = vrsqrt.pop %v1888
    %v1949 = vrsqrt.pop %v1889
    %v1950 = vrsqrt.pop %v1890
    %v1951 = vrsqrt.pop %v1891
    %v1952 = vrsqrt.pop %v1892
    %v1953 = vrsqrt.pop %v1893
    %v1954 = vld [vmem:[%s3] sm:$0xff]
    %v1955 = vld [vmem:[%s3 + $0x8] sm:$0xff]
    %v1956 = vld [vmem:[%s3 + $0x10] sm:$0xff]
    %v1957 = vld [vmem:[%s3 + $0x18] sm:$0xff]
    %v1958 = vld [vmem:[%s3 + $0x20] sm:$0xff]
    %v1959 = vld [vmem:[%s3 + $0x28] sm:$0xff]
    %v1960 = vld [vmem:[%s3 + $0x30] sm:$0xff]
    %v1961 = vld [vmem:[%s3 + $0x38] sm:$0xff]
    %v1962 = vld [vmem:[%s3 + $0x40] sm:$0xff]
    %v1963 = vld [vmem:[%s3 + $0x48] sm:$0xff]
    %v1964 = vld [vmem:[%s3 + $0x50] sm:$0xff]
    %v1965 = vld [vmem:[%s3 + $0x58] sm:$0xff]
    %v1966 = vld [vmem:[%s3 + $0x60] sm:$0xff]
    %v1967 = vld [vmem:[%s3 + $0x68] sm:$0xff]
    %v1968 = vld [vmem:[%s3 + $0x70] sm:$0xff]
    %v1969 = vld [vmem:[%s3 + $0x78] sm:$0xff]
    %v1970 = vld [vmem:[%s3 + $0x80] sm:$0xff]
    %v1971 = vld [vmem:[%s3 + $0x88] sm:$0xff]
    %v1972 = vld [vmem:[%s3 + $0x90] sm:$0xff]
    %v1973 = vld [vmem:[%s3 + $0x98] sm:$0xff]
    %v1974 = vld [vmem:[%s3 + $0xa0] sm:$0xff]
    %v1975 = vld [vmem:[%s3 + $0xa8] sm:$0xff]
    %v1976 = vld [vmem:[%s3 + $0xb0] sm:$0xff]
    %v1977 = vld [vmem:[%s3 + $0xb8] sm:$0xff]
    %v1978 = vld [vmem:[%s3 + $0xc0] sm:$0xff]
    %v1979 = vld [vmem:[%s3 + $0xc8] sm:$0xff]
    %v1980 = vld [vmem:[%s3 + $0xd0] sm:$0xff]
    %v1981 = vld [vmem:[%s3 + $0xd8] sm:$0xff]
    %v1982 = vld [vmem:[%s3 + $0xe0] sm:$0xff]
    %v1983 = vld [vmem:[%s3 + $0xe8] sm:$0xff]
    %v1984 = vld [vmem:[%s3 + $0xf0] sm:$0xff]
    %v1985 = vld [vmem:[%s3 + $0xf8] sm:$0xff]
    %v1986 = vld [vmem:[%s3 + $0x100] sm:$0xff]
    %v1987 = vld [vmem:[%s3 + $0x108] sm:$0xff]
    %v1988 = vld [vmem:[%s3 + $0x110] sm:$0xff]
    %v1989 = vld [vmem:[%s3 + $0x118] sm:$0xff]
    %v1990 = vld [vmem:[%s3 + $0x120] sm:$0xff]
    %v1991 = vld [vmem:[%s3 + $0x128] sm:$0xff]
    %v1992 = vld [vmem:[%s3 + $0x130] sm:$0xff]
    %v1993 = vld [vmem:[%s3 + $0x138] sm:$0xff]
    %v1994 = vld [vmem:[%s3 + $0x140] sm:$0xff]
    %v1995 = vld [vmem:[%s3 + $0x148] sm:$0xff]
    %v1996 = vld [vmem:[%s3 + $0x150] sm:$0xff]
    %v1997 = vld [vmem:[%s3 + $0x158] sm:$0xff]
    %v1998 = vld [vmem:[%s3 + $0x160] sm:$0xff]
    %v1999 = vld [vmem:[%s3 + $0x168] sm:$0xff]
    %v2000 = vld [vmem:[%s3 + $0x170] sm:$0xff]
    %v2001 = vld [vmem:[%s3 + $0x178] sm:$0xff]
    %v2002 = vld [vmem:[%s3 + $0x180] sm:$0xff]
    %v2003 = vld [vmem:[%s3 + $0x188] sm:$0xff]
    %v2004 = vld [vmem:[%s3 + $0x190] sm:$0xff]
    %v2005 = vld [vmem:[%s3 + $0x198] sm:$0xff]
    %v2006 = vld [vmem:[%s3 + $0x1a0] sm:$0xff]
    %v2007 = vld [vmem:[%s3 + $0x1a8] sm:$0xff]
    %v2008 = vld [vmem:[%s3 + $0x1b0] sm:$0xff]
    %v2009 = vld [vmem:[%s3 + $0x1b8] sm:$0xff]
    %v2010 = vld [vmem:[%s3 + $0x1c0] sm:$0xff]
    %v2011 = vld [vmem:[%s3 + $0x1c8] sm:$0xff]
    %v2012 = vld [vmem:[%s3 + $0x1d0] sm:$0xff]
    %v2013 = vld [vmem:[%s3 + $0x1d8] sm:$0xff]
    %v2014 = vmul.f32 %v1954, %v1894
    %v2015 = vmul.f32 %v1955, %v1895
    %v2016 = vmul.f32 %v1956, %v1896
    %v2017 = vmul.f32 %v1957, %v1897
    %v2018 = vmul.f32 %v1958, %v1898
    %v2019 = vmul.f32 %v1959, %v1899
    %v2020 = vmul.f32 %v1960, %v1900
    %v2021 = vmul.f32 %v1961, %v1901
    %v2022 = vmul.f32 %v1962, %v1902
    %v2023 = vmul.f32 %v1963, %v1903
    %v2024 = vmul.f32 %v1964, %v1904
    %v2025 = vmul.f32 %v1965, %v1905
    %v2026 = vmul.f32 %v1966, %v1906
    %v2027 = vmul.f32 %v1967, %v1907
    %v2028 = vmul.f32 %v1968, %v1908
    %v2029 = vmul.f32 %v1969, %v1909
    %v2030 = vmul.f32 %v1970, %v1910
    %v2031 = vmul.f32 %v1971, %v1911
    %v2032 = vmul.f32 %v1972, %v1912
    %v2033 = vmul.f32 %v1973, %v1913
    %v2034 = vmul.f32 %v1974, %v1914
    %v2035 = vmul.f32 %v1975, %v1915
    %v2036 = vmul.f32 %v1976, %v1916
    %v2037 = vmul.f32 %v1977, %v1917
    %v2038 = vmul.f32 %v1978, %v1918
    %v2039 = vmul.f32 %v1979, %v1919
    %v2040 = vmul.f32 %v1980, %v1920
    %v2041 = vmul.f32 %v1981, %v1921
    %v2042 = vmul.f32 %v1982, %v1922
    %v2043 = vmul.f32 %v1983, %v1923
    %v2044 = vmul.f32 %v1984, %v1924
    %v2045 = vmul.f32 %v1985, %v1925
    %v2046 = vmul.f32 %v1986, %v1926
    %v2047 = vmul.f32 %v1987, %v1927
    %v2048 = vmul.f32 %v1988, %v1928
    %v2049 = vmul.f32 %v1989, %v1929
    %v2050 = vmul.f32 %v1990, %v1930
    %v2051 = vmul.f32 %v1991, %v1931
    %v2052 = vmul.f32 %v1992, %v1932
    %v2053 = vmul.f32 %v1993, %v1933
    %v2054 = vmul.f32 %v1994, %v1934
    %v2055 = vmul.f32 %v1995, %v1935
    %v2056 = vmul.f32 %v1996, %v1936
    %v2057 = vmul.f32 %v1997, %v1937
    %v2058 = vmul.f32 %v1998, %v1938
    %v2059 = vmul.f32 %v1999, %v1939
    %v2060 = vmul.f32 %v2000, %v1940
    %v2061 = vmul.f32 %v2001, %v1941
    %v2062 = vmul.f32 %v2002, %v1942
    %v2063 = vmul.f32 %v2003, %v1943
    %v2064 = vmul.f32 %v2004, %v1944
    %v2065 = vmul.f32 %v2005, %v1945
    %v2066 = vmul.f32 %v2006, %v1946
    %v2067 = vmul.f32 %v2007, %v1947
    %v2068 = vmul.f32 %v2008, %v1948
    %v2069 = vmul.f32 %v2009, %v1949
    %v2070 = vmul.f32 %v2010, %v1950
    %v2071 = vmul.f32 %v2011, %v1951
    %v2072 = vmul.f32 %v2012, %v1952
    %v2073 = vmul.f32 %v2013, %v1953
    %v2074 = vld [vmem:[%s4] sm:$0xff]
    %v2075 = vld [vmem:[%s4 + $0x8] sm:$0xff]
    %v2076 = vld [vmem:[%s4 + $0x10] sm:$0xff]
    %v2077 = vld [vmem:[%s4 + $0x18] sm:$0xff]
    %v2078 = vld [vmem:[%s4 + $0x20] sm:$0xff]
    %v2079 = vld [vmem:[%s4 + $0x28] sm:$0xff]
    %v2080 = vld [vmem:[%s4 + $0x30] sm:$0xff]
    %v2081 = vld [vmem:[%s4 + $0x38] sm:$0xff]
    %v2082 = vld [vmem:[%s4 + $0x40] sm:$0xff]
    %v2083 = vld [vmem:[%s4 + $0x48] sm:$0xff]
    %v2084 = vld [vmem:[%s4 + $0x50] sm:$0xff]
    %v2085 = vld [vmem:[%s4 + $0x58] sm:$0xff]
    %v2086 = vld [vmem:[%s4 + $0x60] sm:$0xff]
    %v2087 = vld [vmem:[%s4 + $0x68] sm:$0xff]
    %v2088 = vld [vmem:[%s4 + $0x70] sm:$0xff]
    %v2089 = vld [vmem:[%s4 + $0x78] sm:$0xff]
    %v2090 = vld [vmem:[%s4 + $0x80] sm:$0xff]
    %v2091 = vld [vmem:[%s4 + $0x88] sm:$0xff]
    %v2092 = vld [vmem:[%s4 + $0x90] sm:$0xff]
    %v2093 = vld [vmem:[%s4 + $0x98] sm:$0xff]
    %v2094 = vld [vmem:[%s4 + $0xa0] sm:$0xff]
    %v2095 = vld [vmem:[%s4 + $0xa8] sm:$0xff]
    %v2096 = vld [vmem:[%s4 + $0xb0] sm:$0xff]
    %v2097 = vld [vmem:[%s4 + $0xb8] sm:$0xff]
    %v2098 = vld [vmem:[%s4 + $0xc0] sm:$0xff]
    %v2099 = vld [vmem:[%s4 + $0xc8] sm:$0xff]
    %v2100 = vld [vmem:[%s4 + $0xd0] sm:$0xff]
    %v2101 = vld [vmem:[%s4 + $0xd8] sm:$0xff]
    %v2102 = vld [vmem:[%s4 + $0xe0] sm:$0xff]
    %v2103 = vld [vmem:[%s4 + $0xe8] sm:$0xff]
    %v2104 = vld [vmem:[%s4 + $0xf0] sm:$0xff]
    %v2105 = vld [vmem:[%s4 + $0xf8] sm:$0xff]
    %v2106 = vld [vmem:[%s4 + $0x100] sm:$0xff]
    %v2107 = vld [vmem:[%s4 + $0x108] sm:$0xff]
    %v2108 = vld [vmem:[%s4 + $0x110] sm:$0xff]
    %v2109 = vld [vmem:[%s4 + $0x118] sm:$0xff]
    %v2110 = vld [vmem:[%s4 + $0x120] sm:$0xff]
    %v2111 = vld [vmem:[%s4 + $0x128] sm:$0xff]
    %v2112 = vld [vmem:[%s4 + $0x130] sm:$0xff]
    %v2113 = vld [vmem:[%s4 + $0x138] sm:$0xff]
    %v2114 = vld [vmem:[%s4 + $0x140] sm:$0xff]
    %v2115 = vld [vmem:[%s4 + $0x148] sm:$0xff]
    %v2116 = vld [vmem:[%s4 + $0x150] sm:$0xff]
    %v2117 = vld [vmem:[%s4 + $0x158] sm:$0xff]
    %v2118 = vld [vmem:[%s4 + $0x160] sm:$0xff]
    %v2119 = vld [vmem:[%s4 + $0x168] sm:$0xff]
    %v2120 = vld [vmem:[%s4 + $0x170] sm:$0xff]
    %v2121 = vld [vmem:[%s4 + $0x178] sm:$0xff]
    %v2122 = vld [vmem:[%s4 + $0x180] sm:$0xff]
    %v2123 = vld [vmem:[%s4 + $0x188] sm:$0xff]
    %v2124 = vld [vmem:[%s4 + $0x190] sm:$0xff]
    %v2125 = vld [vmem:[%s4 + $0x198] sm:$0xff]
    %v2126 = vld [vmem:[%s4 + $0x1a0] sm:$0xff]
    %v2127 = vld [vmem:[%s4 + $0x1a8] sm:$0xff]
    %v2128 = vld [vmem:[%s4 + $0x1b0] sm:$0xff]
    %v2129 = vld [vmem:[%s4 + $0x1b8] sm:$0xff]
    %v2130 = vld [vmem:[%s4 + $0x1c0] sm:$0xff]
    %v2131 = vld [vmem:[%s4 + $0x1c8] sm:$0xff]
    %v2132 = vld [vmem:[%s4 + $0x1d0] sm:$0xff]
    %v2133 = vld [vmem:[%s4 + $0x1d8] sm:$0xff]
    %v2134 = vmul.f32 %v1169, %v2014
    %v2135 = vmul.f32 %v1170, %v2015
    %v2136 = vmul.f32 %v1171, %v2016
    %v2137 = vmul.f32 %v1172, %v2017
    %v2138 = vmul.f32 %v1173, %v2018
    %v2139 = vmul.f32 %v1174, %v2019
    %v2140 = vmul.f32 %v1175, %v2020
    %v2141 = vmul.f32 %v1176, %v2021
    %v2142 = vmul.f32 %v1177, %v2022
    %v2143 = vmul.f32 %v1178, %v2023
    %v2144 = vmul.f32 %v1179, %v2024
    %v2145 = vmul.f32 %v1180, %v2025
    %v2146 = vmul.f32 %v1181, %v2026
    %v2147 = vmul.f32 %v1182, %v2027
    %v2148 = vmul.f32 %v1183, %v2028
    %v2149 = vmul.f32 %v1184, %v2029
    %v2150 = vmul.f32 %v1185, %v2030
    %v2151 = vmul.f32 %v1186, %v2031
    %v2152 = vmul.f32 %v1187, %v2032
    %v2153 = vmul.f32 %v1188, %v2033
    %v2154 = vmul.f32 %v1189, %v2034
    %v2155 = vmul.f32 %v1190, %v2035
    %v2156 = vmul.f32 %v1191, %v2036
    %v2157 = vmul.f32 %v1192, %v2037
    %v2158 = vmul.f32 %v1193, %v2038
    %v2159 = vmul.f32 %v1194, %v2039
    %v2160 = vmul.f32 %v1195, %v2040
    %v2161 = vmul.f32 %v1196, %v2041
    %v2162 = vmul.f32 %v1197, %v2042
    %v2163 = vmul.f32 %v1198, %v2043
    %v2164 = vmul.f32 %v1199, %v2044
    %v2165 = vmul.f32 %v1200, %v2045
    %v2166 = vmul.f32 %v1201, %v2046
    %v2167 = vmul.f32 %v1202, %v2047
    %v2168 = vmul.f32 %v1203, %v2048
    %v2169 = vmul.f32 %v1204, %v2049
    %v2170 = vmul.f32 %v1205, %v2050
    %v2171 = vmul.f32 %v1206, %v2051
    %v2172 = vmul.f32 %v1207, %v2052
    %v2173 = vmul.f32 %v1208, %v2053
    %v2174 = vmul.f32 %v1209, %v2054
    %v2175 = vmul.f32 %v1210, %v2055
    %v2176 = vmul.f32 %v1211, %v2056
    %v2177 = vmul.f32 %v1212, %v2057
    %v2178 = vmul.f32 %v1213, %v2058
    %v2179 = vmul.f32 %v1214, %v2059
    %v2180 = vmul.f32 %v1215, %v2060
    %v2181 = vmul.f32 %v1216, %v2061
    %v2182 = vmul.f32 %v1217, %v2062
    %v2183 = vmul.f32 %v1218, %v2063
    %v2184 = vmul.f32 %v1219, %v2064
    %v2185 = vmul.f32 %v1220, %v2065
    %v2186 = vmul.f32 %v1221, %v2066
    %v2187 = vmul.f32 %v1222, %v2067
    %v2188 = vmul.f32 %v1223, %v2068
    %v2189 = vmul.f32 %v1224, %v2069
    %v2190 = vmul.f32 %v1225, %v2070
    %v2191 = vmul.f32 %v1226, %v2071
    %v2192 = vmul.f32 %v1227, %v2072
    %v2193 = vmul.f32 %v1228, %v2073
    %v2194 = vsub.f32 %v2074, %v2134
    %v2195 = vsub.f32 %v2075, %v2135
    %v2196 = vsub.f32 %v2076, %v2136
    %v2197 = vsub.f32 %v2077, %v2137
    %v2198 = vsub.f32 %v2078, %v2138
    %v2199 = vsub.f32 %v2079, %v2139
    %v2200 = vsub.f32 %v2080, %v2140
    %v2201 = vsub.f32 %v2081, %v2141
    %v2202 = vsub.f32 %v2082, %v2142
    %v2203 = vsub.f32 %v2083, %v2143
    %v2204 = vsub.f32 %v2084, %v2144
    %v2205 = vsub.f32 %v2085, %v2145
    %v2206 = vsub.f32 %v2086, %v2146
    %v2207 = vsub.f32 %v2087, %v2147
    %v2208 = vsub.f32 %v2088, %v2148
    %v2209 = vsub.f32 %v2089, %v2149
    %v2210 = vsub.f32 %v2090, %v2150
    %v2211 = vsub.f32 %v2091, %v2151
    %v2212 = vsub.f32 %v2092, %v2152
    %v2213 = vsub.f32 %v2093, %v2153
    %v2214 = vsub.f32 %v2094, %v2154
    %v2215 = vsub.f32 %v2095, %v2155
    %v2216 = vsub.f32 %v2096, %v2156
    %v2217 = vsub.f32 %v2097, %v2157
    %v2218 = vsub.f32 %v2098, %v2158
    %v2219 = vsub.f32 %v2099, %v2159
    %v2220 = vsub.f32 %v2100, %v2160
    %v2221 = vsub.f32 %v2101, %v2161
    %v2222 = vsub.f32 %v2102, %v2162
    %v2223 = vsub.f32 %v2103, %v2163
    %v2224 = vsub.f32 %v2104, %v2164
    %v2225 = vsub.f32 %v2105, %v2165
    %v2226 = vsub.f32 %v2106, %v2166
    %v2227 = vsub.f32 %v2107, %v2167
    %v2228 = vsub.f32 %v2108, %v2168
    %v2229 = vsub.f32 %v2109, %v2169
    %v2230 = vsub.f32 %v2110, %v2170
    %v2231 = vsub.f32 %v2111, %v2171
    %v2232 = vsub.f32 %v2112, %v2172
    %v2233 = vsub.f32 %v2113, %v2173
    %v2234 = vsub.f32 %v2114, %v2174
    %v2235 = vsub.f32 %v2115, %v2175
    %v2236 = vsub.f32 %v2116, %v2176
    %v2237 = vsub.f32 %v2117, %v2177
    %v2238 = vsub.f32 %v2118, %v2178
    %v2239 = vsub.f32 %v2119, %v2179
    %v2240 = vsub.f32 %v2120, %v2180
    %v2241 = vsub.f32 %v2121, %v2181
    %v2242 = vsub.f32 %v2122, %v2182
    %v2243 = vsub.f32 %v2123, %v2183
    %v2244 = vsub.f32 %v2124, %v2184
    %v2245 = vsub.f32 %v2125, %v2185
    %v2246 = vsub.f32 %v2126, %v2186
    %v2247 = vsub.f32 %v2127, %v2187
    %v2248 = vsub.f32 %v2128, %v2188
    %v2249 = vsub.f32 %v2129, %v2189
    %v2250 = vsub.f32 %v2130, %v2190
    %v2251 = vsub.f32 %v2131, %v2191
    %v2252 = vsub.f32 %v2132, %v2192
    %v2253 = vsub.f32 %v2133, %v2193
    %2255 = vset.pattern.permute.xlu0 0
    %2256 = vperm.xlu0 %2255, %v2014
    %v2257 = vpop.permute.xlu0 %2256
    %2260 = vset.pattern.permute.xlu0 0
    %2261 = vperm.xlu0 %2260, %v2015
    %v2262 = vpop.permute.xlu0 %2261
    %2265 = vset.pattern.permute.xlu0 0
    %2266 = vperm.xlu0 %2265, %v2016
    %v2267 = vpop.permute.xlu0 %2266
    %2270 = vset.pattern.permute.xlu0 0
    %2271 = vperm.xlu0 %2270, %v2017
    %v2272 = vpop.permute.xlu0 %2271
    %2275 = vset.pattern.permute.xlu0 0
    %2276 = vperm.xlu0 %2275, %v2018
    %v2277 = vpop.permute.xlu0 %2276
    %2280 = vset.pattern.permute.xlu0 0
    %2281 = vperm.xlu0 %2280, %v2019
    %v2282 = vpop.permute.xlu0 %2281
    %2285 = vset.pattern.permute.xlu0 0
    %2286 = vperm.xlu0 %2285, %v2020
    %v2287 = vpop.permute.xlu0 %2286
    %2290 = vset.pattern.permute.xlu0 0
    %2291 = vperm.xlu0 %2290, %v2021
    %v2292 = vpop.permute.xlu0 %2291
    %2295 = vset.pattern.permute.xlu0 0
    %2296 = vperm.xlu0 %2295, %v2022
    %v2297 = vpop.permute.xlu0 %2296
    %2300 = vset.pattern.permute.xlu0 0
    %2301 = vperm.xlu0 %2300, %v2023
    %v2302 = vpop.permute.xlu0 %2301
    %2305 = vset.pattern.permute.xlu0 0
    %2306 = vperm.xlu0 %2305, %v2024
    %v2307 = vpop.permute.xlu0 %2306
    %2310 = vset.pattern.permute.xlu0 0
    %2311 = vperm.xlu0 %2310, %v2025
    %v2312 = vpop.permute.xlu0 %2311
    %2315 = vset.pattern.permute.xlu0 0
    %2316 = vperm.xlu0 %2315, %v2026
    %v2317 = vpop.permute.xlu0 %2316
    %2320 = vset.pattern.permute.xlu0 0
    %2321 = vperm.xlu0 %2320, %v2027
    %v2322 = vpop.permute.xlu0 %2321
    %2325 = vset.pattern.permute.xlu0 0
    %2326 = vperm.xlu0 %2325, %v2028
    %v2327 = vpop.permute.xlu0 %2326
    %2330 = vset.pattern.permute.xlu0 0
    %2331 = vperm.xlu0 %2330, %v2029
    %v2332 = vpop.permute.xlu0 %2331
    %2335 = vset.pattern.permute.xlu0 0
    %2336 = vperm.xlu0 %2335, %v2030
    %v2337 = vpop.permute.xlu0 %2336
    %2340 = vset.pattern.permute.xlu0 0
    %2341 = vperm.xlu0 %2340, %v2031
    %v2342 = vpop.permute.xlu0 %2341
    %2345 = vset.pattern.permute.xlu0 0
    %2346 = vperm.xlu0 %2345, %v2032
    %v2347 = vpop.permute.xlu0 %2346
    %2350 = vset.pattern.permute.xlu0 0
    %2351 = vperm.xlu0 %2350, %v2033
    %v2352 = vpop.permute.xlu0 %2351
    %2355 = vset.pattern.permute.xlu0 0
    %2356 = vperm.xlu0 %2355, %v2034
    %v2357 = vpop.permute.xlu0 %2356
    %2360 = vset.pattern.permute.xlu0 0
    %2361 = vperm.xlu0 %2360, %v2035
    %v2362 = vpop.permute.xlu0 %2361
    %2365 = vset.pattern.permute.xlu0 0
    %2366 = vperm.xlu0 %2365, %v2036
    %v2367 = vpop.permute.xlu0 %2366
    %2370 = vset.pattern.permute.xlu0 0
    %2371 = vperm.xlu0 %2370, %v2037
    %v2372 = vpop.permute.xlu0 %2371
    %2375 = vset.pattern.permute.xlu0 0
    %2376 = vperm.xlu0 %2375, %v2038
    %v2377 = vpop.permute.xlu0 %2376
    %2380 = vset.pattern.permute.xlu0 0
    %2381 = vperm.xlu0 %2380, %v2039
    %v2382 = vpop.permute.xlu0 %2381
    %2385 = vset.pattern.permute.xlu0 0
    %2386 = vperm.xlu0 %2385, %v2040
    %v2387 = vpop.permute.xlu0 %2386
    %2390 = vset.pattern.permute.xlu0 0
    %2391 = vperm.xlu0 %2390, %v2041
    %v2392 = vpop.permute.xlu0 %2391
    %2395 = vset.pattern.permute.xlu0 0
    %2396 = vperm.xlu0 %2395, %v2042
    %v2397 = vpop.permute.xlu0 %2396
    %2400 = vset.pattern.permute.xlu0 0
    %2401 = vperm.xlu0 %2400, %v2043
    %v2402 = vpop.permute.xlu0 %2401
    %2405 = vset.pattern.permute.xlu0 0
    %2406 = vperm.xlu0 %2405, %v2044
    %v2407 = vpop.permute.xlu0 %2406
    %2410 = vset.pattern.permute.xlu0 0
    %2411 = vperm.xlu0 %2410, %v2045
    %v2412 = vpop.permute.xlu0 %2411
    %2415 = vset.pattern.permute.xlu0 0
    %2416 = vperm.xlu0 %2415, %v2046
    %v2417 = vpop.permute.xlu0 %2416
    %2420 = vset.pattern.permute.xlu0 0
    %2421 = vperm.xlu0 %2420, %v2047
    %v2422 = vpop.permute.xlu0 %2421
    %2425 = vset.pattern.permute.xlu0 0
    %2426 = vperm.xlu0 %2425, %v2048
    %v2427 = vpop.permute.xlu0 %2426
    %2430 = vset.pattern.permute.xlu0 0
    %2431 = vperm.xlu0 %2430, %v2049
    %v2432 = vpop.permute.xlu0 %2431
    %2435 = vset.pattern.permute.xlu0 0
    %2436 = vperm.xlu0 %2435, %v2050
    %v2437 = vpop.permute.xlu0 %2436
    %2440 = vset.pattern.permute.xlu0 0
    %2441 = vperm.xlu0 %2440, %v2051
    %v2442 = vpop.permute.xlu0 %2441
    %2445 = vset.pattern.permute.xlu0 0
    %2446 = vperm.xlu0 %2445, %v2052
    %v2447 = vpop.permute.xlu0 %2446
    %2450 = vset.pattern.permute.xlu0 0
    %2451 = vperm.xlu0 %2450, %v2053
    %v2452 = vpop.permute.xlu0 %2451
    %2455 = vset.pattern.permute.xlu0 0
    %2456 = vperm.xlu0 %2455, %v2054
    %v2457 = vpop.permute.xlu0 %2456
    %2460 = vset.pattern.permute.xlu0 0
    %2461 = vperm.xlu0 %2460, %v2055
    %v2462 = vpop.permute.xlu0 %2461
    %2465 = vset.pattern.permute.xlu0 0
    %2466 = vperm.xlu0 %2465, %v2056
    %v2467 = vpop.permute.xlu0 %2466
    %2470 = vset.pattern.permute.xlu0 0
    %2471 = vperm.xlu0 %2470, %v2057
    %v2472 = vpop.permute.xlu0 %2471
    %2475 = vset.pattern.permute.xlu0 0
    %2476 = vperm.xlu0 %2475, %v2058
    %v2477 = vpop.permute.xlu0 %2476
    %2480 = vset.pattern.permute.xlu0 0
    %2481 = vperm.xlu0 %2480, %v2059
    %v2482 = vpop.permute.xlu0 %2481
    %2485 = vset.pattern.permute.xlu0 0
    %2486 = vperm.xlu0 %2485, %v2060
    %v2487 = vpop.permute.xlu0 %2486
    %2490 = vset.pattern.permute.xlu0 0
    %2491 = vperm.xlu0 %2490, %v2061
    %v2492 = vpop.permute.xlu0 %2491
    %2495 = vset.pattern.permute.xlu0 0
    %2496 = vperm.xlu0 %2495, %v2062
    %v2497 = vpop.permute.xlu0 %2496
    %2500 = vset.pattern.permute.xlu0 0
    %2501 = vperm.xlu0 %2500, %v2063
    %v2502 = vpop.permute.xlu0 %2501
    %2505 = vset.pattern.permute.xlu0 0
    %2506 = vperm.xlu0 %2505, %v2064
    %v2507 = vpop.permute.xlu0 %2506
    %2510 = vset.pattern.permute.xlu0 0
    %2511 = vperm.xlu0 %2510, %v2065
    %v2512 = vpop.permute.xlu0 %2511
    %2515 = vset.pattern.permute.xlu0 0
    %2516 = vperm.xlu0 %2515, %v2066
    %v2517 = vpop.permute.xlu0 %2516
    %2520 = vset.pattern.permute.xlu0 0
    %2521 = vperm.xlu0 %2520, %v2067
    %v2522 = vpop.permute.xlu0 %2521
    %2525 = vset.pattern.permute.xlu0 0
    %2526 = vperm.xlu0 %2525, %v2068
    %v2527 = vpop.permute.xlu0 %2526
    %2530 = vset.pattern.permute.xlu0 0
    %2531 = vperm.xlu0 %2530, %v2069
    %v2532 = vpop.permute.xlu0 %2531
    %2535 = vset.pattern.permute.xlu0 0
    %2536 = vperm.xlu0 %2535, %v2070
    %v2537 = vpop.permute.xlu0 %2536
    %2540 = vset.pattern.permute.xlu0 0
    %2541 = vperm.xlu0 %2540, %v2071
    %v2542 = vpop.permute.xlu0 %2541
    %2545 = vset.pattern.permute.xlu0 0
    %2546 = vperm.xlu0 %2545, %v2072
    %v2547 = vpop.permute.xlu0 %2546
    %2550 = vset.pattern.permute.xlu0 0
    %2551 = vperm.xlu0 %2550, %v2073
    %v2552 = vpop.permute.xlu0 %2551
    %v2554 = vmul.f32 %v869, %v2257
    %v2555 = vmul.f32 %v870, %v2257
    %v2556 = vmul.f32 %v871, %v2262
    %v2557 = vmul.f32 %v872, %v2262
    %v2558 = vmul.f32 %v873, %v2267
    %v2559 = vmul.f32 %v874, %v2267
    %v2560 = vmul.f32 %v875, %v2272
    %v2561 = vmul.f32 %v876, %v2272
    %v2562 = vmul.f32 %v877, %v2277
    %v2563 = vmul.f32 %v878, %v2277
    %v2564 = vmul.f32 %v879, %v2282
    %v2565 = vmul.f32 %v880, %v2282
    %v2566 = vmul.f32 %v881, %v2287
    %v2567 = vmul.f32 %v882, %v2287
    %v2568 = vmul.f32 %v883, %v2292
    %v2569 = vmul.f32 %v884, %v2292
    %v2570 = vmul.f32 %v885, %v2297
    %v2571 = vmul.f32 %v886, %v2297
    %v2572 = vmul.f32 %v887, %v2302
    %v2573 = vmul.f32 %v888, %v2302
    %v2574 = vmul.f32 %v889, %v2307
    %v2575 = vmul.f32 %v890, %v2307
    %v2576 = vmul.f32 %v891, %v2312
    %v2577 = vmul.f32 %v892, %v2312
    %v2578 = vmul.f32 %v893, %v2317
    %v2579 = vmul.f32 %v894, %v2317
    %v2580 = vmul.f32 %v895, %v2322
    %v2581 = vmul.f32 %v896, %v2322
    %v2582 = vmul.f32 %v897, %v2327
    %v2583 = vmul.f32 %v898, %v2327
    %v2584 = vmul.f32 %v899, %v2332
    %v2585 = vmul.f32 %v900, %v2332
    %v2586 = vmul.f32 %v901, %v2337
    %v2587 = vmul.f32 %v902, %v2337
    %v2588 = vmul.f32 %v903, %v2342
    %v2589 = vmul.f32 %v904, %v2342
    %v2590 = vmul.f32 %v905, %v2347
    %v2591 = vmul.f32 %v906, %v2347
    %v2592 = vmul.f32 %v907, %v2352
    %v2593 = vmul.f32 %v908, %v2352
    %v2594 = vmul.f32 %v909, %v2357
    %v2595 = vmul.f32 %v910, %v2357
    %v2596 = vmul.f32 %v911, %v2362
    %v2597 = vmul.f32 %v912, %v2362
    %v2598 = vmul.f32 %v913, %v2367
    %v2599 = vmul.f32 %v914, %v2367
    %v2600 = vmul.f32 %v915, %v2372
    %v2601 = vmul.f32 %v916, %v2372
    %v2602 = vmul.f32 %v917, %v2377
    %v2603 = vmul.f32 %v918, %v2377
    %v2604 = vmul.f32 %v919, %v2382
    %v2605 = vmul.f32 %v920, %v2382
    %v2606 = vmul.f32 %v921, %v2387
    %v2607 = vmul.f32 %v922, %v2387
    %v2608 = vmul.f32 %v923, %v2392
    %v2609 = vmul.f32 %v924, %v2392
    %v2610 = vmul.f32 %v925, %v2397
    %v2611 = vmul.f32 %v926, %v2397
    %v2612 = vmul.f32 %v927, %v2402
    %v2613 = vmul.f32 %v928, %v2402
    %v2614 = vmul.f32 %v929, %v2407
    %v2615 = vmul.f32 %v930, %v2407
    %v2616 = vmul.f32 %v931, %v2412
    %v2617 = vmul.f32 %v932, %v2412
    %v2618 = vmul.f32 %v933, %v2417
    %v2619 = vmul.f32 %v934, %v2417
    %v2620 = vmul.f32 %v935, %v2422
    %v2621 = vmul.f32 %v936, %v2422
    %v2622 = vmul.f32 %v937, %v2427
    %v2623 = vmul.f32 %v938, %v2427
    %v2624 = vmul.f32 %v939, %v2432
    %v2625 = vmul.f32 %v940, %v2432
    %v2626 = vmul.f32 %v941, %v2437
    %v2627 = vmul.f32 %v942, %v2437
    %v2628 = vmul.f32 %v943, %v2442
    %v2629 = vmul.f32 %v944, %v2442
    %v2630 = vmul.f32 %v945, %v2447
    %v2631 = vmul.f32 %v946, %v2447
    %v2632 = vmul.f32 %v947, %v2452
    %v2633 = vmul.f32 %v948, %v2452
    %v2634 = vmul.f32 %v949, %v2457
    %v2635 = vmul.f32 %v950, %v2457
    %v2636 = vmul.f32 %v951, %v2462
    %v2637 = vmul.f32 %v952, %v2462
    %v2638 = vmul.f32 %v953, %v2467
    %v2639 = vmul.f32 %v954, %v2467
    %v2640 = vmul.f32 %v955, %v2472
    %v2641 = vmul.f32 %v956, %v2472
    %v2642 = vmul.f32 %v957, %v2477
    %v2643 = vmul.f32 %v958, %v2477
    %v2644 = vmul.f32 %v959, %v2482
    %v2645 = vmul.f32 %v960, %v2482
    %v2646 = vmul.f32 %v961, %v2487
    %v2647 = vmul.f32 %v962, %v2487
    %v2648 = vmul.f32 %v963, %v2492
    %v2649 = vmul.f32 %v964, %v2492
    %v2650 = vmul.f32 %v965, %v2497
    %v2651 = vmul.f32 %v966, %v2497
    %v2652 = vmul.f32 %v967, %v2502
    %v2653 = vmul.f32 %v968, %v2502
    %v2654 = vmul.f32 %v969, %v2507
    %v2655 = vmul.f32 %v970, %v2507
    %v2656 = vmul.f32 %v971, %v2512
    %v2657 = vmul.f32 %v972, %v2512
    %v2658 = vmul.f32 %v973, %v2517
    %v2659 = vmul.f32 %v974, %v2517
    %v2660 = vmul.f32 %v975, %v2522
    %v2661 = vmul.f32 %v976, %v2522
    %v2662 = vmul.f32 %v977, %v2527
    %v2663 = vmul.f32 %v978, %v2527
    %v2664 = vmul.f32 %v979, %v2532
    %v2665 = vmul.f32 %v980, %v2532
    %v2666 = vmul.f32 %v981, %v2537
    %v2667 = vmul.f32 %v982, %v2537
    %v2668 = vmul.f32 %v983, %v2542
    %v2669 = vmul.f32 %v984, %v2542
    %v2670 = vmul.f32 %v985, %v2547
    %v2671 = vmul.f32 %v986, %v2547
    %v2672 = vmul.f32 %v987, %v2552
    %v2673 = vmul.f32 %v988, %v2552
    %2675 = vset.pattern.permute.xlu0 0
    %2676 = vperm.xlu0 %2675, %v2194
    %v2677 = vpop.permute.xlu0 %2676
    %2680 = vset.pattern.permute.xlu0 0
    %2681 = vperm.xlu0 %2680, %v2195
    %v2682 = vpop.permute.xlu0 %2681
    %2685 = vset.pattern.permute.xlu0 0
    %2686 = vperm.xlu0 %2685, %v2196
    %v2687 = vpop.permute.xlu0 %2686
    %2690 = vset.pattern.permute.xlu0 0
    %2691 = vperm.xlu0 %2690, %v2197
    %v2692 = vpop.permute.xlu0 %2691
    %2695 = vset.pattern.permute.xlu0 0
    %2696 = vperm.xlu0 %2695, %v2198
    %v2697 = vpop.permute.xlu0 %2696
    %2700 = vset.pattern.permute.xlu0 0
    %2701 = vperm.xlu0 %2700, %v2199
    %v2702 = vpop.permute.xlu0 %2701
    %2705 = vset.pattern.permute.xlu0 0
    %2706 = vperm.xlu0 %2705, %v2200
    %v2707 = vpop.permute.xlu0 %2706
    %2710 = vset.pattern.permute.xlu0 0
    %2711 = vperm.xlu0 %2710, %v2201
    %v2712 = vpop.permute.xlu0 %2711
    %2715 = vset.pattern.permute.xlu0 0
    %2716 = vperm.xlu0 %2715, %v2202
    %v2717 = vpop.permute.xlu0 %2716
    %2720 = vset.pattern.permute.xlu0 0
    %2721 = vperm.xlu0 %2720, %v2203
    %v2722 = vpop.permute.xlu0 %2721
    %2725 = vset.pattern.permute.xlu0 0
    %2726 = vperm.xlu0 %2725, %v2204
    %v2727 = vpop.permute.xlu0 %2726
    %2730 = vset.pattern.permute.xlu0 0
    %2731 = vperm.xlu0 %2730, %v2205
    %v2732 = vpop.permute.xlu0 %2731
    %2735 = vset.pattern.permute.xlu0 0
    %2736 = vperm.xlu0 %2735, %v2206
    %v2737 = vpop.permute.xlu0 %2736
    %2740 = vset.pattern.permute.xlu0 0
    %2741 = vperm.xlu0 %2740, %v2207
    %v2742 = vpop.permute.xlu0 %2741
    %2745 = vset.pattern.permute.xlu0 0
    %2746 = vperm.xlu0 %2745, %v2208
    %v2747 = vpop.permute.xlu0 %2746
    %2750 = vset.pattern.permute.xlu0 0
    %2751 = vperm.xlu0 %2750, %v2209
    %v2752 = vpop.permute.xlu0 %2751
    %2755 = vset.pattern.permute.xlu0 0
    %2756 = vperm.xlu0 %2755, %v2210
    %v2757 = vpop.permute.xlu0 %2756
    %2760 = vset.pattern.permute.xlu0 0
    %2761 = vperm.xlu0 %2760, %v2211
    %v2762 = vpop.permute.xlu0 %2761
    %2765 = vset.pattern.permute.xlu0 0
    %2766 = vperm.xlu0 %2765, %v2212
    %v2767 = vpop.permute.xlu0 %2766
    %2770 = vset.pattern.permute.xlu0 0
    %2771 = vperm.xlu0 %2770, %v2213
    %v2772 = vpop.permute.xlu0 %2771
    %2775 = vset.pattern.permute.xlu0 0
    %2776 = vperm.xlu0 %2775, %v2214
    %v2777 = vpop.permute.xlu0 %2776
    %2780 = vset.pattern.permute.xlu0 0
    %2781 = vperm.xlu0 %2780, %v2215
    %v2782 = vpop.permute.xlu0 %2781
    %2785 = vset.pattern.permute.xlu0 0
    %2786 = vperm.xlu0 %2785, %v2216
    %v2787 = vpop.permute.xlu0 %2786
    %2790 = vset.pattern.permute.xlu0 0
    %2791 = vperm.xlu0 %2790, %v2217
    %v2792 = vpop.permute.xlu0 %2791
    %2795 = vset.pattern.permute.xlu0 0
    %2796 = vperm.xlu0 %2795, %v2218
    %v2797 = vpop.permute.xlu0 %2796
    %2800 = vset.pattern.permute.xlu0 0
    %2801 = vperm.xlu0 %2800, %v2219
    %v2802 = vpop.permute.xlu0 %2801
    %2805 = vset.pattern.permute.xlu0 0
    %2806 = vperm.xlu0 %2805, %v2220
    %v2807 = vpop.permute.xlu0 %2806
    %2810 = vset.pattern.permute.xlu0 0
    %2811 = vperm.xlu0 %2810, %v2221
    %v2812 = vpop.permute.xlu0 %2811
    %2815 = vset.pattern.permute.xlu0 0
    %2816 = vperm.xlu0 %2815, %v2222
    %v2817 = vpop.permute.xlu0 %2816
    %2820 = vset.pattern.permute.xlu0 0
    %2821 = vperm.xlu0 %2820, %v2223
    %v2822 = vpop.permute.xlu0 %2821
    %2825 = vset.pattern.permute.xlu0 0
    %2826 = vperm.xlu0 %2825, %v2224
    %v2827 = vpop.permute.xlu0 %2826
    %2830 = vset.pattern.permute.xlu0 0
    %2831 = vperm.xlu0 %2830, %v2225
    %v2832 = vpop.permute.xlu0 %2831
    %2835 = vset.pattern.permute.xlu0 0
    %2836 = vperm.xlu0 %2835, %v2226
    %v2837 = vpop.permute.xlu0 %2836
    %2840 = vset.pattern.permute.xlu0 0
    %2841 = vperm.xlu0 %2840, %v2227
    %v2842 = vpop.permute.xlu0 %2841
    %2845 = vset.pattern.permute.xlu0 0
    %2846 = vperm.xlu0 %2845, %v2228
    %v2847 = vpop.permute.xlu0 %2846
    %2850 = vset.pattern.permute.xlu0 0
    %2851 = vperm.xlu0 %2850, %v2229
    %v2852 = vpop.permute.xlu0 %2851
    %2855 = vset.pattern.permute.xlu0 0
    %2856 = vperm.xlu0 %2855, %v2230
    %v2857 = vpop.permute.xlu0 %2856
    %2860 = vset.pattern.permute.xlu0 0
    %2861 = vperm.xlu0 %2860, %v2231
    %v2862 = vpop.permute.xlu0 %2861
    %2865 = vset.pattern.permute.xlu0 0
    %2866 = vperm.xlu0 %2865, %v2232
    %v2867 = vpop.permute.xlu0 %2866
    %2870 = vset.pattern.permute.xlu0 0
    %2871 = vperm.xlu0 %2870, %v2233
    %v2872 = vpop.permute.xlu0 %2871
    %2875 = vset.pattern.permute.xlu0 0
    %2876 = vperm.xlu0 %2875, %v2234
    %v2877 = vpop.permute.xlu0 %2876
    %2880 = vset.pattern.permute.xlu0 0
    %2881 = vperm.xlu0 %2880, %v2235
    %v2882 = vpop.permute.xlu0 %2881
    %2885 = vset.pattern.permute.xlu0 0
    %2886 = vperm.xlu0 %2885, %v2236
    %v2887 = vpop.permute.xlu0 %2886
    %2890 = vset.pattern.permute.xlu0 0
    %2891 = vperm.xlu0 %2890, %v2237
    %v2892 = vpop.permute.xlu0 %2891
    %2895 = vset.pattern.permute.xlu0 0
    %2896 = vperm.xlu0 %2895, %v2238
    %v2897 = vpop.permute.xlu0 %2896
    %2900 = vset.pattern.permute.xlu0 0
    %2901 = vperm.xlu0 %2900, %v2239
    %v2902 = vpop.permute.xlu0 %2901
    %2905 = vset.pattern.permute.xlu0 0
    %2906 = vperm.xlu0 %2905, %v2240
    %v2907 = vpop.permute.xlu0 %2906
    %2910 = vset.pattern.permute.xlu0 0
    %2911 = vperm.xlu0 %2910, %v2241
    %v2912 = vpop.permute.xlu0 %2911
    %2915 = vset.pattern.permute.xlu0 0
    %2916 = vperm.xlu0 %2915, %v2242
    %v2917 = vpop.permute.xlu0 %2916
    %2920 = vset.pattern.permute.xlu0 0
    %2921 = vperm.xlu0 %2920, %v2243
    %v2922 = vpop.permute.xlu0 %2921
    %2925 = vset.pattern.permute.xlu0 0
    %2926 = vperm.xlu0 %2925, %v2244
    %v2927 = vpop.permute.xlu0 %2926
    %2930 = vset.pattern.permute.xlu0 0
    %2931 = vperm.xlu0 %2930, %v2245
    %v2932 = vpop.permute.xlu0 %2931
    %2935 = vset.pattern.permute.xlu0 0
    %2936 = vperm.xlu0 %2935, %v2246
    %v2937 = vpop.permute.xlu0 %2936
    %2940 = vset.pattern.permute.xlu0 0
    %2941 = vperm.xlu0 %2940, %v2247
    %v2942 = vpop.permute.xlu0 %2941
    %2945 = vset.pattern.permute.xlu0 0
    %2946 = vperm.xlu0 %2945, %v2248
    %v2947 = vpop.permute.xlu0 %2946
    %2950 = vset.pattern.permute.xlu0 0
    %2951 = vperm.xlu0 %2950, %v2249
    %v2952 = vpop.permute.xlu0 %2951
    %2955 = vset.pattern.permute.xlu0 0
    %2956 = vperm.xlu0 %2955, %v2250
    %v2957 = vpop.permute.xlu0 %2956
    %2960 = vset.pattern.permute.xlu0 0
    %2961 = vperm.xlu0 %2960, %v2251
    %v2962 = vpop.permute.xlu0 %2961
    %2965 = vset.pattern.permute.xlu0 0
    %2966 = vperm.xlu0 %2965, %v2252
    %v2967 = vpop.permute.xlu0 %2966
    %2970 = vset.pattern.permute.xlu0 0
    %2971 = vperm.xlu0 %2970, %v2253
    %v2972 = vpop.permute.xlu0 %2971
    %v2974 = vadd.f32 %v2554, %v2677
    %v2975 = vadd.f32 %v2555, %v2677
    %v2976 = vadd.f32 %v2556, %v2682
    %v2977 = vadd.f32 %v2557, %v2682
    %v2978 = vadd.f32 %v2558, %v2687
    %v2979 = vadd.f32 %v2559, %v2687
    %v2980 = vadd.f32 %v2560, %v2692
    %v2981 = vadd.f32 %v2561, %v2692
    %v2982 = vadd.f32 %v2562, %v2697
    %v2983 = vadd.f32 %v2563, %v2697
    %v2984 = vadd.f32 %v2564, %v2702
    %v2985 = vadd.f32 %v2565, %v2702
    %v2986 = vadd.f32 %v2566, %v2707
    %v2987 = vadd.f32 %v2567, %v2707
    %v2988 = vadd.f32 %v2568, %v2712
    %v2989 = vadd.f32 %v2569, %v2712
    %v2990 = vadd.f32 %v2570, %v2717
    %v2991 = vadd.f32 %v2571, %v2717
    %v2992 = vadd.f32 %v2572, %v2722
    %v2993 = vadd.f32 %v2573, %v2722
    %v2994 = vadd.f32 %v2574, %v2727
    %v2995 = vadd.f32 %v2575, %v2727
    %v2996 = vadd.f32 %v2576, %v2732
    %v2997 = vadd.f32 %v2577, %v2732
    %v2998 = vadd.f32 %v2578, %v2737
    %v2999 = vadd.f32 %v2579, %v2737
    %v3000 = vadd.f32 %v2580, %v2742
    %v3001 = vadd.f32 %v2581, %v2742
    %v3002 = vadd.f32 %v2582, %v2747
    %v3003 = vadd.f32 %v2583, %v2747
    %v3004 = vadd.f32 %v2584, %v2752
    %v3005 = vadd.f32 %v2585, %v2752
    %v3006 = vadd.f32 %v2586, %v2757
    %v3007 = vadd.f32 %v2587, %v2757
    %v3008 = vadd.f32 %v2588, %v2762
    %v3009 = vadd.f32 %v2589, %v2762
    %v3010 = vadd.f32 %v2590, %v2767
    %v3011 = vadd.f32 %v2591, %v2767
    %v3012 = vadd.f32 %v2592, %v2772
    %v3013 = vadd.f32 %v2593, %v2772
    %v3014 = vadd.f32 %v2594, %v2777
    %v3015 = vadd.f32 %v2595, %v2777
    %v3016 = vadd.f32 %v2596, %v2782
    %v3017 = vadd.f32 %v2597, %v2782
    %v3018 = vadd.f32 %v2598, %v2787
    %v3019 = vadd.f32 %v2599, %v2787
    %v3020 = vadd.f32 %v2600, %v2792
    %v3021 = vadd.f32 %v2601, %v2792
    %v3022 = vadd.f32 %v2602, %v2797
    %v3023 = vadd.f32 %v2603, %v2797
    %v3024 = vadd.f32 %v2604, %v2802
    %v3025 = vadd.f32 %v2605, %v2802
    %v3026 = vadd.f32 %v2606, %v2807
    %v3027 = vadd.f32 %v2607, %v2807
    %v3028 = vadd.f32 %v2608, %v2812
    %v3029 = vadd.f32 %v2609, %v2812
    %v3030 = vadd.f32 %v2610, %v2817
    %v3031 = vadd.f32 %v2611, %v2817
    %v3032 = vadd.f32 %v2612, %v2822
    %v3033 = vadd.f32 %v2613, %v2822
    %v3034 = vadd.f32 %v2614, %v2827
    %v3035 = vadd.f32 %v2615, %v2827
    %v3036 = vadd.f32 %v2616, %v2832
    %v3037 = vadd.f32 %v2617, %v2832
    %v3038 = vadd.f32 %v2618, %v2837
    %v3039 = vadd.f32 %v2619, %v2837
    %v3040 = vadd.f32 %v2620, %v2842
    %v3041 = vadd.f32 %v2621, %v2842
    %v3042 = vadd.f32 %v2622, %v2847
    %v3043 = vadd.f32 %v2623, %v2847
    %v3044 = vadd.f32 %v2624, %v2852
    %v3045 = vadd.f32 %v2625, %v2852
    %v3046 = vadd.f32 %v2626, %v2857
    %v3047 = vadd.f32 %v2627, %v2857
    %v3048 = vadd.f32 %v2628, %v2862
    %v3049 = vadd.f32 %v2629, %v2862
    %v3050 = vadd.f32 %v2630, %v2867
    %v3051 = vadd.f32 %v2631, %v2867
    %v3052 = vadd.f32 %v2632, %v2872
    %v3053 = vadd.f32 %v2633, %v2872
    %v3054 = vadd.f32 %v2634, %v2877
    %v3055 = vadd.f32 %v2635, %v2877
    %v3056 = vadd.f32 %v2636, %v2882
    %v3057 = vadd.f32 %v2637, %v2882
    %v3058 = vadd.f32 %v2638, %v2887
    %v3059 = vadd.f32 %v2639, %v2887
    %v3060 = vadd.f32 %v2640, %v2892
    %v3061 = vadd.f32 %v2641, %v2892
    %v3062 = vadd.f32 %v2642, %v2897
    %v3063 = vadd.f32 %v2643, %v2897
    %v3064 = vadd.f32 %v2644, %v2902
    %v3065 = vadd.f32 %v2645, %v2902
    %v3066 = vadd.f32 %v2646, %v2907
    %v3067 = vadd.f32 %v2647, %v2907
    %v3068 = vadd.f32 %v2648, %v2912
    %v3069 = vadd.f32 %v2649, %v2912
    %v3070 = vadd.f32 %v2650, %v2917
    %v3071 = vadd.f32 %v2651, %v2917
    %v3072 = vadd.f32 %v2652, %v2922
    %v3073 = vadd.f32 %v2653, %v2922
    %v3074 = vadd.f32 %v2654, %v2927
    %v3075 = vadd.f32 %v2655, %v2927
    %v3076 = vadd.f32 %v2656, %v2932
    %v3077 = vadd.f32 %v2657, %v2932
    %v3078 = vadd.f32 %v2658, %v2937
    %v3079 = vadd.f32 %v2659, %v2937
    %v3080 = vadd.f32 %v2660, %v2942
    %v3081 = vadd.f32 %v2661, %v2942
    %v3082 = vadd.f32 %v2662, %v2947
    %v3083 = vadd.f32 %v2663, %v2947
    %v3084 = vadd.f32 %v2664, %v2952
    %v3085 = vadd.f32 %v2665, %v2952
    %v3086 = vadd.f32 %v2666, %v2957
    %v3087 = vadd.f32 %v2667, %v2957
    %v3088 = vadd.f32 %v2668, %v2962
    %v3089 = vadd.f32 %v2669, %v2962
    %v3090 = vadd.f32 %v2670, %v2967
    %v3091 = vadd.f32 %v2671, %v2967
    %v3092 = vadd.f32 %v2672, %v2972
    %v3093 = vadd.f32 %v2673, %v2972
    %3094 = vst [vmem:[#allocation2] sm:$0xff] %v2974
    %3095 = vst [vmem:[#allocation2 + $0x8] sm:$0xff] %v2975
    %3096 = vst [vmem:[#allocation2 + $0x10] sm:$0xff] %v2976
    %3097 = vst [vmem:[#allocation2 + $0x18] sm:$0xff] %v2977
    %3098 = vst [vmem:[#allocation2 + $0x20] sm:$0xff] %v2978
    %3099 = vst [vmem:[#allocation2 + $0x28] sm:$0xff] %v2979
    %3100 = vst [vmem:[#allocation2 + $0x30] sm:$0xff] %v2980
    %3101 = vst [vmem:[#allocation2 + $0x38] sm:$0xff] %v2981
    %3102 = vst [vmem:[#allocation2 + $0x40] sm:$0xff] %v2982
    %3103 = vst [vmem:[#allocation2 + $0x48] sm:$0xff] %v2983
    %3104 = vst [vmem:[#allocation2 + $0x50] sm:$0xff] %v2984
    %3105 = vst [vmem:[#allocation2 + $0x58] sm:$0xff] %v2985
    %3106 = vst [vmem:[#allocation2 + $0x60] sm:$0xff] %v2986
    %3107 = vst [vmem:[#allocation2 + $0x68] sm:$0xff] %v2987
    %3108 = vst [vmem:[#allocation2 + $0x70] sm:$0xff] %v2988
    %3109 = vst [vmem:[#allocation2 + $0x78] sm:$0xff] %v2989
    %3110 = vst [vmem:[#allocation2 + $0x80] sm:$0xff] %v2990
    %3111 = vst [vmem:[#allocation2 + $0x88] sm:$0xff] %v2991
    %3112 = vst [vmem:[#allocation2 + $0x90] sm:$0xff] %v2992
    %3113 = vst [vmem:[#allocation2 + $0x98] sm:$0xff] %v2993
    %3114 = vst [vmem:[#allocation2 + $0xa0] sm:$0xff] %v2994
    %3115 = vst [vmem:[#allocation2 + $0xa8] sm:$0xff] %v2995
    %3116 = vst [vmem:[#allocation2 + $0xb0] sm:$0xff] %v2996
    %3117 = vst [vmem:[#allocation2 + $0xb8] sm:$0xff] %v2997
    %3118 = vst [vmem:[#allocation2 + $0xc0] sm:$0xff] %v2998
    %3119 = vst [vmem:[#allocation2 + $0xc8] sm:$0xff] %v2999
    %3120 = vst [vmem:[#allocation2 + $0xd0] sm:$0xff] %v3000
    %3121 = vst [vmem:[#allocation2 + $0xd8] sm:$0xff] %v3001
    %3122 = vst [vmem:[#allocation2 + $0xe0] sm:$0xff] %v3002
    %3123 = vst [vmem:[#allocation2 + $0xe8] sm:$0xff] %v3003
    %3124 = vst [vmem:[#allocation2 + $0xf0] sm:$0xff] %v3004
    %3125 = vst [vmem:[#allocation2 + $0xf8] sm:$0xff] %v3005
    %3126 = vst [vmem:[#allocation2 + $0x100] sm:$0xff] %v3006
    %3127 = vst [vmem:[#allocation2 + $0x108] sm:$0xff] %v3007
    %3128 = vst [vmem:[#allocation2 + $0x110] sm:$0xff] %v3008
    %3129 = vst [vmem:[#allocation2 + $0x118] sm:$0xff] %v3009
    %3130 = vst [vmem:[#allocation2 + $0x120] sm:$0xff] %v3010
    %3131 = vst [vmem:[#allocation2 + $0x128] sm:$0xff] %v3011
    %3132 = vst [vmem:[#allocation2 + $0x130] sm:$0xff] %v3012
    %3133 = vst [vmem:[#allocation2 + $0x138] sm:$0xff] %v3013
    %3134 = vst [vmem:[#allocation2 + $0x140] sm:$0xff] %v3014
    %3135 = vst [vmem:[#allocation2 + $0x148] sm:$0xff] %v3015
    %3136 = vst [vmem:[#allocation2 + $0x150] sm:$0xff] %v3016
    %3137 = vst [vmem:[#allocation2 + $0x158] sm:$0xff] %v3017
    %3138 = vst [vmem:[#allocation2 + $0x160] sm:$0xff] %v3018
    %3139 = vst [vmem:[#allocation2 + $0x168] sm:$0xff] %v3019
    %3140 = vst [vmem:[#allocation2 + $0x170] sm:$0xff] %v3020
    %3141 = vst [vmem:[#allocation2 + $0x178] sm:$0xff] %v3021
    %3142 = vst [vmem:[#allocation2 + $0x180] sm:$0xff] %v3022
    %3143 = vst [vmem:[#allocation2 + $0x188] sm:$0xff] %v3023
    %3144 = vst [vmem:[#allocation2 + $0x190] sm:$0xff] %v3024
    %3145 = vst [vmem:[#allocation2 + $0x198] sm:$0xff] %v3025
    %3146 = vst [vmem:[#allocation2 + $0x1a0] sm:$0xff] %v3026
    %3147 = vst [vmem:[#allocation2 + $0x1a8] sm:$0xff] %v3027
    %3148 = vst [vmem:[#allocation2 + $0x1b0] sm:$0xff] %v3028
    %3149 = vst [vmem:[#allocation2 + $0x1b8] sm:$0xff] %v3029
    %3150 = vst [vmem:[#allocation2 + $0x1c0] sm:$0xff] %v3030
    %3151 = vst [vmem:[#allocation2 + $0x1c8] sm:$0xff] %v3031
    %3152 = vst [vmem:[#allocation2 + $0x1d0] sm:$0xff] %v3032
    %3153 = vst [vmem:[#allocation2 + $0x1d8] sm:$0xff] %v3033
    %3154 = vst [vmem:[#allocation2 + $0x1e0] sm:$0xff] %v3034
    %3155 = vst [vmem:[#allocation2 + $0x1e8] sm:$0xff] %v3035
    %3156 = vst [vmem:[#allocation2 + $0x1f0] sm:$0xff] %v3036
    %3157 = vst [vmem:[#allocation2 + $0x1f8] sm:$0xff] %v3037
    %3158 = vst [vmem:[#allocation2 + $0x200] sm:$0xff] %v3038
    %3159 = vst [vmem:[#allocation2 + $0x208] sm:$0xff] %v3039
    %3160 = vst [vmem:[#allocation2 + $0x210] sm:$0xff] %v3040
    %3161 = vst [vmem:[#allocation2 + $0x218] sm:$0xff] %v3041
    %3162 = vst [vmem:[#allocation2 + $0x220] sm:$0xff] %v3042
    %3163 = vst [vmem:[#allocation2 + $0x228] sm:$0xff] %v3043
    %3164 = vst [vmem:[#allocation2 + $0x230] sm:$0xff] %v3044
    %3165 = vst [vmem:[#allocation2 + $0x238] sm:$0xff] %v3045
    %3166 = vst [vmem:[#allocation2 + $0x240] sm:$0xff] %v3046
    %3167 = vst [vmem:[#allocation2 + $0x248] sm:$0xff] %v3047
    %3168 = vst [vmem:[#allocation2 + $0x250] sm:$0xff] %v3048
    %3169 = vst [vmem:[#allocation2 + $0x258] sm:$0xff] %v3049
    %3170 = vst [vmem:[#allocation2 + $0x260] sm:$0xff] %v3050
    %3171 = vst [vmem:[#allocation2 + $0x268] sm:$0xff] %v3051
    %3172 = vst [vmem:[#allocation2 + $0x270] sm:$0xff] %v3052
    %3173 = vst [vmem:[#allocation2 + $0x278] sm:$0xff] %v3053
    %3174 = vst [vmem:[#allocation2 + $0x280] sm:$0xff] %v3054
    %3175 = vst [vmem:[#allocation2 + $0x288] sm:$0xff] %v3055
    %3176 = vst [vmem:[#allocation2 + $0x290] sm:$0xff] %v3056
    %3177 = vst [vmem:[#allocation2 + $0x298] sm:$0xff] %v3057
    %3178 = vst [vmem:[#allocation2 + $0x2a0] sm:$0xff] %v3058
    %3179 = vst [vmem:[#allocation2 + $0x2a8] sm:$0xff] %v3059
    %3180 = vst [vmem:[#allocation2 + $0x2b0] sm:$0xff] %v3060
    %3181 = vst [vmem:[#allocation2 + $0x2b8] sm:$0xff] %v3061
    %3182 = vst [vmem:[#allocation2 + $0x2c0] sm:$0xff] %v3062
    %3183 = vst [vmem:[#allocation2 + $0x2c8] sm:$0xff] %v3063
    %3184 = vst [vmem:[#allocation2 + $0x2d0] sm:$0xff] %v3064
    %3185 = vst [vmem:[#allocation2 + $0x2d8] sm:$0xff] %v3065
    %3186 = vst [vmem:[#allocation2 + $0x2e0] sm:$0xff] %v3066
    %3187 = vst [vmem:[#allocation2 + $0x2e8] sm:$0xff] %v3067
    %3188 = vst [vmem:[#allocation2 + $0x2f0] sm:$0xff] %v3068
    %3189 = vst [vmem:[#allocation2 + $0x2f8] sm:$0xff] %v3069
    %3190 = vst [vmem:[#allocation2 + $0x300] sm:$0xff] %v3070
    %3191 = vst [vmem:[#allocation2 + $0x308] sm:$0xff] %v3071
    %3192 = vst [vmem:[#allocation2 + $0x310] sm:$0xff] %v3072
    %3193 = vst [vmem:[#allocation2 + $0x318] sm:$0xff] %v3073
    %3194 = vst [vmem:[#allocation2 + $0x320] sm:$0xff] %v3074
    %3195 = vst [vmem:[#allocation2 + $0x328] sm:$0xff] %v3075
    %3196 = vst [vmem:[#allocation2 + $0x330] sm:$0xff] %v3076
    %3197 = vst [vmem:[#allocation2 + $0x338] sm:$0xff] %v3077
    %3198 = vst [vmem:[#allocation2 + $0x340] sm:$0xff] %v3078
    %3199 = vst [vmem:[#allocation2 + $0x348] sm:$0xff] %v3079
    %3200 = vst [vmem:[#allocation2 + $0x350] sm:$0xff] %v3080
    %3201 = vst [vmem:[#allocation2 + $0x358] sm:$0xff] %v3081
    %3202 = vst [vmem:[#allocation2 + $0x360] sm:$0xff] %v3082
    %3203 = vst [vmem:[#allocation2 + $0x368] sm:$0xff] %v3083
    %3204 = vst [vmem:[#allocation2 + $0x370] sm:$0xff] %v3084
    %3205 = vst [vmem:[#allocation2 + $0x378] sm:$0xff] %v3085
    %3206 = vst [vmem:[#allocation2 + $0x380] sm:$0xff] %v3086
    %3207 = vst [vmem:[#allocation2 + $0x388] sm:$0xff] %v3087
    %3208 = vst [vmem:[#allocation2 + $0x390] sm:$0xff] %v3088
    %3209 = vst [vmem:[#allocation2 + $0x398] sm:$0xff] %v3089
    %3210 = vst [vmem:[#allocation2 + $0x3a0] sm:$0xff] %v3090
    %3211 = vst [vmem:[#allocation2 + $0x3a8] sm:$0xff] %v3091
    %3212 = vst [vmem:[#allocation2 + $0x3b0] sm:$0xff] %v3092
    %3213 = vst [vmem:[#allocation2 + $0x3b8] sm:$0xff] %v3093
    %vm3214 = vcmask 7168
    %v3215 = vsel %vm3214, %v1169, %v1774
    %v3216 = vsel %vm3214, %v1170, %v1775
    %v3217 = vsel %vm3214, %v1171, %v1776
    %v3218 = vsel %vm3214, %v1172, %v1777
    %v3219 = vsel %vm3214, %v1173, %v1778
    %v3220 = vsel %vm3214, %v1174, %v1779
    %v3221 = vsel %vm3214, %v1175, %v1780
    %v3222 = vsel %vm3214, %v1176, %v1781
    %v3223 = vsel %vm3214, %v1177, %v1782
    %v3224 = vsel %vm3214, %v1178, %v1783
    %v3225 = vsel %vm3214, %v1179, %v1784
    %v3226 = vsel %vm3214, %v1180, %v1785
    %v3227 = vsel %vm3214, %v1181, %v1786
    %v3228 = vsel %vm3214, %v1182, %v1787
    %v3229 = vsel %vm3214, %v1183, %v1788
    %v3230 = vsel %vm3214, %v1184, %v1789
    %v3231 = vsel %vm3214, %v1185, %v1790
    %v3232 = vsel %vm3214, %v1186, %v1791
    %v3233 = vsel %vm3214, %v1187, %v1792
    %v3234 = vsel %vm3214, %v1188, %v1793
    %v3235 = vsel %vm3214, %v1189, %v1794
    %v3236 = vsel %vm3214, %v1190, %v1795
    %v3237 = vsel %vm3214, %v1191, %v1796
    %v3238 = vsel %vm3214, %v1192, %v1797
    %v3239 = vsel %vm3214, %v1193, %v1798
    %v3240 = vsel %vm3214, %v1194, %v1799
    %v3241 = vsel %vm3214, %v1195, %v1800
    %v3242 = vsel %vm3214, %v1196, %v1801
    %v3243 = vsel %vm3214, %v1197, %v1802
    %v3244 = vsel %vm3214, %v1198, %v1803
    %v3245 = vsel %vm3214, %v1199, %v1804
    %v3246 = vsel %vm3214, %v1200, %v1805
    %v3247 = vsel %vm3214, %v1201, %v1806
    %v3248 = vsel %vm3214, %v1202, %v1807
    %v3249 = vsel %vm3214, %v1203, %v1808
    %v3250 = vsel %vm3214, %v1204, %v1809
    %v3251 = vsel %vm3214, %v1205, %v1810
    %v3252 = vsel %vm3214, %v1206, %v1811
    %v3253 = vsel %vm3214, %v1207, %v1812
    %v3254 = vsel %vm3214, %v1208, %v1813
    %v3255 = vsel %vm3214, %v1209, %v1814
    %v3256 = vsel %vm3214, %v1210, %v1815
    %v3257 = vsel %vm3214, %v1211, %v1816
    %v3258 = vsel %vm3214, %v1212, %v1817
    %v3259 = vsel %vm3214, %v1213, %v1818
    %v3260 = vsel %vm3214, %v1214, %v1819
    %v3261 = vsel %vm3214, %v1215, %v1820
    %v3262 = vsel %vm3214, %v1216, %v1821
    %v3263 = vsel %vm3214, %v1217, %v1822
    %v3264 = vsel %vm3214, %v1218, %v1823
    %v3265 = vsel %vm3214, %v1219, %v1824
    %v3266 = vsel %vm3214, %v1220, %v1825
    %v3267 = vsel %vm3214, %v1221, %v1826
    %v3268 = vsel %vm3214, %v1222, %v1827
    %v3269 = vsel %vm3214, %v1223, %v1828
    %v3270 = vsel %vm3214, %v1224, %v1829
    %v3271 = vsel %vm3214, %v1225, %v1830
    %v3272 = vsel %vm3214, %v1226, %v1831
    %v3273 = vsel %vm3214, %v1227, %v1832
    %v3274 = vsel %vm3214, %v1228, %v1833
    %vm3275 = vcmask 15360
    %3276 = vst.msk [vmem:[%s6] sm:$0xff] %vm3275, %v3215
    %3277 = vst.msk [vmem:[%s6 + $0x8] sm:$0xff] %vm3275, %v3216
    %3278 = vst.msk [vmem:[%s6 + $0x10] sm:$0xff] %vm3275, %v3217
    %3279 = vst.msk [vmem:[%s6 + $0x18] sm:$0xff] %vm3275, %v3218
    %3280 = vst.msk [vmem:[%s6 + $0x20] sm:$0xff] %vm3275, %v3219
    %3281 = vst.msk [vmem:[%s6 + $0x28] sm:$0xff] %vm3275, %v3220
    %3282 = vst.msk [vmem:[%s6 + $0x30] sm:$0xff] %vm3275, %v3221
    %3283 = vst.msk [vmem:[%s6 + $0x38] sm:$0xff] %vm3275, %v3222
    %3284 = vst.msk [vmem:[%s6 + $0x40] sm:$0xff] %vm3275, %v3223
    %3285 = vst.msk [vmem:[%s6 + $0x48] sm:$0xff] %vm3275, %v3224
    %3286 = vst.msk [vmem:[%s6 + $0x50] sm:$0xff] %vm3275, %v3225
    %3287 = vst.msk [vmem:[%s6 + $0x58] sm:$0xff] %vm3275, %v3226
    %3288 = vst.msk [vmem:[%s6 + $0x60] sm:$0xff] %vm3275, %v3227
    %3289 = vst.msk [vmem:[%s6 + $0x68] sm:$0xff] %vm3275, %v3228
    %3290 = vst.msk [vmem:[%s6 + $0x70] sm:$0xff] %vm3275, %v3229
    %3291 = vst.msk [vmem:[%s6 + $0x78] sm:$0xff] %vm3275, %v3230
    %3292 = vst.msk [vmem:[%s6 + $0x80] sm:$0xff] %vm3275, %v3231
    %3293 = vst.msk [vmem:[%s6 + $0x88] sm:$0xff] %vm3275, %v3232
    %3294 = vst.msk [vmem:[%s6 + $0x90] sm:$0xff] %vm3275, %v3233
    %3295 = vst.msk [vmem:[%s6 + $0x98] sm:$0xff] %vm3275, %v3234
    %3296 = vst.msk [vmem:[%s6 + $0xa0] sm:$0xff] %vm3275, %v3235
    %3297 = vst.msk [vmem:[%s6 + $0xa8] sm:$0xff] %vm3275, %v3236
    %3298 = vst.msk [vmem:[%s6 + $0xb0] sm:$0xff] %vm3275, %v3237
    %3299 = vst.msk [vmem:[%s6 + $0xb8] sm:$0xff] %vm3275, %v3238
    %3300 = vst.msk [vmem:[%s6 + $0xc0] sm:$0xff] %vm3275, %v3239
    %3301 = vst.msk [vmem:[%s6 + $0xc8] sm:$0xff] %vm3275, %v3240
    %3302 = vst.msk [vmem:[%s6 + $0xd0] sm:$0xff] %vm3275, %v3241
    %3303 = vst.msk [vmem:[%s6 + $0xd8] sm:$0xff] %vm3275, %v3242
    %3304 = vst.msk [vmem:[%s6 + $0xe0] sm:$0xff] %vm3275, %v3243
    %3305 = vst.msk [vmem:[%s6 + $0xe8] sm:$0xff] %vm3275, %v3244
    %3306 = vst.msk [vmem:[%s6 + $0xf0] sm:$0xff] %vm3275, %v3245
    %3307 = vst.msk [vmem:[%s6 + $0xf8] sm:$0xff] %vm3275, %v3246
    %3308 = vst.msk [vmem:[%s6 + $0x100] sm:$0xff] %vm3275, %v3247
    %3309 = vst.msk [vmem:[%s6 + $0x108] sm:$0xff] %vm3275, %v3248
    %3310 = vst.msk [vmem:[%s6 + $0x110] sm:$0xff] %vm3275, %v3249
    %3311 = vst.msk [vmem:[%s6 + $0x118] sm:$0xff] %vm3275, %v3250
    %3312 = vst.msk [vmem:[%s6 + $0x120] sm:$0xff] %vm3275, %v3251
    %3313 = vst.msk [vmem:[%s6 + $0x128] sm:$0xff] %vm3275, %v3252
    %3314 = vst.msk [vmem:[%s6 + $0x130] sm:$0xff] %vm3275, %v3253
    %3315 = vst.msk [vmem:[%s6 + $0x138] sm:$0xff] %vm3275, %v3254
    %3316 = vst.msk [vmem:[%s6 + $0x140] sm:$0xff] %vm3275, %v3255
    %3317 = vst.msk [vmem:[%s6 + $0x148] sm:$0xff] %vm3275, %v3256
    %3318 = vst.msk [vmem:[%s6 + $0x150] sm:$0xff] %vm3275, %v3257
    %3319 = vst.msk [vmem:[%s6 + $0x158] sm:$0xff] %vm3275, %v3258
    %3320 = vst.msk [vmem:[%s6 + $0x160] sm:$0xff] %vm3275, %v3259
    %3321 = vst.msk [vmem:[%s6 + $0x168] sm:$0xff] %vm3275, %v3260
    %3322 = vst.msk [vmem:[%s6 + $0x170] sm:$0xff] %vm3275, %v3261
    %3323 = vst.msk [vmem:[%s6 + $0x178] sm:$0xff] %vm3275, %v3262
    %3324 = vst.msk [vmem:[%s6 + $0x180] sm:$0xff] %vm3275, %v3263
    %3325 = vst.msk [vmem:[%s6 + $0x188] sm:$0xff] %vm3275, %v3264
    %3326 = vst.msk [vmem:[%s6 + $0x190] sm:$0xff] %vm3275, %v3265
    %3327 = vst.msk [vmem:[%s6 + $0x198] sm:$0xff] %vm3275, %v3266
    %3328 = vst.msk [vmem:[%s6 + $0x1a0] sm:$0xff] %vm3275, %v3267
    %3329 = vst.msk [vmem:[%s6 + $0x1a8] sm:$0xff] %vm3275, %v3268
    %3330 = vst.msk [vmem:[%s6 + $0x1b0] sm:$0xff] %vm3275, %v3269
    %3331 = vst.msk [vmem:[%s6 + $0x1b8] sm:$0xff] %vm3275, %v3270
    %3332 = vst.msk [vmem:[%s6 + $0x1c0] sm:$0xff] %vm3275, %v3271
    %3333 = vst.msk [vmem:[%s6 + $0x1c8] sm:$0xff] %vm3275, %v3272
    %3334 = vst.msk [vmem:[%s6 + $0x1d0] sm:$0xff] %vm3275, %v3273
    %3335 = vst.msk [vmem:[%s6 + $0x1d8] sm:$0xff] %vm3275, %v3274
    // Predicated region
    $region22: #{tpu_custom_call.1} parent=1 // pred_check
      _
    $region23: #{tpu_custom_call.1} parent=1 // pred_check_branch
      %3337 = sbr.rel (0) target = $region25
    $region24: #{tpu_custom_call.1} parent=1 // pred_region
      %s3339 = ssub.s32 15360, 15360
      %3340 = vsyncadd [#allocation3], %s3339
      %s3341 = sshll.u32 [#allocation2], 4
      %s3342 = int_to_ptr.vmem [resolvable:$true] %s3341
      %3347 = dma.vmem_to_hbm [thread:$0]  %s3342, 15360, %s5, [#allocation3], 256, 256, 16
    $region25: #{tpu_custom_call.1} parent=1 // pred_fallthru
      _
    // Predicated region
    $region26: #{tpu_custom_call.1} parent=1 // pred_check
      _
    $region27: #{tpu_custom_call.1} parent=1 // pred_check_branch
      %3349 = sbr.rel (0) target = $region29
    $region28: #{tpu_custom_call.1} parent=1 // pred_region
      _
    $region29: #{tpu_custom_call.1} parent=1 // pred_fallthru
      _
    // Predicated region
    $region30: #{tpu_custom_call.1} parent=1 // pred_check
      _
    $region31: #{tpu_custom_call.1} parent=1 // pred_check_branch
      %3351 = sbr.rel (0) target = $region33
    $region32: #{tpu_custom_call.1} parent=1 // pred_region
      %3352 = dma.done [#allocation3], 15360
    $region33: #{tpu_custom_call.1} parent=1 // pred_fallthru
      _
    // Predicated region
    $region34: #{tpu_custom_call.1} parent=1 // pred_check
      _
    $region35: #{tpu_custom_call.1} parent=1 // pred_check_branch
      %3354 = sbr.rel (0) target = $region37
    $region36: #{tpu_custom_call.1} parent=1 // pred_region
      _
    $region37: #{tpu_custom_call.1} parent=1 // pred_fallthru
      _
    %3355 = vsyncpa [#allocation3], 1

</llo_original>
